<compile_context>
chip_gen: v6e
topology: v6e:2x2x1
jax: 0.10.0
libtpu: 0.0.40
codegen_flags: <defaults>
</compile_context>

<pallas_src>
import math

import jax
import jax.numpy as jnp
from jax.experimental import pallas as pl
from jax.experimental.pallas import tpu as pltpu


def _make_elanh_kernel(H, W):
    """Returns the fused ELANH kernel closed over the (static) spatial dims."""
    HW = H * W

    def silu(v):
        # x * sigmoid(x); exp + reciprocal both go to the EUP slot (off the VPU path).
        return v * pl.reciprocal(1.0 + jnp.exp(-v), approx=False)

    def kernel(x_ref, mask_ref, w12_ref, w3_ref, w4_ref, w5_ref, w6_ref,
               w7a_ref, w7c_ref,
               b12_ref, b3_ref, b4_ref, b5_ref, b6_ref, b7_ref,
               o_ref):
        # x_ref   : (1, Cin, HW)   bf16, lane-dense
        # mask_ref: (9, 1, HW)     f32 0/1 boundary masks per 3x3 tap
        # w12     : (2*Cout, Cin)  bf16   fused conv1|conv2
        # w3      : (9, Cmid, Cout) bf16  per-tap 3x3 weights
        # w4..w6  : (9, Cmid, Cmid) bf16
        # w7a     : (Cout, 2*Cout) bf16   conv7 columns for [out1; out2]
        # w7c     : (4, Cout, Cmid) bf16  conv7 columns for out3..out6
        # b*      : (C, 1) f32 folded BN biases
        # o_ref   : (1, Cout, HW)
        cout = o_ref.shape[1]

        def conv3x3(a_f32, w_ref, b_ref):
            # a_f32: (Ci, HW) f32 activation.  9 rolled+masked taps, 9 partial dots.
            co = w_ref.shape[1]
            acc = jnp.zeros((co, HW), jnp.float32)
            t = 0
            for dy in range(3):
                for dx in range(3):
                    off = (dy - 1) * W + (dx - 1)
                    if off == 0:
                        tap = a_f32                      # center tap: no roll, no mask
                    else:
                        tap = pltpu.roll(a_f32, shift=(-off) % HW, axis=1)
                        tap = tap * mask_ref[t]          # zero out-of-image / wrapped lanes
                    acc = acc + jnp.dot(w_ref[t], tap.astype(jnp.bfloat16),
                                        preferred_element_type=jnp.float32)
                    t += 1
            return silu(acc + b_ref[...])

        x2d = x_ref[0]                                   # (Cin, HW) bf16

        # conv1 + conv2 fused into one matmul: rows [0:Cout] = out1, [Cout:2Cout] = out2.
        y12 = jnp.dot(w12_ref[...], x2d, preferred_element_type=jnp.float32)
        o12 = silu(y12 + b12_ref[...])                   # (2*Cout, HW) f32
        out2 = o12[cout:, :]                             # sublane-aligned f32 slice

        o3 = conv3x3(out2, w3_ref, b3_ref)               # (Cmid, HW) f32
        o4 = conv3x3(o3, w4_ref, b4_ref)
        o5 = conv3x3(o4, w5_ref, b5_ref)
        o6 = conv3x3(o5, w6_ref, b6_ref)

        # conv7 over the implicit concat([out1,out2,out3..out6]) as 5 partial dots
        # (no sublane-misaligned concatenate).
        acc = jnp.dot(w7a_ref[...], o12.astype(jnp.bfloat16),
                      preferred_element_type=jnp.float32)
        acc = acc + jnp.dot(w7c_ref[0], o3.astype(jnp.bfloat16),
                            preferred_element_type=jnp.float32)
        acc = acc + jnp.dot(w7c_ref[1], o4.astype(jnp.bfloat16),
                            preferred_element_type=jnp.float32)
        acc = acc + jnp.dot(w7c_ref[2], o5.astype(jnp.bfloat16),
                            preferred_element_type=jnp.float32)
        acc = acc + jnp.dot(w7c_ref[3], o6.astype(jnp.bfloat16),
                            preferred_element_type=jnp.float32)
        y = silu(acc + b7_ref[...])
        o_ref[...] = y.reshape(1, cout, HW).astype(o_ref.dtype)

    return kernel


def elanh_pallas(x_nchw, folded):
    """x_nchw: (N, Cin, H, W) f32. folded: 7 (w_oihw, bias) tuples in module order
    (conv1..conv7), with eval-mode BatchNorm already folded into each conv."""
    N, Cin, H, W = x_nchw.shape
    HW = H * W
    Cout = folded[0][0].shape[0]
    Cmid = folded[2][0].shape[0]

    ws = [f[0] for f in folded]
    bs = [f[1] for f in folded]

    def pack1x1(w):
        return w[:, :, 0, 0].astype(jnp.bfloat16)                 # (O, I)

    def pack3x3_taps(w):
        o, i = w.shape[0], w.shape[1]
        # tap-major: (kh, kw, O, I) -> (9, O, I); tap t = kh*3 + kw matches kernel loop.
        return jnp.transpose(w, (2, 3, 0, 1)).reshape(9, o, i).astype(jnp.bfloat16)

    def packb(b):
        return b.reshape(-1, 1).astype(jnp.float32)               # (O, 1)

    # Fused conv1 | conv2.
    w12 = jnp.concatenate([pack1x1(ws[0]), pack1x1(ws[1])], axis=0)          # (2*Cout, Cin)
    b12 = jnp.concatenate([bs[0], bs[1]]).reshape(-1, 1).astype(jnp.float32)

    w3p, w4p, w5p, w6p = (pack3x3_taps(ws[i]) for i in (2, 3, 4, 5))
    b3p, b4p, b5p, b6p = (packb(bs[i]) for i in (2, 3, 4, 5))

    # conv7 split into per-chunk column blocks (concat consumed as partial dots).
    w7 = pack1x1(ws[6])                                                       # (Cout, 4*Cout)
    w7a = w7[:, :2 * Cout]                                                    # -> [out1; out2]
    w7c = jnp.stack([w7[:, 2 * Cout + k * Cmid: 2 * Cout + (k + 1) * Cmid]
                     for k in range(4)], axis=0)                              # (4, Cout, Cmid)
    b7p = packb(bs[6])

    # Precomputed 0/1 boundary masks for the 9 taps of a padding=1 3x3 conv on the
    # flattened (C, HW) layout.  Built once in the wrapper -> no iota/div in-kernel.
    yy, xx = jnp.meshgrid(jnp.arange(H), jnp.arange(W), indexing="ij")
    yy = yy.reshape(1, HW)
    xx = xx.reshape(1, HW)
    mask_list = []
    for dy in range(3):
        for dx in range(3):
            ok = jnp.ones((1, HW), jnp.float32)
            if dy == 0:
                ok = ok * (yy >= 1)
            if dy == 2:
                ok = ok * (yy <= H - 2)
            if dx == 0:
                ok = ok * (xx >= 1)
            if dx == 2:
                ok = ok * (xx <= W - 2)
            mask_list.append(ok)
    tapmask = jnp.stack(mask_list, axis=0).astype(jnp.float32)                # (9, 1, HW)

    # Lane-dense input: (N, Cin, H*W) is a free (metadata-only) reshape of NCHW.
    x_flat = x_nchw.reshape(N, Cin, HW).astype(jnp.bfloat16)

    args = (x_flat, tapmask, w12, w3p, w4p, w5p, w6p, w7a, w7c,
            b12, b3p, b4p, b5p, b6p, b7p)

    def resident(a):
        # Weights / biases / masks are tiny: keep them fully resident across the grid.
        zeros = (0,) * a.ndim
        return pl.BlockSpec(a.shape, lambda n, _z=zeros: _z)

    in_specs = [pl.BlockSpec((1, Cin, HW), lambda n: (n, 0, 0))]
    in_specs += [resident(a) for a in args[1:]]

    out = pl.pallas_call(
        _make_elanh_kernel(H, W),
        out_shape=jax.ShapeDtypeStruct((N, Cout, HW), x_nchw.dtype),
        grid_spec=pltpu.PrefetchScalarGridSpec(
            num_scalar_prefetch=0,
            grid=(N,),
            in_specs=in_specs,
            out_specs=pl.BlockSpec((1, Cout, HW), lambda n: (n, 0, 0)),
        ),
        compiler_params=pltpu.CompilerParams(
            dimension_semantics=("parallel",)),
    )(*args)

    # (N, Cout, H*W) is already NCHW-contiguous: the reshape is free (no HBM pass).
    return out.reshape(N, Cout, H, W)


# ---------------------------------------------------------------------------
# Parameter construction (fold eval-mode BN into each bias-free conv) + reference
# ---------------------------------------------------------------------------

def _fold_bn(w_oihw, gamma, beta, mean, var, eps=1e-5):
    scale = gamma / jnp.sqrt(var + eps)                           # (Cout,)
    return w_oihw * scale[:, None, None, None], beta - mean * scale


def _make_folded_convblock(key, cin, cout, ksize):
    kw, kg, kb, km, kv = jax.random.split(key, 5)
    fan_in = cin * ksize * ksize
    w = jax.random.normal(kw, (cout, cin, ksize, ksize), jnp.float32) / math.sqrt(fan_in)
    gamma = 1.0 + 0.1 * jax.random.normal(kg, (cout,), jnp.float32)
    beta = 0.1 * jax.random.normal(kb, (cout,), jnp.float32)
    mean = 0.1 * jax.random.normal(km, (cout,), jnp.float32)
    var = jnp.abs(jax.random.normal(kv, (cout,), jnp.float32)) + 0.5
    return _fold_bn(w, gamma, beta, mean, var)


def _conv_block_ref(x, w, b, pad):
    y = jax.lax.conv_general_dilated(
        x, w, window_strides=(1, 1), padding=((pad, pad), (pad, pad)),
        dimension_numbers=("NCHW", "OIHW", "NCHW"))
    y = y + b[None, :, None, None]
    return y * jax.nn.sigmoid(y)                                  # SiLU


def _elanh_reference(x, folded):
    (w1, b1), (w2, b2), (w3, b3), (w4, b4), (w5, b5), (w6, b6), (w7, b7) = folded
    o1 = _conv_block_ref(x, w1, b1, 0)
    o2 = _conv_block_ref(x, w2, b2, 0)
    o3 = _conv_block_ref(o2, w3, b3, 1)
    o4 = _conv_block_ref(o3, w4, b4, 1)
    o5 = _conv_block_ref(o4, w5, b5, 1)
    o6 = _conv_block_ref(o5, w6, b6, 1)
    cat = jnp.concatenate([o1, o2, o3, o4, o5, o6], axis=1)
    return _conv_block_ref(cat, w7, b7, 0)


if __name__ == "__main__":
    # Module config: ELANH(in_channels=4, out_channels=8); small deterministic shapes.
    in_channels, out_channels = 4, 8
    cmid = out_channels // 2
    N, H, W = 2, 16, 16

    key = jax.random.PRNGKey(0)
    kx, *kws = jax.random.split(key, 8)
    x = jax.random.normal(kx, (N, in_channels, H, W), jnp.float32)

    cfg = [
        (in_channels, out_channels, 1),      # conv1
        (in_channels, out_channels, 1),      # conv2
        (out_channels, cmid, 3),             # conv3
        (cmid, cmid, 3),                     # conv4
        (cmid, cmid, 3),                     # conv5
        (cmid, cmid, 3),                     # conv6
        (out_channels * 4, out_channels, 1), # conv7
    ]
    folded = [_make_folded_convblock(k, ci, co, ks)
              for k, (ci, co, ks) in zip(kws, cfg)]

    out = jax.block_until_ready(elanh_pallas(x, folded))

    ref = _elanh_reference(x, folded)
    assert out.shape == (N, out_channels, H, W)
    # bf16 matmul inputs (f32 accumulation) -> loosened tolerance vs f32 reference.
    max_err = float(jnp.max(jnp.abs(out - ref)))
    assert jnp.allclose(out, ref, atol=5e-2, rtol=5e-2), (
        f"mismatch vs reference (max abs err {max_err})")

    print("KERNEL_OK")
</pallas_src>

<mosaic_0001>
module attributes {stable_mosaic.version = 11 : i64} {
  func.func @kernel(%arg0: i32, %arg1: memref<1x4x256xbf16, #tpu.memory_space<vmem>>, %arg2: memref<9x1x256xf32, #tpu.memory_space<vmem>>, %arg3: memref<16x4xbf16, #tpu.memory_space<vmem>>, %arg4: memref<9x4x8xbf16, #tpu.memory_space<vmem>>, %arg5: memref<9x4x4xbf16, #tpu.memory_space<vmem>>, %arg6: memref<9x4x4xbf16, #tpu.memory_space<vmem>>, %arg7: memref<9x4x4xbf16, #tpu.memory_space<vmem>>, %arg8: memref<8x16xbf16, #tpu.memory_space<vmem>>, %arg9: memref<4x8x4xbf16, #tpu.memory_space<vmem>>, %arg10: memref<16x1xf32, #tpu.memory_space<vmem>>, %arg11: memref<4x1xf32, #tpu.memory_space<vmem>>, %arg12: memref<4x1xf32, #tpu.memory_space<vmem>>, %arg13: memref<4x1xf32, #tpu.memory_space<vmem>>, %arg14: memref<4x1xf32, #tpu.memory_space<vmem>>, %arg15: memref<8x1xf32, #tpu.memory_space<vmem>>, %arg16: memref<1x8x256xf32, #tpu.memory_space<vmem>>) attributes {dimension_semantics = [#tpu.dimension_semantics<parallel>], iteration_bounds = array<i64: 2>, scalar_prefetch = 0 : i64, scratch_operands = 0 : i64, tpu.core_type = #tpu.core_type<tc>, window_params = [{transform_indices = @transform_0, window_bounds = array<i64: 1, 4, 256>}, {pipeline_mode = #tpu.pipeline_mode<synchronous>, transform_indices = @transform_1, window_bounds = array<i64: 9, 1, 256>}, {pipeline_mode = #tpu.pipeline_mode<synchronous>, transform_indices = @transform_2, window_bounds = array<i64: 16, 4>}, {pipeline_mode = #tpu.pipeline_mode<synchronous>, transform_indices = @transform_3, window_bounds = array<i64: 9, 4, 8>}, {pipeline_mode = #tpu.pipeline_mode<synchronous>, transform_indices = @transform_4, window_bounds = array<i64: 9, 4, 4>}, {pipeline_mode = #tpu.pipeline_mode<synchronous>, transform_indices = @transform_5, window_bounds = array<i64: 9, 4, 4>}, {pipeline_mode = #tpu.pipeline_mode<synchronous>, transform_indices = @transform_6, window_bounds = array<i64: 9, 4, 4>}, {pipeline_mode = #tpu.pipeline_mode<synchronous>, transform_indices = @transform_7, window_bounds = array<i64: 8, 16>}, {pipeline_mode = #tpu.pipeline_mode<synchronous>, transform_indices = @transform_8, window_bounds = array<i64: 4, 8, 4>}, {pipeline_mode = #tpu.pipeline_mode<synchronous>, transform_indices = @transform_9, window_bounds = array<i64: 16, 1>}, {pipeline_mode = #tpu.pipeline_mode<synchronous>, transform_indices = @transform_10, window_bounds = array<i64: 4, 1>}, {pipeline_mode = #tpu.pipeline_mode<synchronous>, transform_indices = @transform_11, window_bounds = array<i64: 4, 1>}, {pipeline_mode = #tpu.pipeline_mode<synchronous>, transform_indices = @transform_12, window_bounds = array<i64: 4, 1>}, {pipeline_mode = #tpu.pipeline_mode<synchronous>, transform_indices = @transform_13, window_bounds = array<i64: 4, 1>}, {pipeline_mode = #tpu.pipeline_mode<synchronous>, transform_indices = @transform_14, window_bounds = array<i64: 8, 1>}, {transform_indices = @transform_15, window_bounds = array<i64: 1, 8, 256>}]} {
    %c0 = arith.constant 0 : index
    %c0_0 = arith.constant 0 : index
    %c0_1 = arith.constant 0 : index
    %0 = vector.load %arg1[%c0, %c0_0, %c0_1] : memref<1x4x256xbf16, #tpu.memory_space<vmem>>, vector<1x4x256xbf16>
    %1 = vector.shape_cast %0 : vector<1x4x256xbf16> to vector<4x256xbf16>
    %c0_2 = arith.constant 0 : index
    %c0_3 = arith.constant 0 : index
    %2 = vector.load %arg3[%c0_2, %c0_3] : memref<16x4xbf16, #tpu.memory_space<vmem>>, vector<16x4xbf16>
    %cst = arith.constant dense<0.000000e+00> : vector<16x256xf32>
    %3 = tpu.matmul %2, %1, %cst {dimension_numbers = #tpu.dot_dimension_numbers<[1], [0], [0], [1], [0, 0, 1, 1], [], []>} : vector<16x4xbf16>, vector<4x256xbf16>, vector<16x256xf32> -> vector<16x256xf32>
    %c0_4 = arith.constant 0 : index
    %c0_5 = arith.constant 0 : index
    %4 = vector.load %arg10[%c0_4, %c0_5] : memref<16x1xf32, #tpu.memory_space<vmem>>, vector<16x1xf32>
    %5 = vector.broadcast %4 : vector<16x1xf32> to vector<16x256xf32>
    %6 = arith.addf %3, %5 : vector<16x256xf32>
    %cst_6 = arith.constant 0.000000e+00 : f32
    %7 = vector.broadcast %cst_6 : f32 to vector<16x256xf32>
    %8 = arith.subf %7, %6 : vector<16x256xf32>
    %9 = math.exp %8 : vector<16x256xf32>
    %cst_7 = arith.constant 1.000000e+00 : f32
    %10 = vector.broadcast %cst_7 : f32 to vector<16x256xf32>
    %11 = arith.addf %10, %9 : vector<16x256xf32>
    %12 = tpu.reciprocal %11 : vector<16x256xf32> -> vector<16x256xf32>
    %13 = arith.mulf %6, %12 : vector<16x256xf32>
    %14 = vector.extract_strided_slice %13 {offsets = [8, 0], sizes = [8, 256], strides = [1, 1]} : vector<16x256xf32> to vector<8x256xf32>
    %cst_8 = arith.constant 0.000000e+00 : f32
    %15 = vector.broadcast %cst_8 : f32 to vector<4x256xf32>
    %c17_i32 = arith.constant 17 : i32
    %16 = tpu.dynamic_rotate %14 by %c17_i32 dim 1 : vector<8x256xf32>, i32 -> vector<8x256xf32>
    %c0_9 = arith.constant 0 : index
    %c0_10 = arith.constant 0 : index
    %c0_11 = arith.constant 0 : index
    %17 = vector.load %arg2[%c0_9, %c0_10, %c0_11] : memref<9x1x256xf32, #tpu.memory_space<vmem>>, vector<1x1x256xf32>
    %18 = vector.shape_cast %17 : vector<1x1x256xf32> to vector<1x256xf32>
    %19 = vector.broadcast %18 : vector<1x256xf32> to vector<8x256xf32>
    %20 = arith.mulf %16, %19 : vector<8x256xf32>
    %c0_12 = arith.constant 0 : index
    %c0_13 = arith.constant 0 : index
    %c0_14 = arith.constant 0 : index
    %21 = vector.load %arg4[%c0_12, %c0_13, %c0_14] : memref<9x4x8xbf16, #tpu.memory_space<vmem>>, vector<1x4x8xbf16>
    %22 = vector.shape_cast %21 : vector<1x4x8xbf16> to vector<4x8xbf16>
    %23 = arith.truncf %20 : vector<8x256xf32> to vector<8x256xbf16>
    %cst_15 = arith.constant dense<0.000000e+00> : vector<4x256xf32>
    %24 = tpu.matmul %22, %23, %cst_15 {dimension_numbers = #tpu.dot_dimension_numbers<[1], [0], [0], [1], [0, 0, 1, 1], [], []>} : vector<4x8xbf16>, vector<8x256xbf16>, vector<4x256xf32> -> vector<4x256xf32>
    %25 = arith.addf %15, %24 : vector<4x256xf32>
    %c16_i32 = arith.constant 16 : i32
    %26 = tpu.dynamic_rotate %14 by %c16_i32 dim 1 : vector<8x256xf32>, i32 -> vector<8x256xf32>
    %c1 = arith.constant 1 : index
    %c0_16 = arith.constant 0 : index
    %c0_17 = arith.constant 0 : index
    %27 = vector.load %arg2[%c1, %c0_16, %c0_17] : memref<9x1x256xf32, #tpu.memory_space<vmem>>, vector<1x1x256xf32>
    %28 = vector.shape_cast %27 : vector<1x1x256xf32> to vector<1x256xf32>
    %29 = vector.broadcast %28 : vector<1x256xf32> to vector<8x256xf32>
    %30 = arith.mulf %26, %29 : vector<8x256xf32>
    %c1_18 = arith.constant 1 : index
    %c0_19 = arith.constant 0 : index
    %c0_20 = arith.constant 0 : index
    %31 = vector.load %arg4[%c1_18, %c0_19, %c0_20] : memref<9x4x8xbf16, #tpu.memory_space<vmem>>, vector<1x4x8xbf16>
    %32 = vector.shape_cast %31 : vector<1x4x8xbf16> to vector<4x8xbf16>
    %33 = arith.truncf %30 : vector<8x256xf32> to vector<8x256xbf16>
    %cst_21 = arith.constant dense<0.000000e+00> : vector<4x256xf32>
    %34 = tpu.matmul %32, %33, %cst_21 {dimension_numbers = #tpu.dot_dimension_numbers<[1], [0], [0], [1], [0, 0, 1, 1], [], []>} : vector<4x8xbf16>, vector<8x256xbf16>, vector<4x256xf32> -> vector<4x256xf32>
    %35 = arith.addf %25, %34 : vector<4x256xf32>
    %c15_i32 = arith.constant 15 : i32
    %36 = tpu.dynamic_rotate %14 by %c15_i32 dim 1 : vector<8x256xf32>, i32 -> vector<8x256xf32>
    %c2 = arith.constant 2 : index
    %c0_22 = arith.constant 0 : index
    %c0_23 = arith.constant 0 : index
    %37 = vector.load %arg2[%c2, %c0_22, %c0_23] : memref<9x1x256xf32, #tpu.memory_space<vmem>>, vector<1x1x256xf32>
    %38 = vector.shape_cast %37 : vector<1x1x256xf32> to vector<1x256xf32>
    %39 = vector.broadcast %38 : vector<1x256xf32> to vector<8x256xf32>
    %40 = arith.mulf %36, %39 : vector<8x256xf32>
    %c2_24 = arith.constant 2 : index
    %c0_25 = arith.constant 0 : index
    %c0_26 = arith.constant 0 : index
    %41 = vector.load %arg4[%c2_24, %c0_25, %c0_26] : memref<9x4x8xbf16, #tpu.memory_space<vmem>>, vector<1x4x8xbf16>
    %42 = vector.shape_cast %41 : vector<1x4x8xbf16> to vector<4x8xbf16>
    %43 = arith.truncf %40 : vector<8x256xf32> to vector<8x256xbf16>
    %cst_27 = arith.constant dense<0.000000e+00> : vector<4x256xf32>
    %44 = tpu.matmul %42, %43, %cst_27 {dimension_numbers = #tpu.dot_dimension_numbers<[1], [0], [0], [1], [0, 0, 1, 1], [], []>} : vector<4x8xbf16>, vector<8x256xbf16>, vector<4x256xf32> -> vector<4x256xf32>
    %45 = arith.addf %35, %44 : vector<4x256xf32>
    %c1_i32 = arith.constant 1 : i32
    %46 = tpu.dynamic_rotate %14 by %c1_i32 dim 1 : vector<8x256xf32>, i32 -> vector<8x256xf32>
    %c3 = arith.constant 3 : index
    %c0_28 = arith.constant 0 : index
    %c0_29 = arith.constant 0 : index
    %47 = vector.load %arg2[%c3, %c0_28, %c0_29] : memref<9x1x256xf32, #tpu.memory_space<vmem>>, vector<1x1x256xf32>
    %48 = vector.shape_cast %47 : vector<1x1x256xf32> to vector<1x256xf32>
    %49 = vector.broadcast %48 : vector<1x256xf32> to vector<8x256xf32>
    %50 = arith.mulf %46, %49 : vector<8x256xf32>
    %c3_30 = arith.constant 3 : index
    %c0_31 = arith.constant 0 : index
    %c0_32 = arith.constant 0 : index
    %51 = vector.load %arg4[%c3_30, %c0_31, %c0_32] : memref<9x4x8xbf16, #tpu.memory_space<vmem>>, vector<1x4x8xbf16>
    %52 = vector.shape_cast %51 : vector<1x4x8xbf16> to vector<4x8xbf16>
    %53 = arith.truncf %50 : vector<8x256xf32> to vector<8x256xbf16>
    %cst_33 = arith.constant dense<0.000000e+00> : vector<4x256xf32>
    %54 = tpu.matmul %52, %53, %cst_33 {dimension_numbers = #tpu.dot_dimension_numbers<[1], [0], [0], [1], [0, 0, 1, 1], [], []>} : vector<4x8xbf16>, vector<8x256xbf16>, vector<4x256xf32> -> vector<4x256xf32>
    %55 = arith.addf %45, %54 : vector<4x256xf32>
    %c4 = arith.constant 4 : index
    %c0_34 = arith.constant 0 : index
    %c0_35 = arith.constant 0 : index
    %56 = vector.load %arg4[%c4, %c0_34, %c0_35] : memref<9x4x8xbf16, #tpu.memory_space<vmem>>, vector<1x4x8xbf16>
    %57 = vector.shape_cast %56 : vector<1x4x8xbf16> to vector<4x8xbf16>
    %58 = arith.truncf %14 : vector<8x256xf32> to vector<8x256xbf16>
    %cst_36 = arith.constant dense<0.000000e+00> : vector<4x256xf32>
    %59 = tpu.matmul %57, %58, %cst_36 {dimension_numbers = #tpu.dot_dimension_numbers<[1], [0], [0], [1], [0, 0, 1, 1], [], []>} : vector<4x8xbf16>, vector<8x256xbf16>, vector<4x256xf32> -> vector<4x256xf32>
    %60 = arith.addf %55, %59 : vector<4x256xf32>
    %c255_i32 = arith.constant 255 : i32
    %61 = tpu.dynamic_rotate %14 by %c255_i32 dim 1 : vector<8x256xf32>, i32 -> vector<8x256xf32>
    %c5 = arith.constant 5 : index
    %c0_37 = arith.constant 0 : index
    %c0_38 = arith.constant 0 : index
    %62 = vector.load %arg2[%c5, %c0_37, %c0_38] : memref<9x1x256xf32, #tpu.memory_space<vmem>>, vector<1x1x256xf32>
    %63 = vector.shape_cast %62 : vector<1x1x256xf32> to vector<1x256xf32>
    %64 = vector.broadcast %63 : vector<1x256xf32> to vector<8x256xf32>
    %65 = arith.mulf %61, %64 : vector<8x256xf32>
    %c5_39 = arith.constant 5 : index
    %c0_40 = arith.constant 0 : index
    %c0_41 = arith.constant 0 : index
    %66 = vector.load %arg4[%c5_39, %c0_40, %c0_41] : memref<9x4x8xbf16, #tpu.memory_space<vmem>>, vector<1x4x8xbf16>
    %67 = vector.shape_cast %66 : vector<1x4x8xbf16> to vector<4x8xbf16>
    %68 = arith.truncf %65 : vector<8x256xf32> to vector<8x256xbf16>
    %cst_42 = arith.constant dense<0.000000e+00> : vector<4x256xf32>
    %69 = tpu.matmul %67, %68, %cst_42 {dimension_numbers = #tpu.dot_dimension_numbers<[1], [0], [0], [1], [0, 0, 1, 1], [], []>} : vector<4x8xbf16>, vector<8x256xbf16>, vector<4x256xf32> -> vector<4x256xf32>
    %70 = arith.addf %60, %69 : vector<4x256xf32>
    %c241_i32 = arith.constant 241 : i32
    %71 = tpu.dynamic_rotate %14 by %c241_i32 dim 1 : vector<8x256xf32>, i32 -> vector<8x256xf32>
    %c6 = arith.constant 6 : index
    %c0_43 = arith.constant 0 : index
    %c0_44 = arith.constant 0 : index
    %72 = vector.load %arg2[%c6, %c0_43, %c0_44] : memref<9x1x256xf32, #tpu.memory_space<vmem>>, vector<1x1x256xf32>
    %73 = vector.shape_cast %72 : vector<1x1x256xf32> to vector<1x256xf32>
    %74 = vector.broadcast %73 : vector<1x256xf32> to vector<8x256xf32>
    %75 = arith.mulf %71, %74 : vector<8x256xf32>
    %c6_45 = arith.constant 6 : index
    %c0_46 = arith.constant 0 : index
    %c0_47 = arith.constant 0 : index
    %76 = vector.load %arg4[%c6_45, %c0_46, %c0_47] : memref<9x4x8xbf16, #tpu.memory_space<vmem>>, vector<1x4x8xbf16>
    %77 = vector.shape_cast %76 : vector<1x4x8xbf16> to vector<4x8xbf16>
    %78 = arith.truncf %75 : vector<8x256xf32> to vector<8x256xbf16>
    %cst_48 = arith.constant dense<0.000000e+00> : vector<4x256xf32>
    %79 = tpu.matmul %77, %78, %cst_48 {dimension_numbers = #tpu.dot_dimension_numbers<[1], [0], [0], [1], [0, 0, 1, 1], [], []>} : vector<4x8xbf16>, vector<8x256xbf16>, vector<4x256xf32> -> vector<4x256xf32>
    %80 = arith.addf %70, %79 : vector<4x256xf32>
    %c240_i32 = arith.constant 240 : i32
    %81 = tpu.dynamic_rotate %14 by %c240_i32 dim 1 : vector<8x256xf32>, i32 -> vector<8x256xf32>
    %c7 = arith.constant 7 : index
    %c0_49 = arith.constant 0 : index
    %c0_50 = arith.constant 0 : index
    %82 = vector.load %arg2[%c7, %c0_49, %c0_50] : memref<9x1x256xf32, #tpu.memory_space<vmem>>, vector<1x1x256xf32>
    %83 = vector.shape_cast %82 : vector<1x1x256xf32> to vector<1x256xf32>
    %84 = vector.broadcast %83 : vector<1x256xf32> to vector<8x256xf32>
    %85 = arith.mulf %81, %84 : vector<8x256xf32>
    %c7_51 = arith.constant 7 : index
    %c0_52 = arith.constant 0 : index
    %c0_53 = arith.constant 0 : index
    %86 = vector.load %arg4[%c7_51, %c0_52, %c0_53] : memref<9x4x8xbf16, #tpu.memory_space<vmem>>, vector<1x4x8xbf16>
    %87 = vector.shape_cast %86 : vector<1x4x8xbf16> to vector<4x8xbf16>
    %88 = arith.truncf %85 : vector<8x256xf32> to vector<8x256xbf16>
    %cst_54 = arith.constant dense<0.000000e+00> : vector<4x256xf32>
    %89 = tpu.matmul %87, %88, %cst_54 {dimension_numbers = #tpu.dot_dimension_numbers<[1], [0], [0], [1], [0, 0, 1, 1], [], []>} : vector<4x8xbf16>, vector<8x256xbf16>, vector<4x256xf32> -> vector<4x256xf32>
    %90 = arith.addf %80, %89 : vector<4x256xf32>
    %c239_i32 = arith.constant 239 : i32
    %91 = tpu.dynamic_rotate %14 by %c239_i32 dim 1 : vector<8x256xf32>, i32 -> vector<8x256xf32>
    %c8 = arith.constant 8 : index
    %c0_55 = arith.constant 0 : index
    %c0_56 = arith.constant 0 : index
    %92 = vector.load %arg2[%c8, %c0_55, %c0_56] : memref<9x1x256xf32, #tpu.memory_space<vmem>>, vector<1x1x256xf32>
    %93 = vector.shape_cast %92 : vector<1x1x256xf32> to vector<1x256xf32>
    %94 = vector.broadcast %93 : vector<1x256xf32> to vector<8x256xf32>
    %95 = arith.mulf %91, %94 : vector<8x256xf32>
    %c8_57 = arith.constant 8 : index
    %c0_58 = arith.constant 0 : index
    %c0_59 = arith.constant 0 : index
    %96 = vector.load %arg4[%c8_57, %c0_58, %c0_59] : memref<9x4x8xbf16, #tpu.memory_space<vmem>>, vector<1x4x8xbf16>
    %97 = vector.shape_cast %96 : vector<1x4x8xbf16> to vector<4x8xbf16>
    %98 = arith.truncf %95 : vector<8x256xf32> to vector<8x256xbf16>
    %cst_60 = arith.constant dense<0.000000e+00> : vector<4x256xf32>
    %99 = tpu.matmul %97, %98, %cst_60 {dimension_numbers = #tpu.dot_dimension_numbers<[1], [0], [0], [1], [0, 0, 1, 1], [], []>} : vector<4x8xbf16>, vector<8x256xbf16>, vector<4x256xf32> -> vector<4x256xf32>
    %100 = arith.addf %90, %99 : vector<4x256xf32>
    %c0_61 = arith.constant 0 : index
    %c0_62 = arith.constant 0 : index
    %101 = vector.load %arg11[%c0_61, %c0_62] : memref<4x1xf32, #tpu.memory_space<vmem>>, vector<4x1xf32>
    %102 = vector.broadcast %101 : vector<4x1xf32> to vector<4x256xf32>
    %103 = arith.addf %100, %102 : vector<4x256xf32>
    %cst_63 = arith.constant 0.000000e+00 : f32
    %104 = vector.broadcast %cst_63 : f32 to vector<4x256xf32>
    %105 = arith.subf %104, %103 : vector<4x256xf32>
    %106 = math.exp %105 : vector<4x256xf32>
    %cst_64 = arith.constant 1.000000e+00 : f32
    %107 = vector.broadcast %cst_64 : f32 to vector<4x256xf32>
    %108 = arith.addf %107, %106 : vector<4x256xf32>
    %109 = tpu.reciprocal %108 : vector<4x256xf32> -> vector<4x256xf32>
    %110 = arith.mulf %103, %109 : vector<4x256xf32>
    %cst_65 = arith.constant 0.000000e+00 : f32
    %111 = vector.broadcast %cst_65 : f32 to vector<4x256xf32>
    %c17_i32_66 = arith.constant 17 : i32
    %112 = tpu.dynamic_rotate %110 by %c17_i32_66 dim 1 : vector<4x256xf32>, i32 -> vector<4x256xf32>
    %c0_67 = arith.constant 0 : index
    %c0_68 = arith.constant 0 : index
    %c0_69 = arith.constant 0 : index
    %113 = vector.load %arg2[%c0_67, %c0_68, %c0_69] : memref<9x1x256xf32, #tpu.memory_space<vmem>>, vector<1x1x256xf32>
    %114 = vector.shape_cast %113 : vector<1x1x256xf32> to vector<1x256xf32>
    %115 = vector.broadcast %114 : vector<1x256xf32> to vector<4x256xf32>
    %116 = arith.mulf %112, %115 : vector<4x256xf32>
    %c0_70 = arith.constant 0 : index
    %c0_71 = arith.constant 0 : index
    %c0_72 = arith.constant 0 : index
    %117 = vector.load %arg5[%c0_70, %c0_71, %c0_72] : memref<9x4x4xbf16, #tpu.memory_space<vmem>>, vector<1x4x4xbf16>
    %118 = vector.shape_cast %117 : vector<1x4x4xbf16> to vector<4x4xbf16>
    %119 = arith.truncf %116 : vector<4x256xf32> to vector<4x256xbf16>
    %cst_73 = arith.constant dense<0.000000e+00> : vector<4x256xf32>
    %120 = tpu.matmul %118, %119, %cst_73 {dimension_numbers = #tpu.dot_dimension_numbers<[1], [0], [0], [1], [0, 0, 1, 1], [], []>} : vector<4x4xbf16>, vector<4x256xbf16>, vector<4x256xf32> -> vector<4x256xf32>
    %121 = arith.addf %111, %120 : vector<4x256xf32>
    %c16_i32_74 = arith.constant 16 : i32
    %122 = tpu.dynamic_rotate %110 by %c16_i32_74 dim 1 : vector<4x256xf32>, i32 -> vector<4x256xf32>
    %c1_75 = arith.constant 1 : index
    %c0_76 = arith.constant 0 : index
    %c0_77 = arith.constant 0 : index
    %123 = vector.load %arg2[%c1_75, %c0_76, %c0_77] : memref<9x1x256xf32, #tpu.memory_space<vmem>>, vector<1x1x256xf32>
    %124 = vector.shape_cast %123 : vector<1x1x256xf32> to vector<1x256xf32>
    %125 = vector.broadcast %124 : vector<1x256xf32> to vector<4x256xf32>
    %126 = arith.mulf %122, %125 : vector<4x256xf32>
    %c1_78 = arith.constant 1 : index
    %c0_79 = arith.constant 0 : index
    %c0_80 = arith.constant 0 : index
    %127 = vector.load %arg5[%c1_78, %c0_79, %c0_80] : memref<9x4x4xbf16, #tpu.memory_space<vmem>>, vector<1x4x4xbf16>
    %128 = vector.shape_cast %127 : vector<1x4x4xbf16> to vector<4x4xbf16>
    %129 = arith.truncf %126 : vector<4x256xf32> to vector<4x256xbf16>
    %cst_81 = arith.constant dense<0.000000e+00> : vector<4x256xf32>
    %130 = tpu.matmul %128, %129, %cst_81 {dimension_numbers = #tpu.dot_dimension_numbers<[1], [0], [0], [1], [0, 0, 1, 1], [], []>} : vector<4x4xbf16>, vector<4x256xbf16>, vector<4x256xf32> -> vector<4x256xf32>
    %131 = arith.addf %121, %130 : vector<4x256xf32>
    %c15_i32_82 = arith.constant 15 : i32
    %132 = tpu.dynamic_rotate %110 by %c15_i32_82 dim 1 : vector<4x256xf32>, i32 -> vector<4x256xf32>
    %c2_83 = arith.constant 2 : index
    %c0_84 = arith.constant 0 : index
    %c0_85 = arith.constant 0 : index
    %133 = vector.load %arg2[%c2_83, %c0_84, %c0_85] : memref<9x1x256xf32, #tpu.memory_space<vmem>>, vector<1x1x256xf32>
    %134 = vector.shape_cast %133 : vector<1x1x256xf32> to vector<1x256xf32>
    %135 = vector.broadcast %134 : vector<1x256xf32> to vector<4x256xf32>
    %136 = arith.mulf %132, %135 : vector<4x256xf32>
    %c2_86 = arith.constant 2 : index
    %c0_87 = arith.constant 0 : index
    %c0_88 = arith.constant 0 : index
    %137 = vector.load %arg5[%c2_86, %c0_87, %c0_88] : memref<9x4x4xbf16, #tpu.memory_space<vmem>>, vector<1x4x4xbf16>
    %138 = vector.shape_cast %137 : vector<1x4x4xbf16> to vector<4x4xbf16>
    %139 = arith.truncf %136 : vector<4x256xf32> to vector<4x256xbf16>
    %cst_89 = arith.constant dense<0.000000e+00> : vector<4x256xf32>
    %140 = tpu.matmul %138, %139, %cst_89 {dimension_numbers = #tpu.dot_dimension_numbers<[1], [0], [0], [1], [0, 0, 1, 1], [], []>} : vector<4x4xbf16>, vector<4x256xbf16>, vector<4x256xf32> -> vector<4x256xf32>
    %141 = arith.addf %131, %140 : vector<4x256xf32>
    %c1_i32_90 = arith.constant 1 : i32
    %142 = tpu.dynamic_rotate %110 by %c1_i32_90 dim 1 : vector<4x256xf32>, i32 -> vector<4x256xf32>
    %c3_91 = arith.constant 3 : index
    %c0_92 = arith.constant 0 : index
    %c0_93 = arith.constant 0 : index
    %143 = vector.load %arg2[%c3_91, %c0_92, %c0_93] : memref<9x1x256xf32, #tpu.memory_space<vmem>>, vector<1x1x256xf32>
    %144 = vector.shape_cast %143 : vector<1x1x256xf32> to vector<1x256xf32>
    %145 = vector.broadcast %144 : vector<1x256xf32> to vector<4x256xf32>
    %146 = arith.mulf %142, %145 : vector<4x256xf32>
    %c3_94 = arith.constant 3 : index
    %c0_95 = arith.constant 0 : index
    %c0_96 = arith.constant 0 : index
    %147 = vector.load %arg5[%c3_94, %c0_95, %c0_96] : memref<9x4x4xbf16, #tpu.memory_space<vmem>>, vector<1x4x4xbf16>
    %148 = vector.shape_cast %147 : vector<1x4x4xbf16> to vector<4x4xbf16>
    %149 = arith.truncf %146 : vector<4x256xf32> to vector<4x256xbf16>
    %cst_97 = arith.constant dense<0.000000e+00> : vector<4x256xf32>
    %150 = tpu.matmul %148, %149, %cst_97 {dimension_numbers = #tpu.dot_dimension_numbers<[1], [0], [0], [1], [0, 0, 1, 1], [], []>} : vector<4x4xbf16>, vector<4x256xbf16>, vector<4x256xf32> -> vector<4x256xf32>
    %151 = arith.addf %141, %150 : vector<4x256xf32>
    %c4_98 = arith.constant 4 : index
    %c0_99 = arith.constant 0 : index
    %c0_100 = arith.constant 0 : index
    %152 = vector.load %arg5[%c4_98, %c0_99, %c0_100] : memref<9x4x4xbf16, #tpu.memory_space<vmem>>, vector<1x4x4xbf16>
    %153 = vector.shape_cast %152 : vector<1x4x4xbf16> to vector<4x4xbf16>
    %154 = arith.truncf %110 : vector<4x256xf32> to vector<4x256xbf16>
    %cst_101 = arith.constant dense<0.000000e+00> : vector<4x256xf32>
    %155 = tpu.matmul %153, %154, %cst_101 {dimension_numbers = #tpu.dot_dimension_numbers<[1], [0], [0], [1], [0, 0, 1, 1], [], []>} : vector<4x4xbf16>, vector<4x256xbf16>, vector<4x256xf32> -> vector<4x256xf32>
    %156 = arith.addf %151, %155 : vector<4x256xf32>
    %c255_i32_102 = arith.constant 255 : i32
    %157 = tpu.dynamic_rotate %110 by %c255_i32_102 dim 1 : vector<4x256xf32>, i32 -> vector<4x256xf32>
    %c5_103 = arith.constant 5 : index
    %c0_104 = arith.constant 0 : index
    %c0_105 = arith.constant 0 : index
    %158 = vector.load %arg2[%c5_103, %c0_104, %c0_105] : memref<9x1x256xf32, #tpu.memory_space<vmem>>, vector<1x1x256xf32>
    %159 = vector.shape_cast %158 : vector<1x1x256xf32> to vector<1x256xf32>
    %160 = vector.broadcast %159 : vector<1x256xf32> to vector<4x256xf32>
    %161 = arith.mulf %157, %160 : vector<4x256xf32>
    %c5_106 = arith.constant 5 : index
    %c0_107 = arith.constant 0 : index
    %c0_108 = arith.constant 0 : index
    %162 = vector.load %arg5[%c5_106, %c0_107, %c0_108] : memref<9x4x4xbf16, #tpu.memory_space<vmem>>, vector<1x4x4xbf16>
    %163 = vector.shape_cast %162 : vector<1x4x4xbf16> to vector<4x4xbf16>
    %164 = arith.truncf %161 : vector<4x256xf32> to vector<4x256xbf16>
    %cst_109 = arith.constant dense<0.000000e+00> : vector<4x256xf32>
    %165 = tpu.matmul %163, %164, %cst_109 {dimension_numbers = #tpu.dot_dimension_numbers<[1], [0], [0], [1], [0, 0, 1, 1], [], []>} : vector<4x4xbf16>, vector<4x256xbf16>, vector<4x256xf32> -> vector<4x256xf32>
    %166 = arith.addf %156, %165 : vector<4x256xf32>
    %c241_i32_110 = arith.constant 241 : i32
    %167 = tpu.dynamic_rotate %110 by %c241_i32_110 dim 1 : vector<4x256xf32>, i32 -> vector<4x256xf32>
    %c6_111 = arith.constant 6 : index
    %c0_112 = arith.constant 0 : index
    %c0_113 = arith.constant 0 : index
    %168 = vector.load %arg2[%c6_111, %c0_112, %c0_113] : memref<9x1x256xf32, #tpu.memory_space<vmem>>, vector<1x1x256xf32>
    %169 = vector.shape_cast %168 : vector<1x1x256xf32> to vector<1x256xf32>
    %170 = vector.broadcast %169 : vector<1x256xf32> to vector<4x256xf32>
    %171 = arith.mulf %167, %170 : vector<4x256xf32>
    %c6_114 = arith.constant 6 : index
    %c0_115 = arith.constant 0 : index
    %c0_116 = arith.constant 0 : index
    %172 = vector.load %arg5[%c6_114, %c0_115, %c0_116] : memref<9x4x4xbf16, #tpu.memory_space<vmem>>, vector<1x4x4xbf16>
    %173 = vector.shape_cast %172 : vector<1x4x4xbf16> to vector<4x4xbf16>
    %174 = arith.truncf %171 : vector<4x256xf32> to vector<4x256xbf16>
    %cst_117 = arith.constant dense<0.000000e+00> : vector<4x256xf32>
    %175 = tpu.matmul %173, %174, %cst_117 {dimension_numbers = #tpu.dot_dimension_numbers<[1], [0], [0], [1], [0, 0, 1, 1], [], []>} : vector<4x4xbf16>, vector<4x256xbf16>, vector<4x256xf32> -> vector<4x256xf32>
    %176 = arith.addf %166, %175 : vector<4x256xf32>
    %c240_i32_118 = arith.constant 240 : i32
    %177 = tpu.dynamic_rotate %110 by %c240_i32_118 dim 1 : vector<4x256xf32>, i32 -> vector<4x256xf32>
    %c7_119 = arith.constant 7 : index
    %c0_120 = arith.constant 0 : index
    %c0_121 = arith.constant 0 : index
    %178 = vector.load %arg2[%c7_119, %c0_120, %c0_121] : memref<9x1x256xf32, #tpu.memory_space<vmem>>, vector<1x1x256xf32>
    %179 = vector.shape_cast %178 : vector<1x1x256xf32> to vector<1x256xf32>
    %180 = vector.broadcast %179 : vector<1x256xf32> to vector<4x256xf32>
    %181 = arith.mulf %177, %180 : vector<4x256xf32>
    %c7_122 = arith.constant 7 : index
    %c0_123 = arith.constant 0 : index
    %c0_124 = arith.constant 0 : index
    %182 = vector.load %arg5[%c7_122, %c0_123, %c0_124] : memref<9x4x4xbf16, #tpu.memory_space<vmem>>, vector<1x4x4xbf16>
    %183 = vector.shape_cast %182 : vector<1x4x4xbf16> to vector<4x4xbf16>
    %184 = arith.truncf %181 : vector<4x256xf32> to vector<4x256xbf16>
    %cst_125 = arith.constant dense<0.000000e+00> : vector<4x256xf32>
    %185 = tpu.matmul %183, %184, %cst_125 {dimension_numbers = #tpu.dot_dimension_numbers<[1], [0], [0], [1], [0, 0, 1, 1], [], []>} : vector<4x4xbf16>, vector<4x256xbf16>, vector<4x256xf32> -> vector<4x256xf32>
    %186 = arith.addf %176, %185 : vector<4x256xf32>
    %c239_i32_126 = arith.constant 239 : i32
    %187 = tpu.dynamic_rotate %110 by %c239_i32_126 dim 1 : vector<4x256xf32>, i32 -> vector<4x256xf32>
    %c8_127 = arith.constant 8 : index
    %c0_128 = arith.constant 0 : index
    %c0_129 = arith.constant 0 : index
    %188 = vector.load %arg2[%c8_127, %c0_128, %c0_129] : memref<9x1x256xf32, #tpu.memory_space<vmem>>, vector<1x1x256xf32>
    %189 = vector.shape_cast %188 : vector<1x1x256xf32> to vector<1x256xf32>
    %190 = vector.broadcast %189 : vector<1x256xf32> to vector<4x256xf32>
    %191 = arith.mulf %187, %190 : vector<4x256xf32>
    %c8_130 = arith.constant 8 : index
    %c0_131 = arith.constant 0 : index
    %c0_132 = arith.constant 0 : index
    %192 = vector.load %arg5[%c8_130, %c0_131, %c0_132] : memref<9x4x4xbf16, #tpu.memory_space<vmem>>, vector<1x4x4xbf16>
    %193 = vector.shape_cast %192 : vector<1x4x4xbf16> to vector<4x4xbf16>
    %194 = arith.truncf %191 : vector<4x256xf32> to vector<4x256xbf16>
    %cst_133 = arith.constant dense<0.000000e+00> : vector<4x256xf32>
    %195 = tpu.matmul %193, %194, %cst_133 {dimension_numbers = #tpu.dot_dimension_numbers<[1], [0], [0], [1], [0, 0, 1, 1], [], []>} : vector<4x4xbf16>, vector<4x256xbf16>, vector<4x256xf32> -> vector<4x256xf32>
    %196 = arith.addf %186, %195 : vector<4x256xf32>
    %c0_134 = arith.constant 0 : index
    %c0_135 = arith.constant 0 : index
    %197 = vector.load %arg12[%c0_134, %c0_135] : memref<4x1xf32, #tpu.memory_space<vmem>>, vector<4x1xf32>
    %198 = vector.broadcast %197 : vector<4x1xf32> to vector<4x256xf32>
    %199 = arith.addf %196, %198 : vector<4x256xf32>
    %cst_136 = arith.constant 0.000000e+00 : f32
    %200 = vector.broadcast %cst_136 : f32 to vector<4x256xf32>
    %201 = arith.subf %200, %199 : vector<4x256xf32>
    %202 = math.exp %201 : vector<4x256xf32>
    %cst_137 = arith.constant 1.000000e+00 : f32
    %203 = vector.broadcast %cst_137 : f32 to vector<4x256xf32>
    %204 = arith.addf %203, %202 : vector<4x256xf32>
    %205 = tpu.reciprocal %204 : vector<4x256xf32> -> vector<4x256xf32>
    %206 = arith.mulf %199, %205 : vector<4x256xf32>
    %cst_138 = arith.constant 0.000000e+00 : f32
    %207 = vector.broadcast %cst_138 : f32 to vector<4x256xf32>
    %c17_i32_139 = arith.constant 17 : i32
    %208 = tpu.dynamic_rotate %206 by %c17_i32_139 dim 1 : vector<4x256xf32>, i32 -> vector<4x256xf32>
    %c0_140 = arith.constant 0 : index
    %c0_141 = arith.constant 0 : index
    %c0_142 = arith.constant 0 : index
    %209 = vector.load %arg2[%c0_140, %c0_141, %c0_142] : memref<9x1x256xf32, #tpu.memory_space<vmem>>, vector<1x1x256xf32>
    %210 = vector.shape_cast %209 : vector<1x1x256xf32> to vector<1x256xf32>
    %211 = vector.broadcast %210 : vector<1x256xf32> to vector<4x256xf32>
    %212 = arith.mulf %208, %211 : vector<4x256xf32>
    %c0_143 = arith.constant 0 : index
    %c0_144 = arith.constant 0 : index
    %c0_145 = arith.constant 0 : index
    %213 = vector.load %arg6[%c0_143, %c0_144, %c0_145] : memref<9x4x4xbf16, #tpu.memory_space<vmem>>, vector<1x4x4xbf16>
    %214 = vector.shape_cast %213 : vector<1x4x4xbf16> to vector<4x4xbf16>
    %215 = arith.truncf %212 : vector<4x256xf32> to vector<4x256xbf16>
    %cst_146 = arith.constant dense<0.000000e+00> : vector<4x256xf32>
    %216 = tpu.matmul %214, %215, %cst_146 {dimension_numbers = #tpu.dot_dimension_numbers<[1], [0], [0], [1], [0, 0, 1, 1], [], []>} : vector<4x4xbf16>, vector<4x256xbf16>, vector<4x256xf32> -> vector<4x256xf32>
    %217 = arith.addf %207, %216 : vector<4x256xf32>
    %c16_i32_147 = arith.constant 16 : i32
    %218 = tpu.dynamic_rotate %206 by %c16_i32_147 dim 1 : vector<4x256xf32>, i32 -> vector<4x256xf32>
    %c1_148 = arith.constant 1 : index
    %c0_149 = arith.constant 0 : index
    %c0_150 = arith.constant 0 : index
    %219 = vector.load %arg2[%c1_148, %c0_149, %c0_150] : memref<9x1x256xf32, #tpu.memory_space<vmem>>, vector<1x1x256xf32>
    %220 = vector.shape_cast %219 : vector<1x1x256xf32> to vector<1x256xf32>
    %221 = vector.broadcast %220 : vector<1x256xf32> to vector<4x256xf32>
    %222 = arith.mulf %218, %221 : vector<4x256xf32>
    %c1_151 = arith.constant 1 : index
    %c0_152 = arith.constant 0 : index
    %c0_153 = arith.constant 0 : index
    %223 = vector.load %arg6[%c1_151, %c0_152, %c0_153] : memref<9x4x4xbf16, #tpu.memory_space<vmem>>, vector<1x4x4xbf16>
    %224 = vector.shape_cast %223 : vector<1x4x4xbf16> to vector<4x4xbf16>
    %225 = arith.truncf %222 : vector<4x256xf32> to vector<4x256xbf16>
    %cst_154 = arith.constant dense<0.000000e+00> : vector<4x256xf32>
    %226 = tpu.matmul %224, %225, %cst_154 {dimension_numbers = #tpu.dot_dimension_numbers<[1], [0], [0], [1], [0, 0, 1, 1], [], []>} : vector<4x4xbf16>, vector<4x256xbf16>, vector<4x256xf32> -> vector<4x256xf32>
    %227 = arith.addf %217, %226 : vector<4x256xf32>
    %c15_i32_155 = arith.constant 15 : i32
    %228 = tpu.dynamic_rotate %206 by %c15_i32_155 dim 1 : vector<4x256xf32>, i32 -> vector<4x256xf32>
    %c2_156 = arith.constant 2 : index
    %c0_157 = arith.constant 0 : index
    %c0_158 = arith.constant 0 : index
    %229 = vector.load %arg2[%c2_156, %c0_157, %c0_158] : memref<9x1x256xf32, #tpu.memory_space<vmem>>, vector<1x1x256xf32>
    %230 = vector.shape_cast %229 : vector<1x1x256xf32> to vector<1x256xf32>
    %231 = vector.broadcast %230 : vector<1x256xf32> to vector<4x256xf32>
    %232 = arith.mulf %228, %231 : vector<4x256xf32>
    %c2_159 = arith.constant 2 : index
    %c0_160 = arith.constant 0 : index
    %c0_161 = arith.constant 0 : index
    %233 = vector.load %arg6[%c2_159, %c0_160, %c0_161] : memref<9x4x4xbf16, #tpu.memory_space<vmem>>, vector<1x4x4xbf16>
    %234 = vector.shape_cast %233 : vector<1x4x4xbf16> to vector<4x4xbf16>
    %235 = arith.truncf %232 : vector<4x256xf32> to vector<4x256xbf16>
    %cst_162 = arith.constant dense<0.000000e+00> : vector<4x256xf32>
    %236 = tpu.matmul %234, %235, %cst_162 {dimension_numbers = #tpu.dot_dimension_numbers<[1], [0], [0], [1], [0, 0, 1, 1], [], []>} : vector<4x4xbf16>, vector<4x256xbf16>, vector<4x256xf32> -> vector<4x256xf32>
    %237 = arith.addf %227, %236 : vector<4x256xf32>
    %c1_i32_163 = arith.constant 1 : i32
    %238 = tpu.dynamic_rotate %206 by %c1_i32_163 dim 1 : vector<4x256xf32>, i32 -> vector<4x256xf32>
    %c3_164 = arith.constant 3 : index
    %c0_165 = arith.constant 0 : index
    %c0_166 = arith.constant 0 : index
    %239 = vector.load %arg2[%c3_164, %c0_165, %c0_166] : memref<9x1x256xf32, #tpu.memory_space<vmem>>, vector<1x1x256xf32>
    %240 = vector.shape_cast %239 : vector<1x1x256xf32> to vector<1x256xf32>
    %241 = vector.broadcast %240 : vector<1x256xf32> to vector<4x256xf32>
    %242 = arith.mulf %238, %241 : vector<4x256xf32>
    %c3_167 = arith.constant 3 : index
    %c0_168 = arith.constant 0 : index
    %c0_169 = arith.constant 0 : index
    %243 = vector.load %arg6[%c3_167, %c0_168, %c0_169] : memref<9x4x4xbf16, #tpu.memory_space<vmem>>, vector<1x4x4xbf16>
    %244 = vector.shape_cast %243 : vector<1x4x4xbf16> to vector<4x4xbf16>
    %245 = arith.truncf %242 : vector<4x256xf32> to vector<4x256xbf16>
    %cst_170 = arith.constant dense<0.000000e+00> : vector<4x256xf32>
    %246 = tpu.matmul %244, %245, %cst_170 {dimension_numbers = #tpu.dot_dimension_numbers<[1], [0], [0], [1], [0, 0, 1, 1], [], []>} : vector<4x4xbf16>, vector<4x256xbf16>, vector<4x256xf32> -> vector<4x256xf32>
    %247 = arith.addf %237, %246 : vector<4x256xf32>
    %c4_171 = arith.constant 4 : index
    %c0_172 = arith.constant 0 : index
    %c0_173 = arith.constant 0 : index
    %248 = vector.load %arg6[%c4_171, %c0_172, %c0_173] : memref<9x4x4xbf16, #tpu.memory_space<vmem>>, vector<1x4x4xbf16>
    %249 = vector.shape_cast %248 : vector<1x4x4xbf16> to vector<4x4xbf16>
    %250 = arith.truncf %206 : vector<4x256xf32> to vector<4x256xbf16>
    %cst_174 = arith.constant dense<0.000000e+00> : vector<4x256xf32>
    %251 = tpu.matmul %249, %250, %cst_174 {dimension_numbers = #tpu.dot_dimension_numbers<[1], [0], [0], [1], [0, 0, 1, 1], [], []>} : vector<4x4xbf16>, vector<4x256xbf16>, vector<4x256xf32> -> vector<4x256xf32>
    %252 = arith.addf %247, %251 : vector<4x256xf32>
    %c255_i32_175 = arith.constant 255 : i32
    %253 = tpu.dynamic_rotate %206 by %c255_i32_175 dim 1 : vector<4x256xf32>, i32 -> vector<4x256xf32>
    %c5_176 = arith.constant 5 : index
    %c0_177 = arith.constant 0 : index
    %c0_178 = arith.constant 0 : index
    %254 = vector.load %arg2[%c5_176, %c0_177, %c0_178] : memref<9x1x256xf32, #tpu.memory_space<vmem>>, vector<1x1x256xf32>
    %255 = vector.shape_cast %254 : vector<1x1x256xf32> to vector<1x256xf32>
    %256 = vector.broadcast %255 : vector<1x256xf32> to vector<4x256xf32>
    %257 = arith.mulf %253, %256 : vector<4x256xf32>
    %c5_179 = arith.constant 5 : index
    %c0_180 = arith.constant 0 : index
    %c0_181 = arith.constant 0 : index
    %258 = vector.load %arg6[%c5_179, %c0_180, %c0_181] : memref<9x4x4xbf16, #tpu.memory_space<vmem>>, vector<1x4x4xbf16>
    %259 = vector.shape_cast %258 : vector<1x4x4xbf16> to vector<4x4xbf16>
    %260 = arith.truncf %257 : vector<4x256xf32> to vector<4x256xbf16>
    %cst_182 = arith.constant dense<0.000000e+00> : vector<4x256xf32>
    %261 = tpu.matmul %259, %260, %cst_182 {dimension_numbers = #tpu.dot_dimension_numbers<[1], [0], [0], [1], [0, 0, 1, 1], [], []>} : vector<4x4xbf16>, vector<4x256xbf16>, vector<4x256xf32> -> vector<4x256xf32>
    %262 = arith.addf %252, %261 : vector<4x256xf32>
    %c241_i32_183 = arith.constant 241 : i32
    %263 = tpu.dynamic_rotate %206 by %c241_i32_183 dim 1 : vector<4x256xf32>, i32 -> vector<4x256xf32>
    %c6_184 = arith.constant 6 : index
    %c0_185 = arith.constant 0 : index
    %c0_186 = arith.constant 0 : index
    %264 = vector.load %arg2[%c6_184, %c0_185, %c0_186] : memref<9x1x256xf32, #tpu.memory_space<vmem>>, vector<1x1x256xf32>
    %265 = vector.shape_cast %264 : vector<1x1x256xf32> to vector<1x256xf32>
    %266 = vector.broadcast %265 : vector<1x256xf32> to vector<4x256xf32>
    %267 = arith.mulf %263, %266 : vector<4x256xf32>
    %c6_187 = arith.constant 6 : index
    %c0_188 = arith.constant 0 : index
    %c0_189 = arith.constant 0 : index
    %268 = vector.load %arg6[%c6_187, %c0_188, %c0_189] : memref<9x4x4xbf16, #tpu.memory_space<vmem>>, vector<1x4x4xbf16>
    %269 = vector.shape_cast %268 : vector<1x4x4xbf16> to vector<4x4xbf16>
    %270 = arith.truncf %267 : vector<4x256xf32> to vector<4x256xbf16>
    %cst_190 = arith.constant dense<0.000000e+00> : vector<4x256xf32>
    %271 = tpu.matmul %269, %270, %cst_190 {dimension_numbers = #tpu.dot_dimension_numbers<[1], [0], [0], [1], [0, 0, 1, 1], [], []>} : vector<4x4xbf16>, vector<4x256xbf16>, vector<4x256xf32> -> vector<4x256xf32>
    %272 = arith.addf %262, %271 : vector<4x256xf32>
    %c240_i32_191 = arith.constant 240 : i32
    %273 = tpu.dynamic_rotate %206 by %c240_i32_191 dim 1 : vector<4x256xf32>, i32 -> vector<4x256xf32>
    %c7_192 = arith.constant 7 : index
    %c0_193 = arith.constant 0 : index
    %c0_194 = arith.constant 0 : index
    %274 = vector.load %arg2[%c7_192, %c0_193, %c0_194] : memref<9x1x256xf32, #tpu.memory_space<vmem>>, vector<1x1x256xf32>
    %275 = vector.shape_cast %274 : vector<1x1x256xf32> to vector<1x256xf32>
    %276 = vector.broadcast %275 : vector<1x256xf32> to vector<4x256xf32>
    %277 = arith.mulf %273, %276 : vector<4x256xf32>
    %c7_195 = arith.constant 7 : index
    %c0_196 = arith.constant 0 : index
    %c0_197 = arith.constant 0 : index
    %278 = vector.load %arg6[%c7_195, %c0_196, %c0_197] : memref<9x4x4xbf16, #tpu.memory_space<vmem>>, vector<1x4x4xbf16>
    %279 = vector.shape_cast %278 : vector<1x4x4xbf16> to vector<4x4xbf16>
    %280 = arith.truncf %277 : vector<4x256xf32> to vector<4x256xbf16>
    %cst_198 = arith.constant dense<0.000000e+00> : vector<4x256xf32>
    %281 = tpu.matmul %279, %280, %cst_198 {dimension_numbers = #tpu.dot_dimension_numbers<[1], [0], [0], [1], [0, 0, 1, 1], [], []>} : vector<4x4xbf16>, vector<4x256xbf16>, vector<4x256xf32> -> vector<4x256xf32>
    %282 = arith.addf %272, %281 : vector<4x256xf32>
    %c239_i32_199 = arith.constant 239 : i32
    %283 = tpu.dynamic_rotate %206 by %c239_i32_199 dim 1 : vector<4x256xf32>, i32 -> vector<4x256xf32>
    %c8_200 = arith.constant 8 : index
    %c0_201 = arith.constant 0 : index
    %c0_202 = arith.constant 0 : index
    %284 = vector.load %arg2[%c8_200, %c0_201, %c0_202] : memref<9x1x256xf32, #tpu.memory_space<vmem>>, vector<1x1x256xf32>
    %285 = vector.shape_cast %284 : vector<1x1x256xf32> to vector<1x256xf32>
    %286 = vector.broadcast %285 : vector<1x256xf32> to vector<4x256xf32>
    %287 = arith.mulf %283, %286 : vector<4x256xf32>
    %c8_203 = arith.constant 8 : index
    %c0_204 = arith.constant 0 : index
    %c0_205 = arith.constant 0 : index
    %288 = vector.load %arg6[%c8_203, %c0_204, %c0_205] : memref<9x4x4xbf16, #tpu.memory_space<vmem>>, vector<1x4x4xbf16>
    %289 = vector.shape_cast %288 : vector<1x4x4xbf16> to vector<4x4xbf16>
    %290 = arith.truncf %287 : vector<4x256xf32> to vector<4x256xbf16>
    %cst_206 = arith.constant dense<0.000000e+00> : vector<4x256xf32>
    %291 = tpu.matmul %289, %290, %cst_206 {dimension_numbers = #tpu.dot_dimension_numbers<[1], [0], [0], [1], [0, 0, 1, 1], [], []>} : vector<4x4xbf16>, vector<4x256xbf16>, vector<4x256xf32> -> vector<4x256xf32>
    %292 = arith.addf %282, %291 : vector<4x256xf32>
    %c0_207 = arith.constant 0 : index
    %c0_208 = arith.constant 0 : index
    %293 = vector.load %arg13[%c0_207, %c0_208] : memref<4x1xf32, #tpu.memory_space<vmem>>, vector<4x1xf32>
    %294 = vector.broadcast %293 : vector<4x1xf32> to vector<4x256xf32>
    %295 = arith.addf %292, %294 : vector<4x256xf32>
    %cst_209 = arith.constant 0.000000e+00 : f32
    %296 = vector.broadcast %cst_209 : f32 to vector<4x256xf32>
    %297 = arith.subf %296, %295 : vector<4x256xf32>
    %298 = math.exp %297 : vector<4x256xf32>
    %cst_210 = arith.constant 1.000000e+00 : f32
    %299 = vector.broadcast %cst_210 : f32 to vector<4x256xf32>
    %300 = arith.addf %299, %298 : vector<4x256xf32>
    %301 = tpu.reciprocal %300 : vector<4x256xf32> -> vector<4x256xf32>
    %302 = arith.mulf %295, %301 : vector<4x256xf32>
    %cst_211 = arith.constant 0.000000e+00 : f32
    %303 = vector.broadcast %cst_211 : f32 to vector<4x256xf32>
    %c17_i32_212 = arith.constant 17 : i32
    %304 = tpu.dynamic_rotate %302 by %c17_i32_212 dim 1 : vector<4x256xf32>, i32 -> vector<4x256xf32>
    %c0_213 = arith.constant 0 : index
    %c0_214 = arith.constant 0 : index
    %c0_215 = arith.constant 0 : index
    %305 = vector.load %arg2[%c0_213, %c0_214, %c0_215] : memref<9x1x256xf32, #tpu.memory_space<vmem>>, vector<1x1x256xf32>
    %306 = vector.shape_cast %305 : vector<1x1x256xf32> to vector<1x256xf32>
    %307 = vector.broadcast %306 : vector<1x256xf32> to vector<4x256xf32>
    %308 = arith.mulf %304, %307 : vector<4x256xf32>
    %c0_216 = arith.constant 0 : index
    %c0_217 = arith.constant 0 : index
    %c0_218 = arith.constant 0 : index
    %309 = vector.load %arg7[%c0_216, %c0_217, %c0_218] : memref<9x4x4xbf16, #tpu.memory_space<vmem>>, vector<1x4x4xbf16>
    %310 = vector.shape_cast %309 : vector<1x4x4xbf16> to vector<4x4xbf16>
    %311 = arith.truncf %308 : vector<4x256xf32> to vector<4x256xbf16>
    %cst_219 = arith.constant dense<0.000000e+00> : vector<4x256xf32>
    %312 = tpu.matmul %310, %311, %cst_219 {dimension_numbers = #tpu.dot_dimension_numbers<[1], [0], [0], [1], [0, 0, 1, 1], [], []>} : vector<4x4xbf16>, vector<4x256xbf16>, vector<4x256xf32> -> vector<4x256xf32>
    %313 = arith.addf %303, %312 : vector<4x256xf32>
    %c16_i32_220 = arith.constant 16 : i32
    %314 = tpu.dynamic_rotate %302 by %c16_i32_220 dim 1 : vector<4x256xf32>, i32 -> vector<4x256xf32>
    %c1_221 = arith.constant 1 : index
    %c0_222 = arith.constant 0 : index
    %c0_223 = arith.constant 0 : index
    %315 = vector.load %arg2[%c1_221, %c0_222, %c0_223] : memref<9x1x256xf32, #tpu.memory_space<vmem>>, vector<1x1x256xf32>
    %316 = vector.shape_cast %315 : vector<1x1x256xf32> to vector<1x256xf32>
    %317 = vector.broadcast %316 : vector<1x256xf32> to vector<4x256xf32>
    %318 = arith.mulf %314, %317 : vector<4x256xf32>
    %c1_224 = arith.constant 1 : index
    %c0_225 = arith.constant 0 : index
    %c0_226 = arith.constant 0 : index
    %319 = vector.load %arg7[%c1_224, %c0_225, %c0_226] : memref<9x4x4xbf16, #tpu.memory_space<vmem>>, vector<1x4x4xbf16>
    %320 = vector.shape_cast %319 : vector<1x4x4xbf16> to vector<4x4xbf16>
    %321 = arith.truncf %318 : vector<4x256xf32> to vector<4x256xbf16>
    %cst_227 = arith.constant dense<0.000000e+00> : vector<4x256xf32>
    %322 = tpu.matmul %320, %321, %cst_227 {dimension_numbers = #tpu.dot_dimension_numbers<[1], [0], [0], [1], [0, 0, 1, 1], [], []>} : vector<4x4xbf16>, vector<4x256xbf16>, vector<4x256xf32> -> vector<4x256xf32>
    %323 = arith.addf %313, %322 : vector<4x256xf32>
    %c15_i32_228 = arith.constant 15 : i32
    %324 = tpu.dynamic_rotate %302 by %c15_i32_228 dim 1 : vector<4x256xf32>, i32 -> vector<4x256xf32>
    %c2_229 = arith.constant 2 : index
    %c0_230 = arith.constant 0 : index
    %c0_231 = arith.constant 0 : index
    %325 = vector.load %arg2[%c2_229, %c0_230, %c0_231] : memref<9x1x256xf32, #tpu.memory_space<vmem>>, vector<1x1x256xf32>
    %326 = vector.shape_cast %325 : vector<1x1x256xf32> to vector<1x256xf32>
    %327 = vector.broadcast %326 : vector<1x256xf32> to vector<4x256xf32>
    %328 = arith.mulf %324, %327 : vector<4x256xf32>
    %c2_232 = arith.constant 2 : index
    %c0_233 = arith.constant 0 : index
    %c0_234 = arith.constant 0 : index
    %329 = vector.load %arg7[%c2_232, %c0_233, %c0_234] : memref<9x4x4xbf16, #tpu.memory_space<vmem>>, vector<1x4x4xbf16>
    %330 = vector.shape_cast %329 : vector<1x4x4xbf16> to vector<4x4xbf16>
    %331 = arith.truncf %328 : vector<4x256xf32> to vector<4x256xbf16>
    %cst_235 = arith.constant dense<0.000000e+00> : vector<4x256xf32>
    %332 = tpu.matmul %330, %331, %cst_235 {dimension_numbers = #tpu.dot_dimension_numbers<[1], [0], [0], [1], [0, 0, 1, 1], [], []>} : vector<4x4xbf16>, vector<4x256xbf16>, vector<4x256xf32> -> vector<4x256xf32>
    %333 = arith.addf %323, %332 : vector<4x256xf32>
    %c1_i32_236 = arith.constant 1 : i32
    %334 = tpu.dynamic_rotate %302 by %c1_i32_236 dim 1 : vector<4x256xf32>, i32 -> vector<4x256xf32>
    %c3_237 = arith.constant 3 : index
    %c0_238 = arith.constant 0 : index
    %c0_239 = arith.constant 0 : index
    %335 = vector.load %arg2[%c3_237, %c0_238, %c0_239] : memref<9x1x256xf32, #tpu.memory_space<vmem>>, vector<1x1x256xf32>
    %336 = vector.shape_cast %335 : vector<1x1x256xf32> to vector<1x256xf32>
    %337 = vector.broadcast %336 : vector<1x256xf32> to vector<4x256xf32>
    %338 = arith.mulf %334, %337 : vector<4x256xf32>
    %c3_240 = arith.constant 3 : index
    %c0_241 = arith.constant 0 : index
    %c0_242 = arith.constant 0 : index
    %339 = vector.load %arg7[%c3_240, %c0_241, %c0_242] : memref<9x4x4xbf16, #tpu.memory_space<vmem>>, vector<1x4x4xbf16>
    %340 = vector.shape_cast %339 : vector<1x4x4xbf16> to vector<4x4xbf16>
    %341 = arith.truncf %338 : vector<4x256xf32> to vector<4x256xbf16>
    %cst_243 = arith.constant dense<0.000000e+00> : vector<4x256xf32>
    %342 = tpu.matmul %340, %341, %cst_243 {dimension_numbers = #tpu.dot_dimension_numbers<[1], [0], [0], [1], [0, 0, 1, 1], [], []>} : vector<4x4xbf16>, vector<4x256xbf16>, vector<4x256xf32> -> vector<4x256xf32>
    %343 = arith.addf %333, %342 : vector<4x256xf32>
    %c4_244 = arith.constant 4 : index
    %c0_245 = arith.constant 0 : index
    %c0_246 = arith.constant 0 : index
    %344 = vector.load %arg7[%c4_244, %c0_245, %c0_246] : memref<9x4x4xbf16, #tpu.memory_space<vmem>>, vector<1x4x4xbf16>
    %345 = vector.shape_cast %344 : vector<1x4x4xbf16> to vector<4x4xbf16>
    %346 = arith.truncf %302 : vector<4x256xf32> to vector<4x256xbf16>
    %cst_247 = arith.constant dense<0.000000e+00> : vector<4x256xf32>
    %347 = tpu.matmul %345, %346, %cst_247 {dimension_numbers = #tpu.dot_dimension_numbers<[1], [0], [0], [1], [0, 0, 1, 1], [], []>} : vector<4x4xbf16>, vector<4x256xbf16>, vector<4x256xf32> -> vector<4x256xf32>
    %348 = arith.addf %343, %347 : vector<4x256xf32>
    %c255_i32_248 = arith.constant 255 : i32
    %349 = tpu.dynamic_rotate %302 by %c255_i32_248 dim 1 : vector<4x256xf32>, i32 -> vector<4x256xf32>
    %c5_249 = arith.constant 5 : index
    %c0_250 = arith.constant 0 : index
    %c0_251 = arith.constant 0 : index
    %350 = vector.load %arg2[%c5_249, %c0_250, %c0_251] : memref<9x1x256xf32, #tpu.memory_space<vmem>>, vector<1x1x256xf32>
    %351 = vector.shape_cast %350 : vector<1x1x256xf32> to vector<1x256xf32>
    %352 = vector.broadcast %351 : vector<1x256xf32> to vector<4x256xf32>
    %353 = arith.mulf %349, %352 : vector<4x256xf32>
    %c5_252 = arith.constant 5 : index
    %c0_253 = arith.constant 0 : index
    %c0_254 = arith.constant 0 : index
    %354 = vector.load %arg7[%c5_252, %c0_253, %c0_254] : memref<9x4x4xbf16, #tpu.memory_space<vmem>>, vector<1x4x4xbf16>
    %355 = vector.shape_cast %354 : vector<1x4x4xbf16> to vector<4x4xbf16>
    %356 = arith.truncf %353 : vector<4x256xf32> to vector<4x256xbf16>
    %cst_255 = arith.constant dense<0.000000e+00> : vector<4x256xf32>
    %357 = tpu.matmul %355, %356, %cst_255 {dimension_numbers = #tpu.dot_dimension_numbers<[1], [0], [0], [1], [0, 0, 1, 1], [], []>} : vector<4x4xbf16>, vector<4x256xbf16>, vector<4x256xf32> -> vector<4x256xf32>
    %358 = arith.addf %348, %357 : vector<4x256xf32>
    %c241_i32_256 = arith.constant 241 : i32
    %359 = tpu.dynamic_rotate %302 by %c241_i32_256 dim 1 : vector<4x256xf32>, i32 -> vector<4x256xf32>
    %c6_257 = arith.constant 6 : index
    %c0_258 = arith.constant 0 : index
    %c0_259 = arith.constant 0 : index
    %360 = vector.load %arg2[%c6_257, %c0_258, %c0_259] : memref<9x1x256xf32, #tpu.memory_space<vmem>>, vector<1x1x256xf32>
    %361 = vector.shape_cast %360 : vector<1x1x256xf32> to vector<1x256xf32>
    %362 = vector.broadcast %361 : vector<1x256xf32> to vector<4x256xf32>
    %363 = arith.mulf %359, %362 : vector<4x256xf32>
    %c6_260 = arith.constant 6 : index
    %c0_261 = arith.constant 0 : index
    %c0_262 = arith.constant 0 : index
    %364 = vector.load %arg7[%c6_260, %c0_261, %c0_262] : memref<9x4x4xbf16, #tpu.memory_space<vmem>>, vector<1x4x4xbf16>
    %365 = vector.shape_cast %364 : vector<1x4x4xbf16> to vector<4x4xbf16>
    %366 = arith.truncf %363 : vector<4x256xf32> to vector<4x256xbf16>
    %cst_263 = arith.constant dense<0.000000e+00> : vector<4x256xf32>
    %367 = tpu.matmul %365, %366, %cst_263 {dimension_numbers = #tpu.dot_dimension_numbers<[1], [0], [0], [1], [0, 0, 1, 1], [], []>} : vector<4x4xbf16>, vector<4x256xbf16>, vector<4x256xf32> -> vector<4x256xf32>
    %368 = arith.addf %358, %367 : vector<4x256xf32>
    %c240_i32_264 = arith.constant 240 : i32
    %369 = tpu.dynamic_rotate %302 by %c240_i32_264 dim 1 : vector<4x256xf32>, i32 -> vector<4x256xf32>
    %c7_265 = arith.constant 7 : index
    %c0_266 = arith.constant 0 : index
    %c0_267 = arith.constant 0 : index
    %370 = vector.load %arg2[%c7_265, %c0_266, %c0_267] : memref<9x1x256xf32, #tpu.memory_space<vmem>>, vector<1x1x256xf32>
    %371 = vector.shape_cast %370 : vector<1x1x256xf32> to vector<1x256xf32>
    %372 = vector.broadcast %371 : vector<1x256xf32> to vector<4x256xf32>
    %373 = arith.mulf %369, %372 : vector<4x256xf32>
    %c7_268 = arith.constant 7 : index
    %c0_269 = arith.constant 0 : index
    %c0_270 = arith.constant 0 : index
    %374 = vector.load %arg7[%c7_268, %c0_269, %c0_270] : memref<9x4x4xbf16, #tpu.memory_space<vmem>>, vector<1x4x4xbf16>
    %375 = vector.shape_cast %374 : vector<1x4x4xbf16> to vector<4x4xbf16>
    %376 = arith.truncf %373 : vector<4x256xf32> to vector<4x256xbf16>
    %cst_271 = arith.constant dense<0.000000e+00> : vector<4x256xf32>
    %377 = tpu.matmul %375, %376, %cst_271 {dimension_numbers = #tpu.dot_dimension_numbers<[1], [0], [0], [1], [0, 0, 1, 1], [], []>} : vector<4x4xbf16>, vector<4x256xbf16>, vector<4x256xf32> -> vector<4x256xf32>
    %378 = arith.addf %368, %377 : vector<4x256xf32>
    %c239_i32_272 = arith.constant 239 : i32
    %379 = tpu.dynamic_rotate %302 by %c239_i32_272 dim 1 : vector<4x256xf32>, i32 -> vector<4x256xf32>
    %c8_273 = arith.constant 8 : index
    %c0_274 = arith.constant 0 : index
    %c0_275 = arith.constant 0 : index
    %380 = vector.load %arg2[%c8_273, %c0_274, %c0_275] : memref<9x1x256xf32, #tpu.memory_space<vmem>>, vector<1x1x256xf32>
    %381 = vector.shape_cast %380 : vector<1x1x256xf32> to vector<1x256xf32>
    %382 = vector.broadcast %381 : vector<1x256xf32> to vector<4x256xf32>
    %383 = arith.mulf %379, %382 : vector<4x256xf32>
    %c8_276 = arith.constant 8 : index
    %c0_277 = arith.constant 0 : index
    %c0_278 = arith.constant 0 : index
    %384 = vector.load %arg7[%c8_276, %c0_277, %c0_278] : memref<9x4x4xbf16, #tpu.memory_space<vmem>>, vector<1x4x4xbf16>
    %385 = vector.shape_cast %384 : vector<1x4x4xbf16> to vector<4x4xbf16>
    %386 = arith.truncf %383 : vector<4x256xf32> to vector<4x256xbf16>
    %cst_279 = arith.constant dense<0.000000e+00> : vector<4x256xf32>
    %387 = tpu.matmul %385, %386, %cst_279 {dimension_numbers = #tpu.dot_dimension_numbers<[1], [0], [0], [1], [0, 0, 1, 1], [], []>} : vector<4x4xbf16>, vector<4x256xbf16>, vector<4x256xf32> -> vector<4x256xf32>
    %388 = arith.addf %378, %387 : vector<4x256xf32>
    %c0_280 = arith.constant 0 : index
    %c0_281 = arith.constant 0 : index
    %389 = vector.load %arg14[%c0_280, %c0_281] : memref<4x1xf32, #tpu.memory_space<vmem>>, vector<4x1xf32>
    %390 = vector.broadcast %389 : vector<4x1xf32> to vector<4x256xf32>
    %391 = arith.addf %388, %390 : vector<4x256xf32>
    %cst_282 = arith.constant 0.000000e+00 : f32
    %392 = vector.broadcast %cst_282 : f32 to vector<4x256xf32>
    %393 = arith.subf %392, %391 : vector<4x256xf32>
    %394 = math.exp %393 : vector<4x256xf32>
    %cst_283 = arith.constant 1.000000e+00 : f32
    %395 = vector.broadcast %cst_283 : f32 to vector<4x256xf32>
    %396 = arith.addf %395, %394 : vector<4x256xf32>
    %397 = tpu.reciprocal %396 : vector<4x256xf32> -> vector<4x256xf32>
    %398 = arith.mulf %391, %397 : vector<4x256xf32>
    %c0_284 = arith.constant 0 : index
    %c0_285 = arith.constant 0 : index
    %399 = vector.load %arg8[%c0_284, %c0_285] : memref<8x16xbf16, #tpu.memory_space<vmem>>, vector<8x16xbf16>
    %400 = arith.truncf %13 : vector<16x256xf32> to vector<16x256xbf16>
    %cst_286 = arith.constant dense<0.000000e+00> : vector<8x256xf32>
    %401 = tpu.matmul %399, %400, %cst_286 {dimension_numbers = #tpu.dot_dimension_numbers<[1], [0], [0], [1], [0, 0, 1, 1], [], []>} : vector<8x16xbf16>, vector<16x256xbf16>, vector<8x256xf32> -> vector<8x256xf32>
    %c0_287 = arith.constant 0 : index
    %c0_288 = arith.constant 0 : index
    %c0_289 = arith.constant 0 : index
    %402 = vector.load %arg9[%c0_287, %c0_288, %c0_289] : memref<4x8x4xbf16, #tpu.memory_space<vmem>>, vector<1x8x4xbf16>
    %403 = vector.shape_cast %402 : vector<1x8x4xbf16> to vector<8x4xbf16>
    %404 = arith.truncf %110 : vector<4x256xf32> to vector<4x256xbf16>
    %cst_290 = arith.constant dense<0.000000e+00> : vector<8x256xf32>
    %405 = tpu.matmul %403, %404, %cst_290 {dimension_numbers = #tpu.dot_dimension_numbers<[1], [0], [0], [1], [0, 0, 1, 1], [], []>} : vector<8x4xbf16>, vector<4x256xbf16>, vector<8x256xf32> -> vector<8x256xf32>
    %406 = arith.addf %401, %405 : vector<8x256xf32>
    %c1_291 = arith.constant 1 : index
    %c0_292 = arith.constant 0 : index
    %c0_293 = arith.constant 0 : index
    %407 = vector.load %arg9[%c1_291, %c0_292, %c0_293] : memref<4x8x4xbf16, #tpu.memory_space<vmem>>, vector<1x8x4xbf16>
    %408 = vector.shape_cast %407 : vector<1x8x4xbf16> to vector<8x4xbf16>
    %409 = arith.truncf %206 : vector<4x256xf32> to vector<4x256xbf16>
    %cst_294 = arith.constant dense<0.000000e+00> : vector<8x256xf32>
    %410 = tpu.matmul %408, %409, %cst_294 {dimension_numbers = #tpu.dot_dimension_numbers<[1], [0], [0], [1], [0, 0, 1, 1], [], []>} : vector<8x4xbf16>, vector<4x256xbf16>, vector<8x256xf32> -> vector<8x256xf32>
    %411 = arith.addf %406, %410 : vector<8x256xf32>
    %c2_295 = arith.constant 2 : index
    %c0_296 = arith.constant 0 : index
    %c0_297 = arith.constant 0 : index
    %412 = vector.load %arg9[%c2_295, %c0_296, %c0_297] : memref<4x8x4xbf16, #tpu.memory_space<vmem>>, vector<1x8x4xbf16>
    %413 = vector.shape_cast %412 : vector<1x8x4xbf16> to vector<8x4xbf16>
    %414 = arith.truncf %302 : vector<4x256xf32> to vector<4x256xbf16>
    %cst_298 = arith.constant dense<0.000000e+00> : vector<8x256xf32>
    %415 = tpu.matmul %413, %414, %cst_298 {dimension_numbers = #tpu.dot_dimension_numbers<[1], [0], [0], [1], [0, 0, 1, 1], [], []>} : vector<8x4xbf16>, vector<4x256xbf16>, vector<8x256xf32> -> vector<8x256xf32>
    %416 = arith.addf %411, %415 : vector<8x256xf32>
    %c3_299 = arith.constant 3 : index
    %c0_300 = arith.constant 0 : index
    %c0_301 = arith.constant 0 : index
    %417 = vector.load %arg9[%c3_299, %c0_300, %c0_301] : memref<4x8x4xbf16, #tpu.memory_space<vmem>>, vector<1x8x4xbf16>
    %418 = vector.shape_cast %417 : vector<1x8x4xbf16> to vector<8x4xbf16>
    %419 = arith.truncf %398 : vector<4x256xf32> to vector<4x256xbf16>
    %cst_302 = arith.constant dense<0.000000e+00> : vector<8x256xf32>
    %420 = tpu.matmul %418, %419, %cst_302 {dimension_numbers = #tpu.dot_dimension_numbers<[1], [0], [0], [1], [0, 0, 1, 1], [], []>} : vector<8x4xbf16>, vector<4x256xbf16>, vector<8x256xf32> -> vector<8x256xf32>
    %421 = arith.addf %416, %420 : vector<8x256xf32>
    %c0_303 = arith.constant 0 : index
    %c0_304 = arith.constant 0 : index
    %422 = vector.load %arg15[%c0_303, %c0_304] : memref<8x1xf32, #tpu.memory_space<vmem>>, vector<8x1xf32>
    %423 = vector.broadcast %422 : vector<8x1xf32> to vector<8x256xf32>
    %424 = arith.addf %421, %423 : vector<8x256xf32>
    %cst_305 = arith.constant 0.000000e+00 : f32
    %425 = vector.broadcast %cst_305 : f32 to vector<8x256xf32>
    %426 = arith.subf %425, %424 : vector<8x256xf32>
    %427 = math.exp %426 : vector<8x256xf32>
    %cst_306 = arith.constant 1.000000e+00 : f32
    %428 = vector.broadcast %cst_306 : f32 to vector<8x256xf32>
    %429 = arith.addf %428, %427 : vector<8x256xf32>
    %430 = tpu.reciprocal %429 : vector<8x256xf32> -> vector<8x256xf32>
    %431 = arith.mulf %424, %430 : vector<8x256xf32>
    %432 = vector.shape_cast %431 : vector<8x256xf32> to vector<1x8x256xf32>
    %c0_307 = arith.constant 0 : index
    %c0_308 = arith.constant 0 : index
    %c0_309 = arith.constant 0 : index
    %433 = vector.load %arg16[%c0_307, %c0_308, %c0_309] : memref<1x8x256xf32, #tpu.memory_space<vmem>>, vector<1x8x256xf32>
    tpu.vector_store %arg16[%c0_307, %c0_308, %c0_309], %432 {strides = array<i32>} : memref<1x8x256xf32, #tpu.memory_space<vmem>>, vector<1x8x256xf32>,
    return
  }
  func.func @transform_0(%arg0: i32) -> (i32, i32, i32) {
    %c0_i32 = arith.constant 0 : i32
    %c0_i32_0 = arith.constant 0 : i32
    %c0_i32_1 = arith.constant 0 : i32
    return %arg0, %c0_i32, %c0_i32_0 : i32, i32, i32
  }
  func.func @transform_1(%arg0: i32) -> (i32, i32, i32) {
    %c0_i32 = arith.constant 0 : i32
    %c0_i32_0 = arith.constant 0 : i32
    %c0_i32_1 = arith.constant 0 : i32
    %c0_i32_2 = arith.constant 0 : i32
    return %c0_i32, %c0_i32_0, %c0_i32_1 : i32, i32, i32
  }
  func.func @transform_2(%arg0: i32) -> (i32, i32) {
    %c0_i32 = arith.constant 0 : i32
    %c0_i32_0 = arith.constant 0 : i32
    %c0_i32_1 = arith.constant 0 : i32
    return %c0_i32, %c0_i32_0 : i32, i32
  }
  func.func @transform_3(%arg0: i32) -> (i32, i32, i32) {
    %c0_i32 = arith.constant 0 : i32
    %c0_i32_0 = arith.constant 0 : i32
    %c0_i32_1 = arith.constant 0 : i32
    %c0_i32_2 = arith.constant 0 : i32
    return %c0_i32, %c0_i32_0, %c0_i32_1 : i32, i32, i32
  }
  func.func @transform_4(%arg0: i32) -> (i32, i32, i32) {
    %c0_i32 = arith.constant 0 : i32
    %c0_i32_0 = arith.constant 0 : i32
    %c0_i32_1 = arith.constant 0 : i32
    %c0_i32_2 = arith.constant 0 : i32
    return %c0_i32, %c0_i32_0, %c0_i32_1 : i32, i32, i32
  }
  func.func @transform_5(%arg0: i32) -> (i32, i32, i32) {
    %c0_i32 = arith.constant 0 : i32
    %c0_i32_0 = arith.constant 0 : i32
    %c0_i32_1 = arith.constant 0 : i32
    %c0_i32_2 = arith.constant 0 : i32
    return %c0_i32, %c0_i32_0, %c0_i32_1 : i32, i32, i32
  }
  func.func @transform_6(%arg0: i32) -> (i32, i32, i32) {
    %c0_i32 = arith.constant 0 : i32
    %c0_i32_0 = arith.constant 0 : i32
    %c0_i32_1 = arith.constant 0 : i32
    %c0_i32_2 = arith.constant 0 : i32
    return %c0_i32, %c0_i32_0, %c0_i32_1 : i32, i32, i32
  }
  func.func @transform_7(%arg0: i32) -> (i32, i32) {
    %c0_i32 = arith.constant 0 : i32
    %c0_i32_0 = arith.constant 0 : i32
    %c0_i32_1 = arith.constant 0 : i32
    return %c0_i32, %c0_i32_0 : i32, i32
  }
  func.func @transform_8(%arg0: i32) -> (i32, i32, i32) {
    %c0_i32 = arith.constant 0 : i32
    %c0_i32_0 = arith.constant 0 : i32
    %c0_i32_1 = arith.constant 0 : i32
    %c0_i32_2 = arith.constant 0 : i32
    return %c0_i32, %c0_i32_0, %c0_i32_1 : i32, i32, i32
  }
  func.func @transform_9(%arg0: i32) -> (i32, i32) {
    %c0_i32 = arith.constant 0 : i32
    %c0_i32_0 = arith.constant 0 : i32
    %c0_i32_1 = arith.constant 0 : i32
    return %c0_i32, %c0_i32_0 : i32, i32
  }
  func.func @transform_10(%arg0: i32) -> (i32, i32) {
    %c0_i32 = arith.constant 0 : i32
    %c0_i32_0 = arith.constant 0 : i32
    %c0_i32_1 = arith.constant 0 : i32
    return %c0_i32, %c0_i32_0 : i32, i32
  }
  func.func @transform_11(%arg0: i32) -> (i32, i32) {
    %c0_i32 = arith.constant 0 : i32
    %c0_i32_0 = arith.constant 0 : i32
    %c0_i32_1 = arith.constant 0 : i32
    return %c0_i32, %c0_i32_0 : i32, i32
  }
  func.func @transform_12(%arg0: i32) -> (i32, i32) {
    %c0_i32 = arith.constant 0 : i32
    %c0_i32_0 = arith.constant 0 : i32
    %c0_i32_1 = arith.constant 0 : i32
    return %c0_i32, %c0_i32_0 : i32, i32
  }
  func.func @transform_13(%arg0: i32) -> (i32, i32) {
    %c0_i32 = arith.constant 0 : i32
    %c0_i32_0 = arith.constant 0 : i32
    %c0_i32_1 = arith.constant 0 : i32
    return %c0_i32, %c0_i32_0 : i32, i32
  }
  func.func @transform_14(%arg0: i32) -> (i32, i32) {
    %c0_i32 = arith.constant 0 : i32
    %c0_i32_0 = arith.constant 0 : i32
    %c0_i32_1 = arith.constant 0 : i32
    return %c0_i32, %c0_i32_0 : i32, i32
  }
  func.func @transform_15(%arg0: i32) -> (i32, i32, i32) {
    %c0_i32 = arith.constant 0 : i32
    %c0_i32_0 = arith.constant 0 : i32
    %c0_i32_1 = arith.constant 0 : i32
    return %arg0, %c0_i32, %c0_i32_0 : i32, i32, i32
  }
}

</mosaic_0001>

<llo_original>
// kernel: tpu_custom_call.1
$region0: #{tpu_custom_call.1}
  #allocation0 [shape = 'u32[]', space=smem, size = 0x4, offset = 0x4, fixed_abs, tag = 'smem constant byte address 0x4 - core index']
  #allocation1 [shape = 'u32[144,128]{1,0:T(1,128)}', space=vmem, size = 0x12000, scoped, tag = 'internal scratch']
  %s0 = inlined_call_operand.vmem [shape: bf16[2,4,256], index: 0, kind: input, shape index: {}]
  %s1 = inlined_call_operand.vmem [shape: f32[9,1,256], index: 1, kind: input, shape index: {}]
  %s2 = inlined_call_operand.vmem [shape: bf16[16,4], index: 2, kind: input, shape index: {}]
  %s3 = inlined_call_operand.vmem [shape: bf16[9,4,8], index: 3, kind: input, shape index: {}]
  %s4 = inlined_call_operand.vmem [shape: bf16[9,4,4], index: 4, kind: input, shape index: {}]
  %s5 = inlined_call_operand.vmem [shape: bf16[9,4,4], index: 5, kind: input, shape index: {}]
  %s6 = inlined_call_operand.vmem [shape: bf16[9,4,4], index: 6, kind: input, shape index: {}]
  %s7 = inlined_call_operand.vmem [shape: bf16[8,16], index: 7, kind: input, shape index: {}]
  %s8 = inlined_call_operand.vmem [shape: bf16[4,8,4], index: 8, kind: input, shape index: {}]
  %s9 = inlined_call_operand.vmem [shape: f32[16,1], index: 9, kind: input, shape index: {}]
  %s10 = inlined_call_operand.vmem [shape: f32[4,1], index: 10, kind: input, shape index: {}]
  %s11 = inlined_call_operand.vmem [shape: f32[4,1], index: 11, kind: input, shape index: {}]
  %s12 = inlined_call_operand.vmem [shape: f32[4,1], index: 12, kind: input, shape index: {}]
  %s13 = inlined_call_operand.vmem [shape: f32[4,1], index: 13, kind: input, shape index: {}]
  %s14 = inlined_call_operand.vmem [shape: f32[8,1], index: 14, kind: input, shape index: {}]
  %s15 = inlined_call_operand.hbm [shape: f32[2,8,256], index: 15, kind: output, shape index: {}]
  %s16 = sld [smem:[#allocation0]]
  $region93: #{tpu_custom_call.1} parent=0
    _
  %s18 = ssub.s32 1, %s16
  %s19 = scalar_select 0, %s18, %s16
  $region1: #{tpu_custom_call.1} parent=0
    #allocation2 [shape = 'u8[16384]{0}', space=vmem, size = 0x4000, scoped, tag = 'output window, operand 0']
    #allocation3 [shape = 's32[2]{0}', space=sflag, size = 0x8, scoped, tag = 'scoped memory for tpu_custom_call.1']
    %20 = vsyncpa [#allocation3], 0
    %s21 = scalar_lea.sflag [#allocation3], 1
    %22 = vsyncpa %s21, 0
    loop: start=0, step=1, limit=4
    $region2: #{tpu_custom_call.1} parent=1 // loop_pre_header
      _
    $region3: #{tpu_custom_call.1} parent=1 // loop_header
      %s24 = sphi 0, %s28
      %p25 = scmp.ge.s32.totalorder %s24, 4
      %s34 = sphi 0, %s36
      %s37 = sphi 0, %s34
      %s38 = sphi 0, %s37
      %s54 = sphi 0, %s38
      %s58 = sphi 0, %s58
      %s60 = sphi 0, %s58
      %s61 = sphi 0, %s60
      %s75 = sphi 0, %s61
      %s79 = sphi 0, %s79
      %s81 = sphi 0, %s79
      %s82 = sphi 0, %s81
      %s96 = sphi 0, %s82
      %s100 = sphi 0, %s100
      %s102 = sphi 0, %s100
      %s103 = sphi 0, %s102
      %s117 = sphi 0, %s103
      %s121 = sphi 0, %s121
      %s123 = sphi 0, %s121
      %s124 = sphi 0, %s123
      %s138 = sphi 0, %s124
      %s142 = sphi 0, %s142
      %s144 = sphi 0, %s142
      %s145 = sphi 0, %s144
      %s159 = sphi 0, %s145
      %s163 = sphi 0, %s163
      %s165 = sphi 0, %s163
      %s166 = sphi 0, %s165
      %s180 = sphi 0, %s166
      %s184 = sphi 0, %s184
      %s186 = sphi 0, %s184
      %s187 = sphi 0, %s186
      %s201 = sphi 0, %s187
      %s205 = sphi 0, %s205
      %s207 = sphi 0, %s205
      %s208 = sphi 0, %s207
      %s222 = sphi 0, %s208
      %s226 = sphi 0, %s226
      %s228 = sphi 0, %s226
      %s229 = sphi 0, %s228
      %s243 = sphi 0, %s229
      %s247 = sphi 0, %s247
      %s249 = sphi 0, %s247
      %s250 = sphi 0, %s249
      %s264 = sphi 0, %s250
      %s268 = sphi 0, %s268
      %s270 = sphi 0, %s268
      %s271 = sphi 0, %s270
      %s285 = sphi 0, %s271
      %s289 = sphi 0, %s289
      %s291 = sphi 0, %s289
      %s292 = sphi 0, %s291
      %s306 = sphi 0, %s292
      %s310 = sphi 0, %s310
      %s312 = sphi 0, %s310
      %s313 = sphi 0, %s312
      %s327 = sphi 0, %s313
      %s331 = sphi 0, %s331
      %s333 = sphi 0, %s331
      %s334 = sphi 0, %s333
      %s348 = sphi 0, %s334
      %s354 = sphi 0, %s356
      %s357 = sphi 0, %s354
      %s358 = sphi 0, %s357
      %s374 = sphi 0, %s358
    $region4: #{tpu_custom_call.1} parent=1 // loop_header_branch
      %27 = sbr.rel (%p25) target = $region8
    $region5: #{tpu_custom_call.1} parent=1 // loop_body
      %s29 = ssub.s32 %s24, 1
      %s30 = ssub.s32 %s24, 2
      %s31 = sadd.s32 %s24, 1
      %s32 = ssub.s32 %s24, %s31
      %p33 = scmp.eq.s32.totalorder %s32, 0
      %s35 = sadd.s32 %s34, 1
      %s36 = scalar_select %p33, %s34, %s35
      %p39 = pneg %p33
      %p40 = scmp.eq.s32.totalorder %s24, 1
      %p41 = por %p39, %p40
      %p42 = scmp.ne.s32.totalorder %s34, %s37
      %p43 = scmp.eq.s32.totalorder %s24, 0
      %p44 = por %p42, %p43
      %p45 = scmp.ne.s32.totalorder %s34, %s37
      %p46 = scmp.eq.s32.totalorder %s29, 1
      %p47 = por %p45, %p46
      %p48 = scmp.ne.s32.totalorder %s37, %s38
      %p49 = scmp.eq.s32.totalorder %s29, 0
      %p50 = por %p48, %p49
      %p51 = scmp.ne.s32.totalorder %s37, %s38
      %p52 = scmp.eq.s32.totalorder %s30, 1
      %p53 = por %p51, %p52
      %p55 = scmp.ne.s32.totalorder %s38, %s54
      %p56 = scmp.eq.s32.totalorder %s30, 0
      %p57 = por %p55, %p56
      %s59 = sadd.s32 %s58, 1
      %p62 = scmp.eq.s32.totalorder %s24, 1
      %p63 = scmp.ne.s32.totalorder %s58, %s60
      %p64 = scmp.eq.s32.totalorder %s24, 0
      %p65 = por %p63, %p64
      %p66 = scmp.ne.s32.totalorder %s58, %s60
      %p67 = scmp.eq.s32.totalorder %s29, 1
      %p68 = por %p66, %p67
      %p69 = scmp.ne.s32.totalorder %s60, %s61
      %p70 = scmp.eq.s32.totalorder %s29, 0
      %p71 = por %p69, %p70
      %p72 = scmp.ne.s32.totalorder %s60, %s61
      %p73 = scmp.eq.s32.totalorder %s30, 1
      %p74 = por %p72, %p73
      %p76 = scmp.ne.s32.totalorder %s61, %s75
      %p77 = scmp.eq.s32.totalorder %s30, 0
      %p78 = por %p76, %p77
      %s80 = sadd.s32 %s79, 1
      %p83 = scmp.eq.s32.totalorder %s24, 1
      %p84 = scmp.ne.s32.totalorder %s79, %s81
      %p85 = scmp.eq.s32.totalorder %s24, 0
      %p86 = por %p84, %p85
      %p87 = scmp.ne.s32.totalorder %s79, %s81
      %p88 = scmp.eq.s32.totalorder %s29, 1
      %p89 = por %p87, %p88
      %p90 = scmp.ne.s32.totalorder %s81, %s82
      %p91 = scmp.eq.s32.totalorder %s29, 0
      %p92 = por %p90, %p91
      %p93 = scmp.ne.s32.totalorder %s81, %s82
      %p94 = scmp.eq.s32.totalorder %s30, 1
      %p95 = por %p93, %p94
      %p97 = scmp.ne.s32.totalorder %s82, %s96
      %p98 = scmp.eq.s32.totalorder %s30, 0
      %p99 = por %p97, %p98
      %s101 = sadd.s32 %s100, 1
      %p104 = scmp.eq.s32.totalorder %s24, 1
      %p105 = scmp.ne.s32.totalorder %s100, %s102
      %p106 = scmp.eq.s32.totalorder %s24, 0
      %p107 = por %p105, %p106
      %p108 = scmp.ne.s32.totalorder %s100, %s102
      %p109 = scmp.eq.s32.totalorder %s29, 1
      %p110 = por %p108, %p109
      %p111 = scmp.ne.s32.totalorder %s102, %s103
      %p112 = scmp.eq.s32.totalorder %s29, 0
      %p113 = por %p111, %p112
      %p114 = scmp.ne.s32.totalorder %s102, %s103
      %p115 = scmp.eq.s32.totalorder %s30, 1
      %p116 = por %p114, %p115
      %p118 = scmp.ne.s32.totalorder %s103, %s117
      %p119 = scmp.eq.s32.totalorder %s30, 0
      %p120 = por %p118, %p119
      %s122 = sadd.s32 %s121, 1
      %p125 = scmp.eq.s32.totalorder %s24, 1
      %p126 = scmp.ne.s32.totalorder %s121, %s123
      %p127 = scmp.eq.s32.totalorder %s24, 0
      %p128 = por %p126, %p127
      %p129 = scmp.ne.s32.totalorder %s121, %s123
      %p130 = scmp.eq.s32.totalorder %s29, 1
      %p131 = por %p129, %p130
      %p132 = scmp.ne.s32.totalorder %s123, %s124
      %p133 = scmp.eq.s32.totalorder %s29, 0
      %p134 = por %p132, %p133
      %p135 = scmp.ne.s32.totalorder %s123, %s124
      %p136 = scmp.eq.s32.totalorder %s30, 1
      %p137 = por %p135, %p136
      %p139 = scmp.ne.s32.totalorder %s124, %s138
      %p140 = scmp.eq.s32.totalorder %s30, 0
      %p141 = por %p139, %p140
      %s143 = sadd.s32 %s142, 1
      %p146 = scmp.eq.s32.totalorder %s24, 1
      %p147 = scmp.ne.s32.totalorder %s142, %s144
      %p148 = scmp.eq.s32.totalorder %s24, 0
      %p149 = por %p147, %p148
      %p150 = scmp.ne.s32.totalorder %s142, %s144
      %p151 = scmp.eq.s32.totalorder %s29, 1
      %p152 = por %p150, %p151
      %p153 = scmp.ne.s32.totalorder %s144, %s145
      %p154 = scmp.eq.s32.totalorder %s29, 0
      %p155 = por %p153, %p154
      %p156 = scmp.ne.s32.totalorder %s144, %s145
      %p157 = scmp.eq.s32.totalorder %s30, 1
      %p158 = por %p156, %p157
      %p160 = scmp.ne.s32.totalorder %s145, %s159
      %p161 = scmp.eq.s32.totalorder %s30, 0
      %p162 = por %p160, %p161
      %s164 = sadd.s32 %s163, 1
      %p167 = scmp.eq.s32.totalorder %s24, 1
      %p168 = scmp.ne.s32.totalorder %s163, %s165
      %p169 = scmp.eq.s32.totalorder %s24, 0
      %p170 = por %p168, %p169
      %p171 = scmp.ne.s32.totalorder %s163, %s165
      %p172 = scmp.eq.s32.totalorder %s29, 1
      %p173 = por %p171, %p172
      %p174 = scmp.ne.s32.totalorder %s165, %s166
      %p175 = scmp.eq.s32.totalorder %s29, 0
      %p176 = por %p174, %p175
      %p177 = scmp.ne.s32.totalorder %s165, %s166
      %p178 = scmp.eq.s32.totalorder %s30, 1
      %p179 = por %p177, %p178
      %p181 = scmp.ne.s32.totalorder %s166, %s180
      %p182 = scmp.eq.s32.totalorder %s30, 0
      %p183 = por %p181, %p182
      %s185 = sadd.s32 %s184, 1
      %p188 = scmp.eq.s32.totalorder %s24, 1
      %p189 = scmp.ne.s32.totalorder %s184, %s186
      %p190 = scmp.eq.s32.totalorder %s24, 0
      %p191 = por %p189, %p190
      %p192 = scmp.ne.s32.totalorder %s184, %s186
      %p193 = scmp.eq.s32.totalorder %s29, 1
      %p194 = por %p192, %p193
      %p195 = scmp.ne.s32.totalorder %s186, %s187
      %p196 = scmp.eq.s32.totalorder %s29, 0
      %p197 = por %p195, %p196
      %p198 = scmp.ne.s32.totalorder %s186, %s187
      %p199 = scmp.eq.s32.totalorder %s30, 1
      %p200 = por %p198, %p199
      %p202 = scmp.ne.s32.totalorder %s187, %s201
      %p203 = scmp.eq.s32.totalorder %s30, 0
      %p204 = por %p202, %p203
      %s206 = sadd.s32 %s205, 1
      %p209 = scmp.eq.s32.totalorder %s24, 1
      %p210 = scmp.ne.s32.totalorder %s205, %s207
      %p211 = scmp.eq.s32.totalorder %s24, 0
      %p212 = por %p210, %p211
      %p213 = scmp.ne.s32.totalorder %s205, %s207
      %p214 = scmp.eq.s32.totalorder %s29, 1
      %p215 = por %p213, %p214
      %p216 = scmp.ne.s32.totalorder %s207, %s208
      %p217 = scmp.eq.s32.totalorder %s29, 0
      %p218 = por %p216, %p217
      %p219 = scmp.ne.s32.totalorder %s207, %s208
      %p220 = scmp.eq.s32.totalorder %s30, 1
      %p221 = por %p219, %p220
      %p223 = scmp.ne.s32.totalorder %s208, %s222
      %p224 = scmp.eq.s32.totalorder %s30, 0
      %p225 = por %p223, %p224
      %s227 = sadd.s32 %s226, 1
      %p230 = scmp.eq.s32.totalorder %s24, 1
      %p231 = scmp.ne.s32.totalorder %s226, %s228
      %p232 = scmp.eq.s32.totalorder %s24, 0
      %p233 = por %p231, %p232
      %p234 = scmp.ne.s32.totalorder %s226, %s228
      %p235 = scmp.eq.s32.totalorder %s29, 1
      %p236 = por %p234, %p235
      %p237 = scmp.ne.s32.totalorder %s228, %s229
      %p238 = scmp.eq.s32.totalorder %s29, 0
      %p239 = por %p237, %p238
      %p240 = scmp.ne.s32.totalorder %s228, %s229
      %p241 = scmp.eq.s32.totalorder %s30, 1
      %p242 = por %p240, %p241
      %p244 = scmp.ne.s32.totalorder %s229, %s243
      %p245 = scmp.eq.s32.totalorder %s30, 0
      %p246 = por %p244, %p245
      %s248 = sadd.s32 %s247, 1
      %p251 = scmp.eq.s32.totalorder %s24, 1
      %p252 = scmp.ne.s32.totalorder %s247, %s249
      %p253 = scmp.eq.s32.totalorder %s24, 0
      %p254 = por %p252, %p253
      %p255 = scmp.ne.s32.totalorder %s247, %s249
      %p256 = scmp.eq.s32.totalorder %s29, 1
      %p257 = por %p255, %p256
      %p258 = scmp.ne.s32.totalorder %s249, %s250
      %p259 = scmp.eq.s32.totalorder %s29, 0
      %p260 = por %p258, %p259
      %p261 = scmp.ne.s32.totalorder %s249, %s250
      %p262 = scmp.eq.s32.totalorder %s30, 1
      %p263 = por %p261, %p262
      %p265 = scmp.ne.s32.totalorder %s250, %s264
      %p266 = scmp.eq.s32.totalorder %s30, 0
      %p267 = por %p265, %p266
      %s269 = sadd.s32 %s268, 1
      %p272 = scmp.eq.s32.totalorder %s24, 1
      %p273 = scmp.ne.s32.totalorder %s268, %s270
      %p274 = scmp.eq.s32.totalorder %s24, 0
      %p275 = por %p273, %p274
      %p276 = scmp.ne.s32.totalorder %s268, %s270
      %p277 = scmp.eq.s32.totalorder %s29, 1
      %p278 = por %p276, %p277
      %p279 = scmp.ne.s32.totalorder %s270, %s271
      %p280 = scmp.eq.s32.totalorder %s29, 0
      %p281 = por %p279, %p280
      %p282 = scmp.ne.s32.totalorder %s270, %s271
      %p283 = scmp.eq.s32.totalorder %s30, 1
      %p284 = por %p282, %p283
      %p286 = scmp.ne.s32.totalorder %s271, %s285
      %p287 = scmp.eq.s32.totalorder %s30, 0
      %p288 = por %p286, %p287
      %s290 = sadd.s32 %s289, 1
      %p293 = scmp.eq.s32.totalorder %s24, 1
      %p294 = scmp.ne.s32.totalorder %s289, %s291
      %p295 = scmp.eq.s32.totalorder %s24, 0
      %p296 = por %p294, %p295
      %p297 = scmp.ne.s32.totalorder %s289, %s291
      %p298 = scmp.eq.s32.totalorder %s29, 1
      %p299 = por %p297, %p298
      %p300 = scmp.ne.s32.totalorder %s291, %s292
      %p301 = scmp.eq.s32.totalorder %s29, 0
      %p302 = por %p300, %p301
      %p303 = scmp.ne.s32.totalorder %s291, %s292
      %p304 = scmp.eq.s32.totalorder %s30, 1
      %p305 = por %p303, %p304
      %p307 = scmp.ne.s32.totalorder %s292, %s306
      %p308 = scmp.eq.s32.totalorder %s30, 0
      %p309 = por %p307, %p308
      %s311 = sadd.s32 %s310, 1
      %p314 = scmp.eq.s32.totalorder %s24, 1
      %p315 = scmp.ne.s32.totalorder %s310, %s312
      %p316 = scmp.eq.s32.totalorder %s24, 0
      %p317 = por %p315, %p316
      %p318 = scmp.ne.s32.totalorder %s310, %s312
      %p319 = scmp.eq.s32.totalorder %s29, 1
      %p320 = por %p318, %p319
      %p321 = scmp.ne.s32.totalorder %s312, %s313
      %p322 = scmp.eq.s32.totalorder %s29, 0
      %p323 = por %p321, %p322
      %p324 = scmp.ne.s32.totalorder %s312, %s313
      %p325 = scmp.eq.s32.totalorder %s30, 1
      %p326 = por %p324, %p325
      %p328 = scmp.ne.s32.totalorder %s313, %s327
      %p329 = scmp.eq.s32.totalorder %s30, 0
      %p330 = por %p328, %p329
      %s332 = sadd.s32 %s331, 1
      %p335 = scmp.eq.s32.totalorder %s24, 1
      %p336 = scmp.ne.s32.totalorder %s331, %s333
      %p337 = scmp.eq.s32.totalorder %s24, 0
      %p338 = por %p336, %p337
      %p339 = scmp.ne.s32.totalorder %s331, %s333
      %p340 = scmp.eq.s32.totalorder %s29, 1
      %p341 = por %p339, %p340
      %p342 = scmp.ne.s32.totalorder %s333, %s334
      %p343 = scmp.eq.s32.totalorder %s29, 0
      %p344 = por %p342, %p343
      %p345 = scmp.ne.s32.totalorder %s333, %s334
      %p346 = scmp.eq.s32.totalorder %s30, 1
      %p347 = por %p345, %p346
      %p349 = scmp.ne.s32.totalorder %s334, %s348
      %p350 = scmp.eq.s32.totalorder %s30, 0
      %p351 = por %p349, %p350
      %s352 = ssub.s32 %s24, %s31
      %p353 = scmp.eq.s32.totalorder %s352, 0
      %s355 = sadd.s32 %s354, 1
      %s356 = scalar_select %p353, %s354, %s355
      %p359 = pneg %p353
      %p360 = scmp.eq.s32.totalorder %s24, 1
      %p361 = por %p359, %p360
      %p362 = scmp.ne.s32.totalorder %s354, %s357
      %p363 = scmp.eq.s32.totalorder %s24, 0
      %p364 = por %p362, %p363
      %p365 = scmp.ne.s32.totalorder %s354, %s357
      %p366 = scmp.eq.s32.totalorder %s29, 1
      %p367 = por %p365, %p366
      %p368 = scmp.ne.s32.totalorder %s357, %s358
      %p369 = scmp.eq.s32.totalorder %s29, 0
      %p370 = por %p368, %p369
      %p371 = scmp.ne.s32.totalorder %s357, %s358
      %p372 = scmp.eq.s32.totalorder %s30, 1
      %p373 = por %p371, %p372
      %p375 = scmp.ne.s32.totalorder %s358, %s374
      %p376 = scmp.eq.s32.totalorder %s30, 0
      %p377 = por %p375, %p376
      %p378 = scmp.le.s32.totalorder 1, %s24
      %p379 = scmp.lt.s32.totalorder %s24, 3
      %p380 = pnand %p378, %p379
      %p381 = pneg %p380
      // Predicated region
      $region9: #{tpu_custom_call.1} parent=5 // pred_check
        _
      $region10: #{tpu_custom_call.1} parent=5 // pred_check_branch
        %383 = sbr.rel (%p380) target = $region12
      $region11: #{tpu_custom_call.1} parent=5 // pred_region
        %s384 = ssub.s32 %s24, 1
        // Predicated region
        $region13: #{tpu_custom_call.1} parent=11 // pred_check
          %p385 = pneg %p71
        $region14: #{tpu_custom_call.1} parent=11 // pred_check_branch
          %387 = sbr.rel (%p385) target = $region16
        $region15: #{tpu_custom_call.1} parent=11 // pred_region
          _
        $region16: #{tpu_custom_call.1} parent=11 // pred_fallthru
          _
        // Predicated region
        $region17: #{tpu_custom_call.1} parent=11 // pred_check
          %p388 = pneg %p92
        $region18: #{tpu_custom_call.1} parent=11 // pred_check_branch
          %390 = sbr.rel (%p388) target = $region20
        $region19: #{tpu_custom_call.1} parent=11 // pred_region
          _
        $region20: #{tpu_custom_call.1} parent=11 // pred_fallthru
          _
        // Predicated region
        $region21: #{tpu_custom_call.1} parent=11 // pred_check
          %p391 = pneg %p113
        $region22: #{tpu_custom_call.1} parent=11 // pred_check_branch
          %393 = sbr.rel (%p391) target = $region24
        $region23: #{tpu_custom_call.1} parent=11 // pred_region
          _
        $region24: #{tpu_custom_call.1} parent=11 // pred_fallthru
          _
        // Predicated region
        $region25: #{tpu_custom_call.1} parent=11 // pred_check
          %p394 = pneg %p134
        $region26: #{tpu_custom_call.1} parent=11 // pred_check_branch
          %396 = sbr.rel (%p394) target = $region28
        $region27: #{tpu_custom_call.1} parent=11 // pred_region
          _
        $region28: #{tpu_custom_call.1} parent=11 // pred_fallthru
          _
        // Predicated region
        $region29: #{tpu_custom_call.1} parent=11 // pred_check
          %p397 = pneg %p155
        $region30: #{tpu_custom_call.1} parent=11 // pred_check_branch
          %399 = sbr.rel (%p397) target = $region32
        $region31: #{tpu_custom_call.1} parent=11 // pred_region
          _
        $region32: #{tpu_custom_call.1} parent=11 // pred_fallthru
          _
        // Predicated region
        $region33: #{tpu_custom_call.1} parent=11 // pred_check
          %p400 = pneg %p176
        $region34: #{tpu_custom_call.1} parent=11 // pred_check_branch
          %402 = sbr.rel (%p400) target = $region36
        $region35: #{tpu_custom_call.1} parent=11 // pred_region
          _
        $region36: #{tpu_custom_call.1} parent=11 // pred_fallthru
          _
        // Predicated region
        $region37: #{tpu_custom_call.1} parent=11 // pred_check
          %p403 = pneg %p197
        $region38: #{tpu_custom_call.1} parent=11 // pred_check_branch
          %405 = sbr.rel (%p403) target = $region40
        $region39: #{tpu_custom_call.1} parent=11 // pred_region
          _
        $region40: #{tpu_custom_call.1} parent=11 // pred_fallthru
          _
        // Predicated region
        $region41: #{tpu_custom_call.1} parent=11 // pred_check
          %p406 = pneg %p218
        $region42: #{tpu_custom_call.1} parent=11 // pred_check_branch
          %408 = sbr.rel (%p406) target = $region44
        $region43: #{tpu_custom_call.1} parent=11 // pred_region
          _
        $region44: #{tpu_custom_call.1} parent=11 // pred_fallthru
          _
        // Predicated region
        $region45: #{tpu_custom_call.1} parent=11 // pred_check
          %p409 = pneg %p239
        $region46: #{tpu_custom_call.1} parent=11 // pred_check_branch
          %411 = sbr.rel (%p409) target = $region48
        $region47: #{tpu_custom_call.1} parent=11 // pred_region
          _
        $region48: #{tpu_custom_call.1} parent=11 // pred_fallthru
          _
        // Predicated region
        $region49: #{tpu_custom_call.1} parent=11 // pred_check
          %p412 = pneg %p260
        $region50: #{tpu_custom_call.1} parent=11 // pred_check_branch
          %414 = sbr.rel (%p412) target = $region52
        $region51: #{tpu_custom_call.1} parent=11 // pred_region
          _
        $region52: #{tpu_custom_call.1} parent=11 // pred_fallthru
          _
        // Predicated region
        $region53: #{tpu_custom_call.1} parent=11 // pred_check
          %p415 = pneg %p281
        $region54: #{tpu_custom_call.1} parent=11 // pred_check_branch
          %417 = sbr.rel (%p415) target = $region56
        $region55: #{tpu_custom_call.1} parent=11 // pred_region
          _
        $region56: #{tpu_custom_call.1} parent=11 // pred_fallthru
          _
        // Predicated region
        $region57: #{tpu_custom_call.1} parent=11 // pred_check
          %p418 = pneg %p302
        $region58: #{tpu_custom_call.1} parent=11 // pred_check_branch
          %420 = sbr.rel (%p418) target = $region60
        $region59: #{tpu_custom_call.1} parent=11 // pred_region
          _
        $region60: #{tpu_custom_call.1} parent=11 // pred_fallthru
          _
        // Predicated region
        $region61: #{tpu_custom_call.1} parent=11 // pred_check
          %p421 = pneg %p323
        $region62: #{tpu_custom_call.1} parent=11 // pred_check_branch
          %423 = sbr.rel (%p421) target = $region64
        $region63: #{tpu_custom_call.1} parent=11 // pred_region
          _
        $region64: #{tpu_custom_call.1} parent=11 // pred_fallthru
          _
        // Predicated region
        $region65: #{tpu_custom_call.1} parent=11 // pred_check
          %p424 = pneg %p344
        $region66: #{tpu_custom_call.1} parent=11 // pred_check_branch
          %426 = sbr.rel (%p424) target = $region68
        $region67: #{tpu_custom_call.1} parent=11 // pred_region
          _
        $region68: #{tpu_custom_call.1} parent=11 // pred_fallthru
          _
      $region12: #{tpu_custom_call.1} parent=5 // pred_fallthru
        _
      %p427 = scmp.lt.s32.totalorder %s24, 2
      // Predicated region
      $region69: #{tpu_custom_call.1} parent=5 // pred_check
        %p428 = pneg %p427
      $region70: #{tpu_custom_call.1} parent=5 // pred_check_branch
        %430 = sbr.rel (%p428) target = $region72
      $region71: #{tpu_custom_call.1} parent=5 // pred_region
        // Predicated region
        $region73: #{tpu_custom_call.1} parent=71 // pred_check
          %p431 = pneg %p44
        $region74: #{tpu_custom_call.1} parent=71 // pred_check_branch
          %433 = sbr.rel (%p431) target = $region76
        $region75: #{tpu_custom_call.1} parent=71 // pred_region
          %p434 = scmp.lt.s32.totalorder %s24, 1
          %s435 = scalar_select %p434, %s24, 1
          %s436 = smul.addr %s435, 2
          %s437 = smul.addr %s436, 2
          %s438 = scalar_lea.vmem %s0, %s437
        $region76: #{tpu_custom_call.1} parent=71 // pred_fallthru
          _
      $region72: #{tpu_custom_call.1} parent=5 // pred_fallthru
        _
      %p439 = scmp.le.s32.totalorder 1, %s24
      %p440 = scmp.lt.s32.totalorder %s24, 3
      %p441 = pnand %p439, %p440
      %p442 = pneg %p441
      // Predicated region
      $region77: #{tpu_custom_call.1} parent=5 // pred_check
        _
      $region78: #{tpu_custom_call.1} parent=5 // pred_check_branch
        %444 = sbr.rel (%p441) target = $region80
      $region79: #{tpu_custom_call.1} parent=5 // pred_region
        %s445 = ssub.s32 %s24, 1
        %p446 = scmp.lt.s32.totalorder %s29, 1
        %s447 = scalar_select %p446, %s29, 1
        %s448 = smul.addr %s447, 2
        %s449 = smul.addr %s448, 2
        %s450 = scalar_lea.vmem %s0, %s449
        %p451 = pneg %p50
        %p452 = pneg %p47
        %p453 = pneg %p71
        %p454 = pneg %p68
        %p455 = pneg %p92
        %p456 = pneg %p89
        %p457 = pneg %p113
        %p458 = pneg %p110
        %p459 = pneg %p134
        %p460 = pneg %p131
        %p461 = pneg %p155
        %p462 = pneg %p152
        %p463 = pneg %p176
        %p464 = pneg %p173
        %p465 = pneg %p197
        %p466 = pneg %p194
        %p467 = pneg %p218
        %p468 = pneg %p215
        %p469 = pneg %p239
        %p470 = pneg %p236
        %p471 = pneg %p260
        %p472 = pneg %p257
        %p473 = pneg %p281
        %p474 = pneg %p278
        %p475 = pneg %p302
        %p476 = pneg %p299
        %p477 = pneg %p323
        %p478 = pneg %p320
        %p479 = pneg %p344
        %p480 = pneg %p341
        %p481 = pneg %p370
        %p482 = pneg %p367
        %s483 = sand.u32 %s357, 1
        %s484 = scalar_lea.sflag [#allocation3], %s483
        %s485 = sand.u32 %s357, 1
        %s486 = smul.addr %s485, 16
        %s487 = scalar_lea.vmem [#allocation2], %s486
        %p488 = scmp.lt.s32.totalorder %s29, 1
        %s489 = scalar_select %p488, %s29, 1
        %s490 = smul.addr %s489, 2
        %s491 = smul.addr %s490, 2
        %s492 = scalar_lea.vmem %s0, %s491
        %v494 = vld [vmem:[%s492] sm:$0xf]
        %v495 = vld [vmem:[%s2] sm:$0xf]
        %v496 = vld [vmem:[%s2 + $0x4] sm:$0xf]
        %v497 = vld [vmem:[%s9] sm:$0xff]
        %v498 = vld [vmem:[%s9 + $0x8] sm:$0xff]
        %500 = vset.pattern.permute.xlu0 0
        %501 = vperm.xlu0 %500, %v497
        %v502 = vpop.permute.xlu0 %501
        %505 = vset.pattern.permute.xlu0 0
        %506 = vperm.xlu0 %505, %v498
        %v507 = vpop.permute.xlu0 %506
        %v511 = vunpack.c.l.b16 %v495
        %v512 = vunpack.c.l.b16 %v496
        %v513 = vpack.c.b16 %v512, %v511
        %v516 = vunpack.c.l.s4 1983009808
        %v517 = vunpack.c.0.s8 %v516
        %v518 = vlaneseq
        %v519 = vshrl.u32 %v518, 7
        %v520 = vsub.s32 %v517, %v519
        %v521 = vrot.slane %v494, %v520
        %v522 = vcombine.high %v521, %v521
        %vm523 = vcmask 31744
        %v525 = vsel %vm523, %v513, 0
        %vm527 = vcmask 1041408
        %v529 = vsel %vm527, %v521, 0
        %v532 = vsel %vm527, %v522, 0
        %534 = vmatprep.subr.bf16.mxu0 0
        %535 = vmatpush1.bf16.msra.mxu0 0
        %536 = vmatprep.subr.bf16.mxu0 0
        %537 = vmatpush1.bf16.msra.mxu0 0
        %538 = vmatprep.subr.bf16.mxu0 0
        %539 = vmatpush1.bf16.msra.mxu0 0
        %540 = vmatprep.subr.bf16.mxu0 0
        %541 = vmatpush1.bf16.msra.mxu0 0
        %542 = vmatprep.subr.bf16.mxu0 0
        %543 = vmatpush1.bf16.msra.mxu0 0
        %544 = vmatprep.subr.bf16.mxu0 0
        %545 = vmatpush1.bf16.msra.mxu0 0
        %546 = vmatprep.subr.bf16.mxu0 0
        %547 = vmatpush1.bf16.msra.mxu0 0
        %548 = vmatprep.subr.bf16.mxu0 %v532
        %549 = vmatpush1.bf16.msra.mxu0 %v529
        %550 = vmatprep.subr.bf16.mxu0 0
        %551 = vmatpush2.bf16.msra.mxu0 0
        %552 = vmatprep.subr.bf16.mxu0 0
        %553 = vmatpush2.bf16.msra.mxu0 0
        %554 = vmatprep.subr.bf16.mxu0 0
        %555 = vmatpush2.bf16.msra.mxu0 0
        %556 = vmatprep.subr.bf16.mxu0 0
        %557 = vmatpush2.bf16.msra.mxu0 0
        %558 = vmatprep.subr.bf16.mxu0 0
        %559 = vmatpush2.bf16.msra.mxu0 0
        %560 = vmatprep.subr.bf16.mxu0 0
        %561 = vmatpush2.bf16.msra.mxu0 0
        %562 = vmatprep.subr.bf16.mxu0 0
        %563 = vmatpush2.bf16.msra.mxu0 0
        %564 = vmatprep.subr.bf16.mxu0 0
        %565 = vmatpush2.bf16.msra.mxu0 0
        %566 = vmatprep.mubr.bf16.mxu0 0
        %567 = vmatmul.mubr.bf16.gmra.mxu0 %v525
        %v568 = vpop.f32.mrf.mxu0
        %v569 = vadd.f32 %v502, %v568
        %v570 = vpop.f32.mrf.mxu0
        %v571 = vadd.f32 %v502, %v570
        %v572 = vpop.f32.mrf.mxu0
        %v573 = vadd.f32 %v507, %v572
        %v574 = vpop.f32.mrf.mxu0
        %v575 = vadd.f32 %v507, %v574
        %576 = vdwg.mxu0
        %v577 = vsub.f32 0.0, %v569
        %v578 = vsub.f32 0.0, %v571
        %v579 = vsub.f32 0.0, %v573
        %v580 = vsub.f32 0.0, %v575
        %v581 = vmul.f32 %v577, 1.442695
        %v582 = vpow.pop %v581
        %v583 = vmul.f32 %v578, 1.442695
        %v584 = vpow.pop %v583
        %v585 = vmul.f32 %v579, 1.442695
        %v586 = vpow.pop %v585
        %v587 = vmul.f32 %v580, 1.442695
        %v588 = vpow.pop %v587
        %v589 = vadd.f32 %v582, 1.0
        %v590 = vadd.f32 %v584, 1.0
        %v591 = vadd.f32 %v586, 1.0
        %v592 = vadd.f32 %v588, 1.0
        %v593 = vrcp.pop %v589
        %v594 = vrcp.pop %v590
        %v595 = vrcp.pop %v591
        %v596 = vrcp.pop %v592
        %v597 = vmul.f32 %v569, %v593
        %v598 = vmul.f32 %v571, %v594
        %v599 = vmul.f32 %v573, %v595
        %v600 = vmul.f32 %v575, %v596
        %601 = vrot.lane.b32.xlu0 %v599, 17
        %v602 = vpop.permute.xlu0 %601
        %603 = vrot.lane.b32.xlu0 %v600, 17
        %v604 = vpop.permute.xlu0 %603
        %v605 = vlaneseq
        %v606 = vand.u32 %v605, 127
        %vm607 = vcmp.lt.s32.totalorder %v606, 17
        %v608 = vsel %vm607, %v602, %v604
        %v609 = vsel %vm607, %v604, %v602
        %v610 = vld [vmem:[%s1] sm:$0x3]
        %v612 = vlaneseq
        %v613 = vshrl.u32 %v612, 7
        %v614 = vsub.s32 0, %v613
        %v615 = vrot.slane %v610, %v614
        %v616 = vlaneseq
        %v617 = vshrl.u32 %v616, 7
        %v618 = vsub.s32 1, %v617
        %v619 = vrot.slane %v610, %v618
        %v622 = vmul.f32 %v609, %v615
        %v623 = vmul.f32 %v608, %v619
        %v624 = vld [vmem:[%s3] sm:$0x3]
        %v625 = vpack.c.bf16 %v622, %v622
        %v626 = vpack.c.bf16 %v623, %v623
        %627 = vrot.lane.b32.xlu0 %v599, 16
        %v628 = vpop.permute.xlu0 %627
        %629 = vrot.lane.b32.xlu0 %v600, 16
        %v630 = vpop.permute.xlu0 %629
        %vm631 = vcmp.lt.s32.totalorder %v606, 16
        %v632 = vsel %vm631, %v628, %v630
        %v633 = vsel %vm631, %v630, %v628
        %s634 = scalar_lea.vmem %s1, 2
        %v635 = vld [vmem:[%s634] sm:$0x3]
        %v637 = vlaneseq
        %v638 = vshrl.u32 %v637, 7
        %v639 = vsub.s32 0, %v638
        %v640 = vrot.slane %v635, %v639
        %v641 = vlaneseq
        %v642 = vshrl.u32 %v641, 7
        %v643 = vsub.s32 1, %v642
        %v644 = vrot.slane %v635, %v643
        %v647 = vmul.f32 %v633, %v640
        %v648 = vmul.f32 %v632, %v644
        %s649 = scalar_lea.vmem %s3, 2
        %v650 = vld [vmem:[%s649] sm:$0x3]
        %v651 = vpack.c.bf16 %v647, %v647
        %v652 = vpack.c.bf16 %v648, %v648
        %vm653 = vcmask 64512
        %v655 = vsel %vm653, %v650, 0
        %vm657 = vcmask 1043456
        %v659 = vsel %vm657, %v651, 0
        %v662 = vsel %vm657, %v652, 0
        %664 = vmatprep.subr.bf16.mxu0 0
        %665 = vmatpush1.bf16.msra.mxu0 0
        %666 = vmatprep.subr.bf16.mxu0 0
        %667 = vmatpush1.bf16.msra.mxu0 0
        %668 = vmatprep.subr.bf16.mxu0 0
        %669 = vmatpush1.bf16.msra.mxu0 0
        %670 = vmatprep.subr.bf16.mxu0 0
        %671 = vmatpush1.bf16.msra.mxu0 0
        %672 = vmatprep.subr.bf16.mxu0 0
        %673 = vmatpush1.bf16.msra.mxu0 0
        %674 = vmatprep.subr.bf16.mxu0 0
        %675 = vmatpush1.bf16.msra.mxu0 0
        %676 = vmatprep.subr.bf16.mxu0 0
        %677 = vmatpush1.bf16.msra.mxu0 0
        %678 = vmatprep.subr.bf16.mxu0 %v662
        %679 = vmatpush1.bf16.msra.mxu0 %v659
        %680 = vmatprep.subr.bf16.mxu0 0
        %681 = vmatpush2.bf16.msra.mxu0 0
        %682 = vmatprep.subr.bf16.mxu0 0
        %683 = vmatpush2.bf16.msra.mxu0 0
        %684 = vmatprep.subr.bf16.mxu0 0
        %685 = vmatpush2.bf16.msra.mxu0 0
        %686 = vmatprep.subr.bf16.mxu0 0
        %687 = vmatpush2.bf16.msra.mxu0 0
        %688 = vmatprep.subr.bf16.mxu0 0
        %689 = vmatpush2.bf16.msra.mxu0 0
        %690 = vmatprep.subr.bf16.mxu0 0
        %691 = vmatpush2.bf16.msra.mxu0 0
        %692 = vmatprep.subr.bf16.mxu0 0
        %693 = vmatpush2.bf16.msra.mxu0 0
        %694 = vmatprep.subr.bf16.mxu0 0
        %695 = vmatpush2.bf16.msra.mxu0 0
        %696 = vmatprep.mubr.bf16.mxu0 0
        %697 = vmatmul.mubr.bf16.gmra.mxu0 %v655
        %v698 = vpop.f32.mrf.mxu0
        %v699 = vadd.f32 0.0, %v698
        %v700 = vpop.f32.mrf.mxu0
        %v701 = vadd.f32 0.0, %v700
        %v702 = vpop.f32.mrf.mxu0
        %v703 = vpop.f32.mrf.mxu0
        %704 = vdwg.mxu0
        %v706 = vsel %vm653, %v624, 0
        %v709 = vsel %vm657, %v625, 0
        %v712 = vsel %vm657, %v626, 0
        %714 = vmatprep.subr.bf16.mxu0 0
        %715 = vmatpush1.bf16.msra.mxu0 0
        %716 = vmatprep.subr.bf16.mxu0 0
        %717 = vmatpush1.bf16.msra.mxu0 0
        %718 = vmatprep.subr.bf16.mxu0 0
        %719 = vmatpush1.bf16.msra.mxu0 0
        %720 = vmatprep.subr.bf16.mxu0 0
        %721 = vmatpush1.bf16.msra.mxu0 0
        %722 = vmatprep.subr.bf16.mxu0 0
        %723 = vmatpush1.bf16.msra.mxu0 0
        %724 = vmatprep.subr.bf16.mxu0 0
        %725 = vmatpush1.bf16.msra.mxu0 0
        %726 = vmatprep.subr.bf16.mxu0 0
        %727 = vmatpush1.bf16.msra.mxu0 0
        %728 = vmatprep.subr.bf16.mxu0 %v712
        %729 = vmatpush1.bf16.msra.mxu0 %v709
        %730 = vmatprep.subr.bf16.mxu0 0
        %731 = vmatpush2.bf16.msra.mxu0 0
        %732 = vmatprep.subr.bf16.mxu0 0
        %733 = vmatpush2.bf16.msra.mxu0 0
        %734 = vmatprep.subr.bf16.mxu0 0
        %735 = vmatpush2.bf16.msra.mxu0 0
        %736 = vmatprep.subr.bf16.mxu0 0
        %737 = vmatpush2.bf16.msra.mxu0 0
        %738 = vmatprep.subr.bf16.mxu0 0
        %739 = vmatpush2.bf16.msra.mxu0 0
        %740 = vmatprep.subr.bf16.mxu0 0
        %741 = vmatpush2.bf16.msra.mxu0 0
        %742 = vmatprep.subr.bf16.mxu0 0
        %743 = vmatpush2.bf16.msra.mxu0 0
        %744 = vmatprep.subr.bf16.mxu0 0
        %745 = vmatpush2.bf16.msra.mxu0 0
        %746 = vmatprep.mubr.bf16.mxu0 0
        %747 = vmatmul.mubr.bf16.gmra.mxu0 %v706
        %v748 = vpop.f32.mrf.mxu0
        %v749 = vadd.f32 %v699, %v748
        %v750 = vpop.f32.mrf.mxu0
        %v751 = vadd.f32 %v701, %v750
        %v752 = vpop.f32.mrf.mxu0
        %v753 = vpop.f32.mrf.mxu0
        %754 = vdwg.mxu0
        %755 = vrot.lane.b32.xlu0 %v599, 15
        %v756 = vpop.permute.xlu0 %755
        %757 = vrot.lane.b32.xlu0 %v600, 15
        %v758 = vpop.permute.xlu0 %757
        %vm759 = vcmp.lt.s32.totalorder %v606, 15
        %v760 = vsel %vm759, %v756, %v758
        %v761 = vsel %vm759, %v758, %v756
        %s762 = scalar_lea.vmem %s1, 4
        %v763 = vld [vmem:[%s762] sm:$0x3]
        %v765 = vlaneseq
        %v766 = vshrl.u32 %v765, 7
        %v767 = vsub.s32 0, %v766
        %v768 = vrot.slane %v763, %v767
        %v769 = vlaneseq
        %v770 = vshrl.u32 %v769, 7
        %v771 = vsub.s32 1, %v770
        %v772 = vrot.slane %v763, %v771
        %v775 = vmul.f32 %v761, %v768
        %v776 = vmul.f32 %v760, %v772
        %s777 = scalar_lea.vmem %s3, 4
        %v778 = vld [vmem:[%s777] sm:$0x3]
        %v779 = vpack.c.bf16 %v775, %v775
        %v780 = vpack.c.bf16 %v776, %v776
        %v782 = vsel %vm653, %v778, 0
        %v785 = vsel %vm657, %v779, 0
        %v788 = vsel %vm657, %v780, 0
        %790 = vmatprep.subr.bf16.mxu0 0
        %791 = vmatpush1.bf16.msra.mxu0 0
        %792 = vmatprep.subr.bf16.mxu0 0
        %793 = vmatpush1.bf16.msra.mxu0 0
        %794 = vmatprep.subr.bf16.mxu0 0
        %795 = vmatpush1.bf16.msra.mxu0 0
        %796 = vmatprep.subr.bf16.mxu0 0
        %797 = vmatpush1.bf16.msra.mxu0 0
        %798 = vmatprep.subr.bf16.mxu0 0
        %799 = vmatpush1.bf16.msra.mxu0 0
        %800 = vmatprep.subr.bf16.mxu0 0
        %801 = vmatpush1.bf16.msra.mxu0 0
        %802 = vmatprep.subr.bf16.mxu0 0
        %803 = vmatpush1.bf16.msra.mxu0 0
        %804 = vmatprep.subr.bf16.mxu0 %v788
        %805 = vmatpush1.bf16.msra.mxu0 %v785
        %806 = vmatprep.subr.bf16.mxu0 0
        %807 = vmatpush2.bf16.msra.mxu0 0
        %808 = vmatprep.subr.bf16.mxu0 0
        %809 = vmatpush2.bf16.msra.mxu0 0
        %810 = vmatprep.subr.bf16.mxu0 0
        %811 = vmatpush2.bf16.msra.mxu0 0
        %812 = vmatprep.subr.bf16.mxu0 0
        %813 = vmatpush2.bf16.msra.mxu0 0
        %814 = vmatprep.subr.bf16.mxu0 0
        %815 = vmatpush2.bf16.msra.mxu0 0
        %816 = vmatprep.subr.bf16.mxu0 0
        %817 = vmatpush2.bf16.msra.mxu0 0
        %818 = vmatprep.subr.bf16.mxu0 0
        %819 = vmatpush2.bf16.msra.mxu0 0
        %820 = vmatprep.subr.bf16.mxu0 0
        %821 = vmatpush2.bf16.msra.mxu0 0
        %822 = vmatprep.mubr.bf16.mxu0 0
        %823 = vmatmul.mubr.bf16.gmra.mxu0 %v782
        %v824 = vpop.f32.mrf.mxu0
        %v825 = vadd.f32 0.0, %v824
        %v826 = vpop.f32.mrf.mxu0
        %v827 = vadd.f32 0.0, %v826
        %v828 = vpop.f32.mrf.mxu0
        %v829 = vpop.f32.mrf.mxu0
        %830 = vdwg.mxu0
        %v831 = vadd.f32 %v749, %v825
        %v832 = vadd.f32 %v751, %v827
        %833 = vrot.lane.b32.xlu0 %v599, 1
        %v834 = vpop.permute.xlu0 %833
        %835 = vrot.lane.b32.xlu0 %v600, 1
        %v836 = vpop.permute.xlu0 %835
        %vm837 = vcmp.lt.s32.totalorder %v606, 1
        %v838 = vsel %vm837, %v834, %v836
        %v839 = vsel %vm837, %v836, %v834
        %s840 = scalar_lea.vmem %s1, 6
        %v841 = vld [vmem:[%s840] sm:$0x3]
        %v843 = vlaneseq
        %v844 = vshrl.u32 %v843, 7
        %v845 = vsub.s32 0, %v844
        %v846 = vrot.slane %v841, %v845
        %v847 = vlaneseq
        %v848 = vshrl.u32 %v847, 7
        %v849 = vsub.s32 1, %v848
        %v850 = vrot.slane %v841, %v849
        %v853 = vmul.f32 %v839, %v846
        %v854 = vmul.f32 %v838, %v850
        %s855 = scalar_lea.vmem %s3, 6
        %v856 = vld [vmem:[%s855] sm:$0x3]
        %v857 = vpack.c.bf16 %v853, %v853
        %v858 = vpack.c.bf16 %v854, %v854
        %v860 = vsel %vm653, %v856, 0
        %v863 = vsel %vm657, %v857, 0
        %v866 = vsel %vm657, %v858, 0
        %868 = vmatprep.subr.bf16.mxu0 0
        %869 = vmatpush1.bf16.msra.mxu0 0
        %870 = vmatprep.subr.bf16.mxu0 0
        %871 = vmatpush1.bf16.msra.mxu0 0
        %872 = vmatprep.subr.bf16.mxu0 0
        %873 = vmatpush1.bf16.msra.mxu0 0
        %874 = vmatprep.subr.bf16.mxu0 0
        %875 = vmatpush1.bf16.msra.mxu0 0
        %876 = vmatprep.subr.bf16.mxu0 0
        %877 = vmatpush1.bf16.msra.mxu0 0
        %878 = vmatprep.subr.bf16.mxu0 0
        %879 = vmatpush1.bf16.msra.mxu0 0
        %880 = vmatprep.subr.bf16.mxu0 0
        %881 = vmatpush1.bf16.msra.mxu0 0
        %882 = vmatprep.subr.bf16.mxu0 %v866
        %883 = vmatpush1.bf16.msra.mxu0 %v863
        %884 = vmatprep.subr.bf16.mxu0 0
        %885 = vmatpush2.bf16.msra.mxu0 0
        %886 = vmatprep.subr.bf16.mxu0 0
        %887 = vmatpush2.bf16.msra.mxu0 0
        %888 = vmatprep.subr.bf16.mxu0 0
        %889 = vmatpush2.bf16.msra.mxu0 0
        %890 = vmatprep.subr.bf16.mxu0 0
        %891 = vmatpush2.bf16.msra.mxu0 0
        %892 = vmatprep.subr.bf16.mxu0 0
        %893 = vmatpush2.bf16.msra.mxu0 0
        %894 = vmatprep.subr.bf16.mxu0 0
        %895 = vmatpush2.bf16.msra.mxu0 0
        %896 = vmatprep.subr.bf16.mxu0 0
        %897 = vmatpush2.bf16.msra.mxu0 0
        %898 = vmatprep.subr.bf16.mxu0 0
        %899 = vmatpush2.bf16.msra.mxu0 0
        %900 = vmatprep.mubr.bf16.mxu0 0
        %901 = vmatmul.mubr.bf16.gmra.mxu0 %v860
        %v902 = vpop.f32.mrf.mxu0
        %v903 = vadd.f32 0.0, %v902
        %v904 = vpop.f32.mrf.mxu0
        %v905 = vadd.f32 0.0, %v904
        %v906 = vpop.f32.mrf.mxu0
        %v907 = vpop.f32.mrf.mxu0
        %908 = vdwg.mxu0
        %v909 = vadd.f32 %v831, %v903
        %v910 = vadd.f32 %v832, %v905
        %s911 = scalar_lea.vmem %s3, 8
        %v912 = vld [vmem:[%s911] sm:$0x3]
        %v913 = vpack.c.bf16 %v599, %v599
        %v914 = vpack.c.bf16 %v600, %v600
        %v916 = vsel %vm653, %v912, 0
        %v919 = vsel %vm657, %v913, 0
        %v922 = vsel %vm657, %v914, 0
        %924 = vmatprep.subr.bf16.mxu0 0
        %925 = vmatpush1.bf16.msra.mxu0 0
        %926 = vmatprep.subr.bf16.mxu0 0
        %927 = vmatpush1.bf16.msra.mxu0 0
        %928 = vmatprep.subr.bf16.mxu0 0
        %929 = vmatpush1.bf16.msra.mxu0 0
        %930 = vmatprep.subr.bf16.mxu0 0
        %931 = vmatpush1.bf16.msra.mxu0 0
        %932 = vmatprep.subr.bf16.mxu0 0
        %933 = vmatpush1.bf16.msra.mxu0 0
        %934 = vmatprep.subr.bf16.mxu0 0
        %935 = vmatpush1.bf16.msra.mxu0 0
        %936 = vmatprep.subr.bf16.mxu0 0
        %937 = vmatpush1.bf16.msra.mxu0 0
        %938 = vmatprep.subr.bf16.mxu0 %v922
        %939 = vmatpush1.bf16.msra.mxu0 %v919
        %940 = vmatprep.subr.bf16.mxu0 0
        %941 = vmatpush2.bf16.msra.mxu0 0
        %942 = vmatprep.subr.bf16.mxu0 0
        %943 = vmatpush2.bf16.msra.mxu0 0
        %944 = vmatprep.subr.bf16.mxu0 0
        %945 = vmatpush2.bf16.msra.mxu0 0
        %946 = vmatprep.subr.bf16.mxu0 0
        %947 = vmatpush2.bf16.msra.mxu0 0
        %948 = vmatprep.subr.bf16.mxu0 0
        %949 = vmatpush2.bf16.msra.mxu0 0
        %950 = vmatprep.subr.bf16.mxu0 0
        %951 = vmatpush2.bf16.msra.mxu0 0
        %952 = vmatprep.subr.bf16.mxu0 0
        %953 = vmatpush2.bf16.msra.mxu0 0
        %954 = vmatprep.subr.bf16.mxu0 0
        %955 = vmatpush2.bf16.msra.mxu0 0
        %956 = vmatprep.mubr.bf16.mxu0 0
        %957 = vmatmul.mubr.bf16.gmra.mxu0 %v916
        %v958 = vpop.f32.mrf.mxu0
        %v959 = vadd.f32 0.0, %v958
        %v960 = vpop.f32.mrf.mxu0
        %v961 = vadd.f32 0.0, %v960
        %v962 = vpop.f32.mrf.mxu0
        %v963 = vpop.f32.mrf.mxu0
        %964 = vdwg.mxu0
        %v965 = vadd.f32 %v909, %v959
        %v966 = vadd.f32 %v910, %v961
        %967 = vrot.lane.b32.xlu0 %v599, 127
        %v968 = vpop.permute.xlu0 %967
        %969 = vrot.lane.b32.xlu0 %v600, 127
        %v970 = vpop.permute.xlu0 %969
        %vm971 = vcmp.lt.s32.totalorder %v606, 127
        %v972 = vsel %vm971, %v968, %v970
        %v973 = vsel %vm971, %v970, %v968
        %s974 = scalar_lea.vmem %s1, 10
        %v975 = vld [vmem:[%s974] sm:$0x3]
        %v977 = vlaneseq
        %v978 = vshrl.u32 %v977, 7
        %v979 = vsub.s32 0, %v978
        %v980 = vrot.slane %v975, %v979
        %v981 = vlaneseq
        %v982 = vshrl.u32 %v981, 7
        %v983 = vsub.s32 1, %v982
        %v984 = vrot.slane %v975, %v983
        %v987 = vmul.f32 %v972, %v980
        %v988 = vmul.f32 %v973, %v984
        %s989 = scalar_lea.vmem %s3, 10
        %v990 = vld [vmem:[%s989] sm:$0x3]
        %v991 = vpack.c.bf16 %v987, %v987
        %v992 = vpack.c.bf16 %v988, %v988
        %v994 = vsel %vm653, %v990, 0
        %v997 = vsel %vm657, %v991, 0
        %v1000 = vsel %vm657, %v992, 0
        %1002 = vmatprep.subr.bf16.mxu0 0
        %1003 = vmatpush1.bf16.msra.mxu0 0
        %1004 = vmatprep.subr.bf16.mxu0 0
        %1005 = vmatpush1.bf16.msra.mxu0 0
        %1006 = vmatprep.subr.bf16.mxu0 0
        %1007 = vmatpush1.bf16.msra.mxu0 0
        %1008 = vmatprep.subr.bf16.mxu0 0
        %1009 = vmatpush1.bf16.msra.mxu0 0
        %1010 = vmatprep.subr.bf16.mxu0 0
        %1011 = vmatpush1.bf16.msra.mxu0 0
        %1012 = vmatprep.subr.bf16.mxu0 0
        %1013 = vmatpush1.bf16.msra.mxu0 0
        %1014 = vmatprep.subr.bf16.mxu0 0
        %1015 = vmatpush1.bf16.msra.mxu0 0
        %1016 = vmatprep.subr.bf16.mxu0 %v1000
        %1017 = vmatpush1.bf16.msra.mxu0 %v997
        %1018 = vmatprep.subr.bf16.mxu0 0
        %1019 = vmatpush2.bf16.msra.mxu0 0
        %1020 = vmatprep.subr.bf16.mxu0 0
        %1021 = vmatpush2.bf16.msra.mxu0 0
        %1022 = vmatprep.subr.bf16.mxu0 0
        %1023 = vmatpush2.bf16.msra.mxu0 0
        %1024 = vmatprep.subr.bf16.mxu0 0
        %1025 = vmatpush2.bf16.msra.mxu0 0
        %1026 = vmatprep.subr.bf16.mxu0 0
        %1027 = vmatpush2.bf16.msra.mxu0 0
        %1028 = vmatprep.subr.bf16.mxu0 0
        %1029 = vmatpush2.bf16.msra.mxu0 0
        %1030 = vmatprep.subr.bf16.mxu0 0
        %1031 = vmatpush2.bf16.msra.mxu0 0
        %1032 = vmatprep.subr.bf16.mxu0 0
        %1033 = vmatpush2.bf16.msra.mxu0 0
        %1034 = vmatprep.mubr.bf16.mxu0 0
        %1035 = vmatmul.mubr.bf16.gmra.mxu0 %v994
        %v1036 = vpop.f32.mrf.mxu0
        %v1037 = vadd.f32 0.0, %v1036
        %v1038 = vpop.f32.mrf.mxu0
        %v1039 = vadd.f32 0.0, %v1038
        %v1040 = vpop.f32.mrf.mxu0
        %v1041 = vpop.f32.mrf.mxu0
        %1042 = vdwg.mxu0
        %v1043 = vadd.f32 %v965, %v1037
        %v1044 = vadd.f32 %v966, %v1039
        %1045 = vrot.lane.b32.xlu0 %v599, 113
        %v1046 = vpop.permute.xlu0 %1045
        %1047 = vrot.lane.b32.xlu0 %v600, 113
        %v1048 = vpop.permute.xlu0 %1047
        %vm1049 = vcmp.lt.s32.totalorder %v606, 113
        %v1050 = vsel %vm1049, %v1046, %v1048
        %v1051 = vsel %vm1049, %v1048, %v1046
        %s1052 = scalar_lea.vmem %s1, 12
        %v1053 = vld [vmem:[%s1052] sm:$0x3]
        %v1055 = vlaneseq
        %v1056 = vshrl.u32 %v1055, 7
        %v1057 = vsub.s32 0, %v1056
        %v1058 = vrot.slane %v1053, %v1057
        %v1059 = vlaneseq
        %v1060 = vshrl.u32 %v1059, 7
        %v1061 = vsub.s32 1, %v1060
        %v1062 = vrot.slane %v1053, %v1061
        %v1065 = vmul.f32 %v1050, %v1058
        %v1066 = vmul.f32 %v1051, %v1062
        %s1067 = scalar_lea.vmem %s3, 12
        %v1068 = vld [vmem:[%s1067] sm:$0x3]
        %v1069 = vpack.c.bf16 %v1065, %v1065
        %v1070 = vpack.c.bf16 %v1066, %v1066
        %v1072 = vsel %vm653, %v1068, 0
        %v1075 = vsel %vm657, %v1069, 0
        %v1078 = vsel %vm657, %v1070, 0
        %1080 = vmatprep.subr.bf16.mxu0 0
        %1081 = vmatpush1.bf16.msra.mxu0 0
        %1082 = vmatprep.subr.bf16.mxu0 0
        %1083 = vmatpush1.bf16.msra.mxu0 0
        %1084 = vmatprep.subr.bf16.mxu0 0
        %1085 = vmatpush1.bf16.msra.mxu0 0
        %1086 = vmatprep.subr.bf16.mxu0 0
        %1087 = vmatpush1.bf16.msra.mxu0 0
        %1088 = vmatprep.subr.bf16.mxu0 0
        %1089 = vmatpush1.bf16.msra.mxu0 0
        %1090 = vmatprep.subr.bf16.mxu0 0
        %1091 = vmatpush1.bf16.msra.mxu0 0
        %1092 = vmatprep.subr.bf16.mxu0 0
        %1093 = vmatpush1.bf16.msra.mxu0 0
        %1094 = vmatprep.subr.bf16.mxu0 %v1078
        %1095 = vmatpush1.bf16.msra.mxu0 %v1075
        %1096 = vmatprep.subr.bf16.mxu0 0
        %1097 = vmatpush2.bf16.msra.mxu0 0
        %1098 = vmatprep.subr.bf16.mxu0 0
        %1099 = vmatpush2.bf16.msra.mxu0 0
        %1100 = vmatprep.subr.bf16.mxu0 0
        %1101 = vmatpush2.bf16.msra.mxu0 0
        %1102 = vmatprep.subr.bf16.mxu0 0
        %1103 = vmatpush2.bf16.msra.mxu0 0
        %1104 = vmatprep.subr.bf16.mxu0 0
        %1105 = vmatpush2.bf16.msra.mxu0 0
        %1106 = vmatprep.subr.bf16.mxu0 0
        %1107 = vmatpush2.bf16.msra.mxu0 0
        %1108 = vmatprep.subr.bf16.mxu0 0
        %1109 = vmatpush2.bf16.msra.mxu0 0
        %1110 = vmatprep.subr.bf16.mxu0 0
        %1111 = vmatpush2.bf16.msra.mxu0 0
        %1112 = vmatprep.mubr.bf16.mxu0 0
        %1113 = vmatmul.mubr.bf16.gmra.mxu0 %v1072
        %v1114 = vpop.f32.mrf.mxu0
        %v1115 = vadd.f32 0.0, %v1114
        %v1116 = vpop.f32.mrf.mxu0
        %v1117 = vadd.f32 0.0, %v1116
        %v1118 = vpop.f32.mrf.mxu0
        %v1119 = vpop.f32.mrf.mxu0
        %1120 = vdwg.mxu0
        %v1121 = vadd.f32 %v1043, %v1115
        %v1122 = vadd.f32 %v1044, %v1117
        %1123 = vrot.lane.b32.xlu0 %v599, 112
        %v1124 = vpop.permute.xlu0 %1123
        %1125 = vrot.lane.b32.xlu0 %v600, 112
        %v1126 = vpop.permute.xlu0 %1125
        %vm1127 = vcmp.lt.s32.totalorder %v606, 112
        %v1128 = vsel %vm1127, %v1124, %v1126
        %v1129 = vsel %vm1127, %v1126, %v1124
        %s1130 = scalar_lea.vmem %s1, 14
        %v1131 = vld [vmem:[%s1130] sm:$0x3]
        %v1133 = vlaneseq
        %v1134 = vshrl.u32 %v1133, 7
        %v1135 = vsub.s32 0, %v1134
        %v1136 = vrot.slane %v1131, %v1135
        %v1137 = vlaneseq
        %v1138 = vshrl.u32 %v1137, 7
        %v1139 = vsub.s32 1, %v1138
        %v1140 = vrot.slane %v1131, %v1139
        %v1143 = vmul.f32 %v1128, %v1136
        %v1144 = vmul.f32 %v1129, %v1140
        %s1145 = scalar_lea.vmem %s3, 14
        %v1146 = vld [vmem:[%s1145] sm:$0x3]
        %v1147 = vpack.c.bf16 %v1143, %v1143
        %v1148 = vpack.c.bf16 %v1144, %v1144
        %v1150 = vsel %vm653, %v1146, 0
        %v1153 = vsel %vm657, %v1147, 0
        %v1156 = vsel %vm657, %v1148, 0
        %1158 = vmatprep.subr.bf16.mxu0 0
        %1159 = vmatpush1.bf16.msra.mxu0 0
        %1160 = vmatprep.subr.bf16.mxu0 0
        %1161 = vmatpush1.bf16.msra.mxu0 0
        %1162 = vmatprep.subr.bf16.mxu0 0
        %1163 = vmatpush1.bf16.msra.mxu0 0
        %1164 = vmatprep.subr.bf16.mxu0 0
        %1165 = vmatpush1.bf16.msra.mxu0 0
        %1166 = vmatprep.subr.bf16.mxu0 0
        %1167 = vmatpush1.bf16.msra.mxu0 0
        %1168 = vmatprep.subr.bf16.mxu0 0
        %1169 = vmatpush1.bf16.msra.mxu0 0
        %1170 = vmatprep.subr.bf16.mxu0 0
        %1171 = vmatpush1.bf16.msra.mxu0 0
        %1172 = vmatprep.subr.bf16.mxu0 %v1156
        %1173 = vmatpush1.bf16.msra.mxu0 %v1153
        %1174 = vmatprep.subr.bf16.mxu0 0
        %1175 = vmatpush2.bf16.msra.mxu0 0
        %1176 = vmatprep.subr.bf16.mxu0 0
        %1177 = vmatpush2.bf16.msra.mxu0 0
        %1178 = vmatprep.subr.bf16.mxu0 0
        %1179 = vmatpush2.bf16.msra.mxu0 0
        %1180 = vmatprep.subr.bf16.mxu0 0
        %1181 = vmatpush2.bf16.msra.mxu0 0
        %1182 = vmatprep.subr.bf16.mxu0 0
        %1183 = vmatpush2.bf16.msra.mxu0 0
        %1184 = vmatprep.subr.bf16.mxu0 0
        %1185 = vmatpush2.bf16.msra.mxu0 0
        %1186 = vmatprep.subr.bf16.mxu0 0
        %1187 = vmatpush2.bf16.msra.mxu0 0
        %1188 = vmatprep.subr.bf16.mxu0 0
        %1189 = vmatpush2.bf16.msra.mxu0 0
        %1190 = vmatprep.mubr.bf16.mxu0 0
        %1191 = vmatmul.mubr.bf16.gmra.mxu0 %v1150
        %v1192 = vpop.f32.mrf.mxu0
        %v1193 = vadd.f32 0.0, %v1192
        %v1194 = vpop.f32.mrf.mxu0
        %v1195 = vadd.f32 0.0, %v1194
        %v1196 = vpop.f32.mrf.mxu0
        %v1197 = vpop.f32.mrf.mxu0
        %1198 = vdwg.mxu0
        %v1199 = vadd.f32 %v1121, %v1193
        %v1200 = vadd.f32 %v1122, %v1195
        %1201 = vrot.lane.b32.xlu0 %v599, 111
        %v1202 = vpop.permute.xlu0 %1201
        %1203 = vrot.lane.b32.xlu0 %v600, 111
        %v1204 = vpop.permute.xlu0 %1203
        %vm1205 = vcmp.lt.s32.totalorder %v606, 111
        %v1206 = vsel %vm1205, %v1202, %v1204
        %v1207 = vsel %vm1205, %v1204, %v1202
        %s1208 = scalar_lea.vmem %s1, 16
        %v1209 = vld [vmem:[%s1208] sm:$0x3]
        %v1211 = vlaneseq
        %v1212 = vshrl.u32 %v1211, 7
        %v1213 = vsub.s32 0, %v1212
        %v1214 = vrot.slane %v1209, %v1213
        %v1215 = vlaneseq
        %v1216 = vshrl.u32 %v1215, 7
        %v1217 = vsub.s32 1, %v1216
        %v1218 = vrot.slane %v1209, %v1217
        %v1221 = vmul.f32 %v1206, %v1214
        %v1222 = vmul.f32 %v1207, %v1218
        %s1223 = scalar_lea.vmem %s3, 16
        %v1224 = vld [vmem:[%s1223] sm:$0x3]
        %v1225 = vpack.c.bf16 %v1221, %v1221
        %v1226 = vpack.c.bf16 %v1222, %v1222
        %v1228 = vsel %vm653, %v1224, 0
        %v1231 = vsel %vm657, %v1225, 0
        %v1234 = vsel %vm657, %v1226, 0
        %1236 = vmatprep.subr.bf16.mxu0 0
        %1237 = vmatpush1.bf16.msra.mxu0 0
        %1238 = vmatprep.subr.bf16.mxu0 0
        %1239 = vmatpush1.bf16.msra.mxu0 0
        %1240 = vmatprep.subr.bf16.mxu0 0
        %1241 = vmatpush1.bf16.msra.mxu0 0
        %1242 = vmatprep.subr.bf16.mxu0 0
        %1243 = vmatpush1.bf16.msra.mxu0 0
        %1244 = vmatprep.subr.bf16.mxu0 0
        %1245 = vmatpush1.bf16.msra.mxu0 0
        %1246 = vmatprep.subr.bf16.mxu0 0
        %1247 = vmatpush1.bf16.msra.mxu0 0
        %1248 = vmatprep.subr.bf16.mxu0 0
        %1249 = vmatpush1.bf16.msra.mxu0 0
        %1250 = vmatprep.subr.bf16.mxu0 %v1234
        %1251 = vmatpush1.bf16.msra.mxu0 %v1231
        %1252 = vmatprep.subr.bf16.mxu0 0
        %1253 = vmatpush2.bf16.msra.mxu0 0
        %1254 = vmatprep.subr.bf16.mxu0 0
        %1255 = vmatpush2.bf16.msra.mxu0 0
        %1256 = vmatprep.subr.bf16.mxu0 0
        %1257 = vmatpush2.bf16.msra.mxu0 0
        %1258 = vmatprep.subr.bf16.mxu0 0
        %1259 = vmatpush2.bf16.msra.mxu0 0
        %1260 = vmatprep.subr.bf16.mxu0 0
        %1261 = vmatpush2.bf16.msra.mxu0 0
        %1262 = vmatprep.subr.bf16.mxu0 0
        %1263 = vmatpush2.bf16.msra.mxu0 0
        %1264 = vmatprep.subr.bf16.mxu0 0
        %1265 = vmatpush2.bf16.msra.mxu0 0
        %1266 = vmatprep.subr.bf16.mxu0 0
        %1267 = vmatpush2.bf16.msra.mxu0 0
        %1268 = vmatprep.mubr.bf16.mxu0 0
        %1269 = vmatmul.mubr.bf16.gmra.mxu0 %v1228
        %v1270 = vpop.f32.mrf.mxu0
        %v1271 = vadd.f32 0.0, %v1270
        %v1272 = vpop.f32.mrf.mxu0
        %v1273 = vadd.f32 0.0, %v1272
        %v1274 = vpop.f32.mrf.mxu0
        %v1275 = vpop.f32.mrf.mxu0
        %1276 = vdwg.mxu0
        %v1277 = vadd.f32 %v1199, %v1271
        %v1278 = vadd.f32 %v1200, %v1273
        %v1279 = vld [vmem:[%s10] sm:$0xf]
        %1281 = vset.pattern.permute.xlu0 0
        %1282 = vperm.xlu0 %1281, %v1279
        %v1283 = vpop.permute.xlu0 %1282
        %v1285 = vadd.f32 %v1277, %v1283
        %v1286 = vadd.f32 %v1278, %v1283
        %v1287 = vsub.f32 0.0, %v1285
        %v1288 = vsub.f32 0.0, %v1286
        %v1289 = vmul.f32 %v1287, 1.442695
        %v1290 = vpow.pop %v1289
        %v1291 = vmul.f32 %v1288, 1.442695
        %v1292 = vpow.pop %v1291
        %v1293 = vadd.f32 %v1290, 1.0
        %v1294 = vadd.f32 %v1292, 1.0
        %v1295 = vrcp.pop %v1293
        %v1296 = vrcp.pop %v1294
        %v1297 = vmul.f32 %v1285, %v1295
        %v1298 = vmul.f32 %v1286, %v1296
        %1299 = vrot.lane.b32.xlu0 %v1297, 17
        %v1300 = vpop.permute.xlu0 %1299
        %1301 = vrot.lane.b32.xlu0 %v1298, 17
        %v1302 = vpop.permute.xlu0 %1301
        %v1303 = vsel %vm607, %v1300, %v1302
        %v1304 = vsel %vm607, %v1302, %v1300
        %v1305 = vmul.f32 %v1304, %v615
        %v1306 = vmul.f32 %v1303, %v619
        %v1307 = vld [vmem:[%s4] sm:$0x3]
        %v1308 = vpack.c.bf16 %v1305, %v1305
        %v1309 = vpack.c.bf16 %v1306, %v1306
        %1310 = vrot.lane.b32.xlu0 %v1297, 16
        %v1311 = vpop.permute.xlu0 %1310
        %1312 = vrot.lane.b32.xlu0 %v1298, 16
        %v1313 = vpop.permute.xlu0 %1312
        %v1314 = vsel %vm631, %v1311, %v1313
        %v1315 = vsel %vm631, %v1313, %v1311
        %v1316 = vmul.f32 %v1315, %v640
        %v1317 = vmul.f32 %v1314, %v644
        %s1318 = scalar_lea.vmem %s4, 2
        %v1319 = vld [vmem:[%s1318] sm:$0x3]
        %v1320 = vpack.c.bf16 %v1316, %v1316
        %v1321 = vpack.c.bf16 %v1317, %v1317
        %v1323 = vsel %vm523, %v1319, 0
        %v1326 = vsel %vm527, %v1320, 0
        %v1329 = vsel %vm527, %v1321, 0
        %1331 = vmatprep.subr.bf16.mxu0 0
        %1332 = vmatpush1.bf16.msra.mxu0 0
        %1333 = vmatprep.subr.bf16.mxu0 0
        %1334 = vmatpush1.bf16.msra.mxu0 0
        %1335 = vmatprep.subr.bf16.mxu0 0
        %1336 = vmatpush1.bf16.msra.mxu0 0
        %1337 = vmatprep.subr.bf16.mxu0 0
        %1338 = vmatpush1.bf16.msra.mxu0 0
        %1339 = vmatprep.subr.bf16.mxu0 0
        %1340 = vmatpush1.bf16.msra.mxu0 0
        %1341 = vmatprep.subr.bf16.mxu0 0
        %1342 = vmatpush1.bf16.msra.mxu0 0
        %1343 = vmatprep.subr.bf16.mxu0 0
        %1344 = vmatpush1.bf16.msra.mxu0 0
        %1345 = vmatprep.subr.bf16.mxu0 %v1329
        %1346 = vmatpush1.bf16.msra.mxu0 %v1326
        %1347 = vmatprep.subr.bf16.mxu0 0
        %1348 = vmatpush2.bf16.msra.mxu0 0
        %1349 = vmatprep.subr.bf16.mxu0 0
        %1350 = vmatpush2.bf16.msra.mxu0 0
        %1351 = vmatprep.subr.bf16.mxu0 0
        %1352 = vmatpush2.bf16.msra.mxu0 0
        %1353 = vmatprep.subr.bf16.mxu0 0
        %1354 = vmatpush2.bf16.msra.mxu0 0
        %1355 = vmatprep.subr.bf16.mxu0 0
        %1356 = vmatpush2.bf16.msra.mxu0 0
        %1357 = vmatprep.subr.bf16.mxu0 0
        %1358 = vmatpush2.bf16.msra.mxu0 0
        %1359 = vmatprep.subr.bf16.mxu0 0
        %1360 = vmatpush2.bf16.msra.mxu0 0
        %1361 = vmatprep.subr.bf16.mxu0 0
        %1362 = vmatpush2.bf16.msra.mxu0 0
        %1363 = vmatprep.mubr.bf16.mxu0 0
        %1364 = vmatmul.mubr.bf16.gmra.mxu0 %v1323
        %v1365 = vpop.f32.mrf.mxu0
        %v1366 = vadd.f32 0.0, %v1365
        %v1367 = vpop.f32.mrf.mxu0
        %v1368 = vadd.f32 0.0, %v1367
        %v1369 = vpop.f32.mrf.mxu0
        %v1370 = vpop.f32.mrf.mxu0
        %1371 = vdwg.mxu0
        %v1373 = vsel %vm523, %v1307, 0
        %v1376 = vsel %vm527, %v1308, 0
        %v1379 = vsel %vm527, %v1309, 0
        %1381 = vmatprep.subr.bf16.mxu0 0
        %1382 = vmatpush1.bf16.msra.mxu0 0
        %1383 = vmatprep.subr.bf16.mxu0 0
        %1384 = vmatpush1.bf16.msra.mxu0 0
        %1385 = vmatprep.subr.bf16.mxu0 0
        %1386 = vmatpush1.bf16.msra.mxu0 0
        %1387 = vmatprep.subr.bf16.mxu0 0
        %1388 = vmatpush1.bf16.msra.mxu0 0
        %1389 = vmatprep.subr.bf16.mxu0 0
        %1390 = vmatpush1.bf16.msra.mxu0 0
        %1391 = vmatprep.subr.bf16.mxu0 0
        %1392 = vmatpush1.bf16.msra.mxu0 0
        %1393 = vmatprep.subr.bf16.mxu0 0
        %1394 = vmatpush1.bf16.msra.mxu0 0
        %1395 = vmatprep.subr.bf16.mxu0 %v1379
        %1396 = vmatpush1.bf16.msra.mxu0 %v1376
        %1397 = vmatprep.subr.bf16.mxu0 0
        %1398 = vmatpush2.bf16.msra.mxu0 0
        %1399 = vmatprep.subr.bf16.mxu0 0
        %1400 = vmatpush2.bf16.msra.mxu0 0
        %1401 = vmatprep.subr.bf16.mxu0 0
        %1402 = vmatpush2.bf16.msra.mxu0 0
        %1403 = vmatprep.subr.bf16.mxu0 0
        %1404 = vmatpush2.bf16.msra.mxu0 0
        %1405 = vmatprep.subr.bf16.mxu0 0
        %1406 = vmatpush2.bf16.msra.mxu0 0
        %1407 = vmatprep.subr.bf16.mxu0 0
        %1408 = vmatpush2.bf16.msra.mxu0 0
        %1409 = vmatprep.subr.bf16.mxu0 0
        %1410 = vmatpush2.bf16.msra.mxu0 0
        %1411 = vmatprep.subr.bf16.mxu0 0
        %1412 = vmatpush2.bf16.msra.mxu0 0
        %1413 = vmatprep.mubr.bf16.mxu0 0
        %1414 = vmatmul.mubr.bf16.gmra.mxu0 %v1373
        %v1415 = vpop.f32.mrf.mxu0
        %v1416 = vadd.f32 %v1366, %v1415
        %v1417 = vpop.f32.mrf.mxu0
        %v1418 = vadd.f32 %v1368, %v1417
        %v1419 = vpop.f32.mrf.mxu0
        %v1420 = vpop.f32.mrf.mxu0
        %1421 = vdwg.mxu0
        %1422 = vrot.lane.b32.xlu0 %v1297, 15
        %v1423 = vpop.permute.xlu0 %1422
        %1424 = vrot.lane.b32.xlu0 %v1298, 15
        %v1425 = vpop.permute.xlu0 %1424
        %v1426 = vsel %vm759, %v1423, %v1425
        %v1427 = vsel %vm759, %v1425, %v1423
        %v1428 = vmul.f32 %v1427, %v768
        %v1429 = vmul.f32 %v1426, %v772
        %s1430 = scalar_lea.vmem %s4, 4
        %v1431 = vld [vmem:[%s1430] sm:$0x3]
        %v1432 = vpack.c.bf16 %v1428, %v1428
        %v1433 = vpack.c.bf16 %v1429, %v1429
        %v1435 = vsel %vm523, %v1431, 0
        %v1438 = vsel %vm527, %v1432, 0
        %v1441 = vsel %vm527, %v1433, 0
        %1443 = vmatprep.subr.bf16.mxu0 0
        %1444 = vmatpush1.bf16.msra.mxu0 0
        %1445 = vmatprep.subr.bf16.mxu0 0
        %1446 = vmatpush1.bf16.msra.mxu0 0
        %1447 = vmatprep.subr.bf16.mxu0 0
        %1448 = vmatpush1.bf16.msra.mxu0 0
        %1449 = vmatprep.subr.bf16.mxu0 0
        %1450 = vmatpush1.bf16.msra.mxu0 0
        %1451 = vmatprep.subr.bf16.mxu0 0
        %1452 = vmatpush1.bf16.msra.mxu0 0
        %1453 = vmatprep.subr.bf16.mxu0 0
        %1454 = vmatpush1.bf16.msra.mxu0 0
        %1455 = vmatprep.subr.bf16.mxu0 0
        %1456 = vmatpush1.bf16.msra.mxu0 0
        %1457 = vmatprep.subr.bf16.mxu0 %v1441
        %1458 = vmatpush1.bf16.msra.mxu0 %v1438
        %1459 = vmatprep.subr.bf16.mxu0 0
        %1460 = vmatpush2.bf16.msra.mxu0 0
        %1461 = vmatprep.subr.bf16.mxu0 0
        %1462 = vmatpush2.bf16.msra.mxu0 0
        %1463 = vmatprep.subr.bf16.mxu0 0
        %1464 = vmatpush2.bf16.msra.mxu0 0
        %1465 = vmatprep.subr.bf16.mxu0 0
        %1466 = vmatpush2.bf16.msra.mxu0 0
        %1467 = vmatprep.subr.bf16.mxu0 0
        %1468 = vmatpush2.bf16.msra.mxu0 0
        %1469 = vmatprep.subr.bf16.mxu0 0
        %1470 = vmatpush2.bf16.msra.mxu0 0
        %1471 = vmatprep.subr.bf16.mxu0 0
        %1472 = vmatpush2.bf16.msra.mxu0 0
        %1473 = vmatprep.subr.bf16.mxu0 0
        %1474 = vmatpush2.bf16.msra.mxu0 0
        %1475 = vmatprep.mubr.bf16.mxu0 0
        %1476 = vmatmul.mubr.bf16.gmra.mxu0 %v1435
        %v1477 = vpop.f32.mrf.mxu0
        %v1478 = vadd.f32 0.0, %v1477
        %v1479 = vpop.f32.mrf.mxu0
        %v1480 = vadd.f32 0.0, %v1479
        %v1481 = vpop.f32.mrf.mxu0
        %v1482 = vpop.f32.mrf.mxu0
        %1483 = vdwg.mxu0
        %v1484 = vadd.f32 %v1416, %v1478
        %v1485 = vadd.f32 %v1418, %v1480
        %1486 = vrot.lane.b32.xlu0 %v1297, 1
        %v1487 = vpop.permute.xlu0 %1486
        %1488 = vrot.lane.b32.xlu0 %v1298, 1
        %v1489 = vpop.permute.xlu0 %1488
        %v1490 = vsel %vm837, %v1487, %v1489
        %v1491 = vsel %vm837, %v1489, %v1487
        %v1492 = vmul.f32 %v1491, %v846
        %v1493 = vmul.f32 %v1490, %v850
        %s1494 = scalar_lea.vmem %s4, 6
        %v1495 = vld [vmem:[%s1494] sm:$0x3]
        %v1496 = vpack.c.bf16 %v1492, %v1492
        %v1497 = vpack.c.bf16 %v1493, %v1493
        %v1499 = vsel %vm523, %v1495, 0
        %v1502 = vsel %vm527, %v1496, 0
        %v1505 = vsel %vm527, %v1497, 0
        %1507 = vmatprep.subr.bf16.mxu0 0
        %1508 = vmatpush1.bf16.msra.mxu0 0
        %1509 = vmatprep.subr.bf16.mxu0 0
        %1510 = vmatpush1.bf16.msra.mxu0 0
        %1511 = vmatprep.subr.bf16.mxu0 0
        %1512 = vmatpush1.bf16.msra.mxu0 0
        %1513 = vmatprep.subr.bf16.mxu0 0
        %1514 = vmatpush1.bf16.msra.mxu0 0
        %1515 = vmatprep.subr.bf16.mxu0 0
        %1516 = vmatpush1.bf16.msra.mxu0 0
        %1517 = vmatprep.subr.bf16.mxu0 0
        %1518 = vmatpush1.bf16.msra.mxu0 0
        %1519 = vmatprep.subr.bf16.mxu0 0
        %1520 = vmatpush1.bf16.msra.mxu0 0
        %1521 = vmatprep.subr.bf16.mxu0 %v1505
        %1522 = vmatpush1.bf16.msra.mxu0 %v1502
        %1523 = vmatprep.subr.bf16.mxu0 0
        %1524 = vmatpush2.bf16.msra.mxu0 0
        %1525 = vmatprep.subr.bf16.mxu0 0
        %1526 = vmatpush2.bf16.msra.mxu0 0
        %1527 = vmatprep.subr.bf16.mxu0 0
        %1528 = vmatpush2.bf16.msra.mxu0 0
        %1529 = vmatprep.subr.bf16.mxu0 0
        %1530 = vmatpush2.bf16.msra.mxu0 0
        %1531 = vmatprep.subr.bf16.mxu0 0
        %1532 = vmatpush2.bf16.msra.mxu0 0
        %1533 = vmatprep.subr.bf16.mxu0 0
        %1534 = vmatpush2.bf16.msra.mxu0 0
        %1535 = vmatprep.subr.bf16.mxu0 0
        %1536 = vmatpush2.bf16.msra.mxu0 0
        %1537 = vmatprep.subr.bf16.mxu0 0
        %1538 = vmatpush2.bf16.msra.mxu0 0
        %1539 = vmatprep.mubr.bf16.mxu0 0
        %1540 = vmatmul.mubr.bf16.gmra.mxu0 %v1499
        %v1541 = vpop.f32.mrf.mxu0
        %v1542 = vadd.f32 0.0, %v1541
        %v1543 = vpop.f32.mrf.mxu0
        %v1544 = vadd.f32 0.0, %v1543
        %v1545 = vpop.f32.mrf.mxu0
        %v1546 = vpop.f32.mrf.mxu0
        %1547 = vdwg.mxu0
        %v1548 = vadd.f32 %v1484, %v1542
        %v1549 = vadd.f32 %v1485, %v1544
        %s1550 = scalar_lea.vmem %s4, 8
        %v1551 = vld [vmem:[%s1550] sm:$0x3]
        %v1552 = vpack.c.bf16 %v1297, %v1297
        %v1553 = vpack.c.bf16 %v1298, %v1298
        %v1555 = vsel %vm523, %v1551, 0
        %v1558 = vsel %vm527, %v1552, 0
        %v1561 = vsel %vm527, %v1553, 0
        %1563 = vmatprep.subr.bf16.mxu0 0
        %1564 = vmatpush1.bf16.msra.mxu0 0
        %1565 = vmatprep.subr.bf16.mxu0 0
        %1566 = vmatpush1.bf16.msra.mxu0 0
        %1567 = vmatprep.subr.bf16.mxu0 0
        %1568 = vmatpush1.bf16.msra.mxu0 0
        %1569 = vmatprep.subr.bf16.mxu0 0
        %1570 = vmatpush1.bf16.msra.mxu0 0
        %1571 = vmatprep.subr.bf16.mxu0 0
        %1572 = vmatpush1.bf16.msra.mxu0 0
        %1573 = vmatprep.subr.bf16.mxu0 0
        %1574 = vmatpush1.bf16.msra.mxu0 0
        %1575 = vmatprep.subr.bf16.mxu0 0
        %1576 = vmatpush1.bf16.msra.mxu0 0
        %1577 = vmatprep.subr.bf16.mxu0 %v1561
        %1578 = vmatpush1.bf16.msra.mxu0 %v1558
        %1579 = vmatprep.subr.bf16.mxu0 0
        %1580 = vmatpush2.bf16.msra.mxu0 0
        %1581 = vmatprep.subr.bf16.mxu0 0
        %1582 = vmatpush2.bf16.msra.mxu0 0
        %1583 = vmatprep.subr.bf16.mxu0 0
        %1584 = vmatpush2.bf16.msra.mxu0 0
        %1585 = vmatprep.subr.bf16.mxu0 0
        %1586 = vmatpush2.bf16.msra.mxu0 0
        %1587 = vmatprep.subr.bf16.mxu0 0
        %1588 = vmatpush2.bf16.msra.mxu0 0
        %1589 = vmatprep.subr.bf16.mxu0 0
        %1590 = vmatpush2.bf16.msra.mxu0 0
        %1591 = vmatprep.subr.bf16.mxu0 0
        %1592 = vmatpush2.bf16.msra.mxu0 0
        %1593 = vmatprep.subr.bf16.mxu0 0
        %1594 = vmatpush2.bf16.msra.mxu0 0
        %1595 = vmatprep.mubr.bf16.mxu0 0
        %1596 = vmatmul.mubr.bf16.gmra.mxu0 %v1555
        %v1597 = vpop.f32.mrf.mxu0
        %v1598 = vadd.f32 0.0, %v1597
        %v1599 = vpop.f32.mrf.mxu0
        %v1600 = vadd.f32 0.0, %v1599
        %v1601 = vpop.f32.mrf.mxu0
        %v1602 = vpop.f32.mrf.mxu0
        %1603 = vdwg.mxu0
        %v1604 = vadd.f32 %v1548, %v1598
        %v1605 = vadd.f32 %v1549, %v1600
        %1606 = vrot.lane.b32.xlu0 %v1297, 127
        %v1607 = vpop.permute.xlu0 %1606
        %1608 = vrot.lane.b32.xlu0 %v1298, 127
        %v1609 = vpop.permute.xlu0 %1608
        %v1610 = vsel %vm971, %v1607, %v1609
        %v1611 = vsel %vm971, %v1609, %v1607
        %v1612 = vmul.f32 %v1610, %v980
        %v1613 = vmul.f32 %v1611, %v984
        %s1614 = scalar_lea.vmem %s4, 10
        %v1615 = vld [vmem:[%s1614] sm:$0x3]
        %v1616 = vpack.c.bf16 %v1612, %v1612
        %v1617 = vpack.c.bf16 %v1613, %v1613
        %v1619 = vsel %vm523, %v1615, 0
        %v1622 = vsel %vm527, %v1616, 0
        %v1625 = vsel %vm527, %v1617, 0
        %1627 = vmatprep.subr.bf16.mxu0 0
        %1628 = vmatpush1.bf16.msra.mxu0 0
        %1629 = vmatprep.subr.bf16.mxu0 0
        %1630 = vmatpush1.bf16.msra.mxu0 0
        %1631 = vmatprep.subr.bf16.mxu0 0
        %1632 = vmatpush1.bf16.msra.mxu0 0
        %1633 = vmatprep.subr.bf16.mxu0 0
        %1634 = vmatpush1.bf16.msra.mxu0 0
        %1635 = vmatprep.subr.bf16.mxu0 0
        %1636 = vmatpush1.bf16.msra.mxu0 0
        %1637 = vmatprep.subr.bf16.mxu0 0
        %1638 = vmatpush1.bf16.msra.mxu0 0
        %1639 = vmatprep.subr.bf16.mxu0 0
        %1640 = vmatpush1.bf16.msra.mxu0 0
        %1641 = vmatprep.subr.bf16.mxu0 %v1625
        %1642 = vmatpush1.bf16.msra.mxu0 %v1622
        %1643 = vmatprep.subr.bf16.mxu0 0
        %1644 = vmatpush2.bf16.msra.mxu0 0
        %1645 = vmatprep.subr.bf16.mxu0 0
        %1646 = vmatpush2.bf16.msra.mxu0 0
        %1647 = vmatprep.subr.bf16.mxu0 0
        %1648 = vmatpush2.bf16.msra.mxu0 0
        %1649 = vmatprep.subr.bf16.mxu0 0
        %1650 = vmatpush2.bf16.msra.mxu0 0
        %1651 = vmatprep.subr.bf16.mxu0 0
        %1652 = vmatpush2.bf16.msra.mxu0 0
        %1653 = vmatprep.subr.bf16.mxu0 0
        %1654 = vmatpush2.bf16.msra.mxu0 0
        %1655 = vmatprep.subr.bf16.mxu0 0
        %1656 = vmatpush2.bf16.msra.mxu0 0
        %1657 = vmatprep.subr.bf16.mxu0 0
        %1658 = vmatpush2.bf16.msra.mxu0 0
        %1659 = vmatprep.mubr.bf16.mxu0 0
        %1660 = vmatmul.mubr.bf16.gmra.mxu0 %v1619
        %v1661 = vpop.f32.mrf.mxu0
        %v1662 = vadd.f32 0.0, %v1661
        %v1663 = vpop.f32.mrf.mxu0
        %v1664 = vadd.f32 0.0, %v1663
        %v1665 = vpop.f32.mrf.mxu0
        %v1666 = vpop.f32.mrf.mxu0
        %1667 = vdwg.mxu0
        %v1668 = vadd.f32 %v1604, %v1662
        %v1669 = vadd.f32 %v1605, %v1664
        %1670 = vrot.lane.b32.xlu0 %v1297, 113
        %v1671 = vpop.permute.xlu0 %1670
        %1672 = vrot.lane.b32.xlu0 %v1298, 113
        %v1673 = vpop.permute.xlu0 %1672
        %v1674 = vsel %vm1049, %v1671, %v1673
        %v1675 = vsel %vm1049, %v1673, %v1671
        %v1676 = vmul.f32 %v1674, %v1058
        %v1677 = vmul.f32 %v1675, %v1062
        %s1678 = scalar_lea.vmem %s4, 12
        %v1679 = vld [vmem:[%s1678] sm:$0x3]
        %v1680 = vpack.c.bf16 %v1676, %v1676
        %v1681 = vpack.c.bf16 %v1677, %v1677
        %v1683 = vsel %vm523, %v1679, 0
        %v1686 = vsel %vm527, %v1680, 0
        %v1689 = vsel %vm527, %v1681, 0
        %1691 = vmatprep.subr.bf16.mxu0 0
        %1692 = vmatpush1.bf16.msra.mxu0 0
        %1693 = vmatprep.subr.bf16.mxu0 0
        %1694 = vmatpush1.bf16.msra.mxu0 0
        %1695 = vmatprep.subr.bf16.mxu0 0
        %1696 = vmatpush1.bf16.msra.mxu0 0
        %1697 = vmatprep.subr.bf16.mxu0 0
        %1698 = vmatpush1.bf16.msra.mxu0 0
        %1699 = vmatprep.subr.bf16.mxu0 0
        %1700 = vmatpush1.bf16.msra.mxu0 0
        %1701 = vmatprep.subr.bf16.mxu0 0
        %1702 = vmatpush1.bf16.msra.mxu0 0
        %1703 = vmatprep.subr.bf16.mxu0 0
        %1704 = vmatpush1.bf16.msra.mxu0 0
        %1705 = vmatprep.subr.bf16.mxu0 %v1689
        %1706 = vmatpush1.bf16.msra.mxu0 %v1686
        %1707 = vmatprep.subr.bf16.mxu0 0
        %1708 = vmatpush2.bf16.msra.mxu0 0
        %1709 = vmatprep.subr.bf16.mxu0 0
        %1710 = vmatpush2.bf16.msra.mxu0 0
        %1711 = vmatprep.subr.bf16.mxu0 0
        %1712 = vmatpush2.bf16.msra.mxu0 0
        %1713 = vmatprep.subr.bf16.mxu0 0
        %1714 = vmatpush2.bf16.msra.mxu0 0
        %1715 = vmatprep.subr.bf16.mxu0 0
        %1716 = vmatpush2.bf16.msra.mxu0 0
        %1717 = vmatprep.subr.bf16.mxu0 0
        %1718 = vmatpush2.bf16.msra.mxu0 0
        %1719 = vmatprep.subr.bf16.mxu0 0
        %1720 = vmatpush2.bf16.msra.mxu0 0
        %1721 = vmatprep.subr.bf16.mxu0 0
        %1722 = vmatpush2.bf16.msra.mxu0 0
        %1723 = vmatprep.mubr.bf16.mxu0 0
        %1724 = vmatmul.mubr.bf16.gmra.mxu0 %v1683
        %v1725 = vpop.f32.mrf.mxu0
        %v1726 = vadd.f32 0.0, %v1725
        %v1727 = vpop.f32.mrf.mxu0
        %v1728 = vadd.f32 0.0, %v1727
        %v1729 = vpop.f32.mrf.mxu0
        %v1730 = vpop.f32.mrf.mxu0
        %1731 = vdwg.mxu0
        %v1732 = vadd.f32 %v1668, %v1726
        %v1733 = vadd.f32 %v1669, %v1728
        %1734 = vrot.lane.b32.xlu0 %v1297, 112
        %v1735 = vpop.permute.xlu0 %1734
        %1736 = vrot.lane.b32.xlu0 %v1298, 112
        %v1737 = vpop.permute.xlu0 %1736
        %v1738 = vsel %vm1127, %v1735, %v1737
        %v1739 = vsel %vm1127, %v1737, %v1735
        %v1740 = vmul.f32 %v1738, %v1136
        %v1741 = vmul.f32 %v1739, %v1140
        %s1742 = scalar_lea.vmem %s4, 14
        %v1743 = vld [vmem:[%s1742] sm:$0x3]
        %v1744 = vpack.c.bf16 %v1740, %v1740
        %v1745 = vpack.c.bf16 %v1741, %v1741
        %v1747 = vsel %vm523, %v1743, 0
        %v1750 = vsel %vm527, %v1744, 0
        %v1753 = vsel %vm527, %v1745, 0
        %1755 = vmatprep.subr.bf16.mxu0 0
        %1756 = vmatpush1.bf16.msra.mxu0 0
        %1757 = vmatprep.subr.bf16.mxu0 0
        %1758 = vmatpush1.bf16.msra.mxu0 0
        %1759 = vmatprep.subr.bf16.mxu0 0
        %1760 = vmatpush1.bf16.msra.mxu0 0
        %1761 = vmatprep.subr.bf16.mxu0 0
        %1762 = vmatpush1.bf16.msra.mxu0 0
        %1763 = vmatprep.subr.bf16.mxu0 0
        %1764 = vmatpush1.bf16.msra.mxu0 0
        %1765 = vmatprep.subr.bf16.mxu0 0
        %1766 = vmatpush1.bf16.msra.mxu0 0
        %1767 = vmatprep.subr.bf16.mxu0 0
        %1768 = vmatpush1.bf16.msra.mxu0 0
        %1769 = vmatprep.subr.bf16.mxu0 %v1753
        %1770 = vmatpush1.bf16.msra.mxu0 %v1750
        %1771 = vmatprep.subr.bf16.mxu0 0
        %1772 = vmatpush2.bf16.msra.mxu0 0
        %1773 = vmatprep.subr.bf16.mxu0 0
        %1774 = vmatpush2.bf16.msra.mxu0 0
        %1775 = vmatprep.subr.bf16.mxu0 0
        %1776 = vmatpush2.bf16.msra.mxu0 0
        %1777 = vmatprep.subr.bf16.mxu0 0
        %1778 = vmatpush2.bf16.msra.mxu0 0
        %1779 = vmatprep.subr.bf16.mxu0 0
        %1780 = vmatpush2.bf16.msra.mxu0 0
        %1781 = vmatprep.subr.bf16.mxu0 0
        %1782 = vmatpush2.bf16.msra.mxu0 0
        %1783 = vmatprep.subr.bf16.mxu0 0
        %1784 = vmatpush2.bf16.msra.mxu0 0
        %1785 = vmatprep.subr.bf16.mxu0 0
        %1786 = vmatpush2.bf16.msra.mxu0 0
        %1787 = vmatprep.mubr.bf16.mxu0 0
        %1788 = vmatmul.mubr.bf16.gmra.mxu0 %v1747
        %v1789 = vpop.f32.mrf.mxu0
        %v1790 = vadd.f32 0.0, %v1789
        %v1791 = vpop.f32.mrf.mxu0
        %v1792 = vadd.f32 0.0, %v1791
        %v1793 = vpop.f32.mrf.mxu0
        %v1794 = vpop.f32.mrf.mxu0
        %1795 = vdwg.mxu0
        %v1796 = vadd.f32 %v1732, %v1790
        %v1797 = vadd.f32 %v1733, %v1792
        %1798 = vrot.lane.b32.xlu0 %v1297, 111
        %v1799 = vpop.permute.xlu0 %1798
        %1800 = vrot.lane.b32.xlu0 %v1298, 111
        %v1801 = vpop.permute.xlu0 %1800
        %v1802 = vsel %vm1205, %v1799, %v1801
        %v1803 = vsel %vm1205, %v1801, %v1799
        %v1804 = vmul.f32 %v1802, %v1214
        %v1805 = vmul.f32 %v1803, %v1218
        %s1806 = scalar_lea.vmem %s4, 16
        %v1807 = vld [vmem:[%s1806] sm:$0x3]
        %v1808 = vpack.c.bf16 %v1804, %v1804
        %v1809 = vpack.c.bf16 %v1805, %v1805
        %v1811 = vsel %vm523, %v1807, 0
        %v1814 = vsel %vm527, %v1808, 0
        %v1817 = vsel %vm527, %v1809, 0
        %1819 = vmatprep.subr.bf16.mxu0 0
        %1820 = vmatpush1.bf16.msra.mxu0 0
        %1821 = vmatprep.subr.bf16.mxu0 0
        %1822 = vmatpush1.bf16.msra.mxu0 0
        %1823 = vmatprep.subr.bf16.mxu0 0
        %1824 = vmatpush1.bf16.msra.mxu0 0
        %1825 = vmatprep.subr.bf16.mxu0 0
        %1826 = vmatpush1.bf16.msra.mxu0 0
        %1827 = vmatprep.subr.bf16.mxu0 0
        %1828 = vmatpush1.bf16.msra.mxu0 0
        %1829 = vmatprep.subr.bf16.mxu0 0
        %1830 = vmatpush1.bf16.msra.mxu0 0
        %1831 = vmatprep.subr.bf16.mxu0 0
        %1832 = vmatpush1.bf16.msra.mxu0 0
        %1833 = vmatprep.subr.bf16.mxu0 %v1817
        %1834 = vmatpush1.bf16.msra.mxu0 %v1814
        %1835 = vmatprep.subr.bf16.mxu0 0
        %1836 = vmatpush2.bf16.msra.mxu0 0
        %1837 = vmatprep.subr.bf16.mxu0 0
        %1838 = vmatpush2.bf16.msra.mxu0 0
        %1839 = vmatprep.subr.bf16.mxu0 0
        %1840 = vmatpush2.bf16.msra.mxu0 0
        %1841 = vmatprep.subr.bf16.mxu0 0
        %1842 = vmatpush2.bf16.msra.mxu0 0
        %1843 = vmatprep.subr.bf16.mxu0 0
        %1844 = vmatpush2.bf16.msra.mxu0 0
        %1845 = vmatprep.subr.bf16.mxu0 0
        %1846 = vmatpush2.bf16.msra.mxu0 0
        %1847 = vmatprep.subr.bf16.mxu0 0
        %1848 = vmatpush2.bf16.msra.mxu0 0
        %1849 = vmatprep.subr.bf16.mxu0 0
        %1850 = vmatpush2.bf16.msra.mxu0 0
        %1851 = vmatprep.mubr.bf16.mxu0 0
        %1852 = vmatmul.mubr.bf16.gmra.mxu0 %v1811
        %v1853 = vpop.f32.mrf.mxu0
        %v1854 = vadd.f32 0.0, %v1853
        %v1855 = vpop.f32.mrf.mxu0
        %v1856 = vadd.f32 0.0, %v1855
        %v1857 = vpop.f32.mrf.mxu0
        %v1858 = vpop.f32.mrf.mxu0
        %1859 = vdwg.mxu0
        %v1860 = vadd.f32 %v1796, %v1854
        %v1861 = vadd.f32 %v1797, %v1856
        %v1862 = vld [vmem:[%s11] sm:$0xf]
        %1864 = vset.pattern.permute.xlu0 0
        %1865 = vperm.xlu0 %1864, %v1862
        %v1866 = vpop.permute.xlu0 %1865
        %v1868 = vadd.f32 %v1860, %v1866
        %v1869 = vadd.f32 %v1861, %v1866
        %v1870 = vsub.f32 0.0, %v1868
        %v1871 = vsub.f32 0.0, %v1869
        %v1872 = vmul.f32 %v1870, 1.442695
        %v1873 = vpow.pop %v1872
        %v1874 = vmul.f32 %v1871, 1.442695
        %v1875 = vpow.pop %v1874
        %v1876 = vadd.f32 %v1873, 1.0
        %v1877 = vadd.f32 %v1875, 1.0
        %v1878 = vrcp.pop %v1876
        %v1879 = vrcp.pop %v1877
        %v1880 = vmul.f32 %v1868, %v1878
        %v1881 = vmul.f32 %v1869, %v1879
        %1882 = vrot.lane.b32.xlu0 %v1880, 17
        %v1883 = vpop.permute.xlu0 %1882
        %1884 = vrot.lane.b32.xlu0 %v1881, 17
        %v1885 = vpop.permute.xlu0 %1884
        %v1886 = vsel %vm607, %v1883, %v1885
        %v1887 = vsel %vm607, %v1885, %v1883
        %v1888 = vmul.f32 %v1887, %v615
        %v1889 = vmul.f32 %v1886, %v619
        %v1890 = vld [vmem:[%s5] sm:$0x3]
        %v1891 = vpack.c.bf16 %v1888, %v1888
        %v1892 = vpack.c.bf16 %v1889, %v1889
        %1893 = vrot.lane.b32.xlu0 %v1880, 16
        %v1894 = vpop.permute.xlu0 %1893
        %1895 = vrot.lane.b32.xlu0 %v1881, 16
        %v1896 = vpop.permute.xlu0 %1895
        %v1897 = vsel %vm631, %v1894, %v1896
        %v1898 = vsel %vm631, %v1896, %v1894
        %v1899 = vmul.f32 %v1898, %v640
        %v1900 = vmul.f32 %v1897, %v644
        %s1901 = scalar_lea.vmem %s5, 2
        %v1902 = vld [vmem:[%s1901] sm:$0x3]
        %v1903 = vpack.c.bf16 %v1899, %v1899
        %v1904 = vpack.c.bf16 %v1900, %v1900
        %v1906 = vsel %vm523, %v1902, 0
        %v1909 = vsel %vm527, %v1903, 0
        %v1912 = vsel %vm527, %v1904, 0
        %1914 = vmatprep.subr.bf16.mxu0 0
        %1915 = vmatpush1.bf16.msra.mxu0 0
        %1916 = vmatprep.subr.bf16.mxu0 0
        %1917 = vmatpush1.bf16.msra.mxu0 0
        %1918 = vmatprep.subr.bf16.mxu0 0
        %1919 = vmatpush1.bf16.msra.mxu0 0
        %1920 = vmatprep.subr.bf16.mxu0 0
        %1921 = vmatpush1.bf16.msra.mxu0 0
        %1922 = vmatprep.subr.bf16.mxu0 0
        %1923 = vmatpush1.bf16.msra.mxu0 0
        %1924 = vmatprep.subr.bf16.mxu0 0
        %1925 = vmatpush1.bf16.msra.mxu0 0
        %1926 = vmatprep.subr.bf16.mxu0 0
        %1927 = vmatpush1.bf16.msra.mxu0 0
        %1928 = vmatprep.subr.bf16.mxu0 %v1912
        %1929 = vmatpush1.bf16.msra.mxu0 %v1909
        %1930 = vmatprep.subr.bf16.mxu0 0
        %1931 = vmatpush2.bf16.msra.mxu0 0
        %1932 = vmatprep.subr.bf16.mxu0 0
        %1933 = vmatpush2.bf16.msra.mxu0 0
        %1934 = vmatprep.subr.bf16.mxu0 0
        %1935 = vmatpush2.bf16.msra.mxu0 0
        %1936 = vmatprep.subr.bf16.mxu0 0
        %1937 = vmatpush2.bf16.msra.mxu0 0
        %1938 = vmatprep.subr.bf16.mxu0 0
        %1939 = vmatpush2.bf16.msra.mxu0 0
        %1940 = vmatprep.subr.bf16.mxu0 0
        %1941 = vmatpush2.bf16.msra.mxu0 0
        %1942 = vmatprep.subr.bf16.mxu0 0
        %1943 = vmatpush2.bf16.msra.mxu0 0
        %1944 = vmatprep.subr.bf16.mxu0 0
        %1945 = vmatpush2.bf16.msra.mxu0 0
        %1946 = vmatprep.mubr.bf16.mxu0 0
        %1947 = vmatmul.mubr.bf16.gmra.mxu0 %v1906
        %v1948 = vpop.f32.mrf.mxu0
        %v1949 = vadd.f32 0.0, %v1948
        %v1950 = vpop.f32.mrf.mxu0
        %v1951 = vadd.f32 0.0, %v1950
        %v1952 = vpop.f32.mrf.mxu0
        %v1953 = vpop.f32.mrf.mxu0
        %1954 = vdwg.mxu0
        %v1956 = vsel %vm523, %v1890, 0
        %v1959 = vsel %vm527, %v1891, 0
        %v1962 = vsel %vm527, %v1892, 0
        %1964 = vmatprep.subr.bf16.mxu0 0
        %1965 = vmatpush1.bf16.msra.mxu0 0
        %1966 = vmatprep.subr.bf16.mxu0 0
        %1967 = vmatpush1.bf16.msra.mxu0 0
        %1968 = vmatprep.subr.bf16.mxu0 0
        %1969 = vmatpush1.bf16.msra.mxu0 0
        %1970 = vmatprep.subr.bf16.mxu0 0
        %1971 = vmatpush1.bf16.msra.mxu0 0
        %1972 = vmatprep.subr.bf16.mxu0 0
        %1973 = vmatpush1.bf16.msra.mxu0 0
        %1974 = vmatprep.subr.bf16.mxu0 0
        %1975 = vmatpush1.bf16.msra.mxu0 0
        %1976 = vmatprep.subr.bf16.mxu0 0
        %1977 = vmatpush1.bf16.msra.mxu0 0
        %1978 = vmatprep.subr.bf16.mxu0 %v1962
        %1979 = vmatpush1.bf16.msra.mxu0 %v1959
        %1980 = vmatprep.subr.bf16.mxu0 0
        %1981 = vmatpush2.bf16.msra.mxu0 0
        %1982 = vmatprep.subr.bf16.mxu0 0
        %1983 = vmatpush2.bf16.msra.mxu0 0
        %1984 = vmatprep.subr.bf16.mxu0 0
        %1985 = vmatpush2.bf16.msra.mxu0 0
        %1986 = vmatprep.subr.bf16.mxu0 0
        %1987 = vmatpush2.bf16.msra.mxu0 0
        %1988 = vmatprep.subr.bf16.mxu0 0
        %1989 = vmatpush2.bf16.msra.mxu0 0
        %1990 = vmatprep.subr.bf16.mxu0 0
        %1991 = vmatpush2.bf16.msra.mxu0 0
        %1992 = vmatprep.subr.bf16.mxu0 0
        %1993 = vmatpush2.bf16.msra.mxu0 0
        %1994 = vmatprep.subr.bf16.mxu0 0
        %1995 = vmatpush2.bf16.msra.mxu0 0
        %1996 = vmatprep.mubr.bf16.mxu0 0
        %1997 = vmatmul.mubr.bf16.gmra.mxu0 %v1956
        %v1998 = vpop.f32.mrf.mxu0
        %v1999 = vadd.f32 %v1949, %v1998
        %v2000 = vpop.f32.mrf.mxu0
        %v2001 = vadd.f32 %v1951, %v2000
        %v2002 = vpop.f32.mrf.mxu0
        %v2003 = vpop.f32.mrf.mxu0
        %2004 = vdwg.mxu0
        %2005 = vrot.lane.b32.xlu0 %v1880, 15
        %v2006 = vpop.permute.xlu0 %2005
        %2007 = vrot.lane.b32.xlu0 %v1881, 15
        %v2008 = vpop.permute.xlu0 %2007
        %v2009 = vsel %vm759, %v2006, %v2008
        %v2010 = vsel %vm759, %v2008, %v2006
        %v2011 = vmul.f32 %v2010, %v768
        %v2012 = vmul.f32 %v2009, %v772
        %s2013 = scalar_lea.vmem %s5, 4
        %v2014 = vld [vmem:[%s2013] sm:$0x3]
        %v2015 = vpack.c.bf16 %v2011, %v2011
        %v2016 = vpack.c.bf16 %v2012, %v2012
        %v2018 = vsel %vm523, %v2014, 0
        %v2021 = vsel %vm527, %v2015, 0
        %v2024 = vsel %vm527, %v2016, 0
        %2026 = vmatprep.subr.bf16.mxu0 0
        %2027 = vmatpush1.bf16.msra.mxu0 0
        %2028 = vmatprep.subr.bf16.mxu0 0
        %2029 = vmatpush1.bf16.msra.mxu0 0
        %2030 = vmatprep.subr.bf16.mxu0 0
        %2031 = vmatpush1.bf16.msra.mxu0 0
        %2032 = vmatprep.subr.bf16.mxu0 0
        %2033 = vmatpush1.bf16.msra.mxu0 0
        %2034 = vmatprep.subr.bf16.mxu0 0
        %2035 = vmatpush1.bf16.msra.mxu0 0
        %2036 = vmatprep.subr.bf16.mxu0 0
        %2037 = vmatpush1.bf16.msra.mxu0 0
        %2038 = vmatprep.subr.bf16.mxu0 0
        %2039 = vmatpush1.bf16.msra.mxu0 0
        %2040 = vmatprep.subr.bf16.mxu0 %v2024
        %2041 = vmatpush1.bf16.msra.mxu0 %v2021
        %2042 = vmatprep.subr.bf16.mxu0 0
        %2043 = vmatpush2.bf16.msra.mxu0 0
        %2044 = vmatprep.subr.bf16.mxu0 0
        %2045 = vmatpush2.bf16.msra.mxu0 0
        %2046 = vmatprep.subr.bf16.mxu0 0
        %2047 = vmatpush2.bf16.msra.mxu0 0
        %2048 = vmatprep.subr.bf16.mxu0 0
        %2049 = vmatpush2.bf16.msra.mxu0 0
        %2050 = vmatprep.subr.bf16.mxu0 0
        %2051 = vmatpush2.bf16.msra.mxu0 0
        %2052 = vmatprep.subr.bf16.mxu0 0
        %2053 = vmatpush2.bf16.msra.mxu0 0
        %2054 = vmatprep.subr.bf16.mxu0 0
        %2055 = vmatpush2.bf16.msra.mxu0 0
        %2056 = vmatprep.subr.bf16.mxu0 0
        %2057 = vmatpush2.bf16.msra.mxu0 0
        %2058 = vmatprep.mubr.bf16.mxu0 0
        %2059 = vmatmul.mubr.bf16.gmra.mxu0 %v2018
        %v2060 = vpop.f32.mrf.mxu0
        %v2061 = vadd.f32 0.0, %v2060
        %v2062 = vpop.f32.mrf.mxu0
        %v2063 = vadd.f32 0.0, %v2062
        %v2064 = vpop.f32.mrf.mxu0
        %v2065 = vpop.f32.mrf.mxu0
        %2066 = vdwg.mxu0
        %v2067 = vadd.f32 %v1999, %v2061
        %v2068 = vadd.f32 %v2001, %v2063
        %2069 = vrot.lane.b32.xlu0 %v1880, 1
        %v2070 = vpop.permute.xlu0 %2069
        %2071 = vrot.lane.b32.xlu0 %v1881, 1
        %v2072 = vpop.permute.xlu0 %2071
        %v2073 = vsel %vm837, %v2070, %v2072
        %v2074 = vsel %vm837, %v2072, %v2070
        %v2075 = vmul.f32 %v2074, %v846
        %v2076 = vmul.f32 %v2073, %v850
        %s2077 = scalar_lea.vmem %s5, 6
        %v2078 = vld [vmem:[%s2077] sm:$0x3]
        %v2079 = vpack.c.bf16 %v2075, %v2075
        %v2080 = vpack.c.bf16 %v2076, %v2076
        %v2082 = vsel %vm523, %v2078, 0
        %v2085 = vsel %vm527, %v2079, 0
        %v2088 = vsel %vm527, %v2080, 0
        %2090 = vmatprep.subr.bf16.mxu0 0
        %2091 = vmatpush1.bf16.msra.mxu0 0
        %2092 = vmatprep.subr.bf16.mxu0 0
        %2093 = vmatpush1.bf16.msra.mxu0 0
        %2094 = vmatprep.subr.bf16.mxu0 0
        %2095 = vmatpush1.bf16.msra.mxu0 0
        %2096 = vmatprep.subr.bf16.mxu0 0
        %2097 = vmatpush1.bf16.msra.mxu0 0
        %2098 = vmatprep.subr.bf16.mxu0 0
        %2099 = vmatpush1.bf16.msra.mxu0 0
        %2100 = vmatprep.subr.bf16.mxu0 0
        %2101 = vmatpush1.bf16.msra.mxu0 0
        %2102 = vmatprep.subr.bf16.mxu0 0
        %2103 = vmatpush1.bf16.msra.mxu0 0
        %2104 = vmatprep.subr.bf16.mxu0 %v2088
        %2105 = vmatpush1.bf16.msra.mxu0 %v2085
        %2106 = vmatprep.subr.bf16.mxu0 0
        %2107 = vmatpush2.bf16.msra.mxu0 0
        %2108 = vmatprep.subr.bf16.mxu0 0
        %2109 = vmatpush2.bf16.msra.mxu0 0
        %2110 = vmatprep.subr.bf16.mxu0 0
        %2111 = vmatpush2.bf16.msra.mxu0 0
        %2112 = vmatprep.subr.bf16.mxu0 0
        %2113 = vmatpush2.bf16.msra.mxu0 0
        %2114 = vmatprep.subr.bf16.mxu0 0
        %2115 = vmatpush2.bf16.msra.mxu0 0
        %2116 = vmatprep.subr.bf16.mxu0 0
        %2117 = vmatpush2.bf16.msra.mxu0 0
        %2118 = vmatprep.subr.bf16.mxu0 0
        %2119 = vmatpush2.bf16.msra.mxu0 0
        %2120 = vmatprep.subr.bf16.mxu0 0
        %2121 = vmatpush2.bf16.msra.mxu0 0
        %2122 = vmatprep.mubr.bf16.mxu0 0
        %2123 = vmatmul.mubr.bf16.gmra.mxu0 %v2082
        %v2124 = vpop.f32.mrf.mxu0
        %v2125 = vadd.f32 0.0, %v2124
        %v2126 = vpop.f32.mrf.mxu0
        %v2127 = vadd.f32 0.0, %v2126
        %v2128 = vpop.f32.mrf.mxu0
        %v2129 = vpop.f32.mrf.mxu0
        %2130 = vdwg.mxu0
        %v2131 = vadd.f32 %v2067, %v2125
        %v2132 = vadd.f32 %v2068, %v2127
        %s2133 = scalar_lea.vmem %s5, 8
        %v2134 = vld [vmem:[%s2133] sm:$0x3]
        %v2135 = vpack.c.bf16 %v1880, %v1880
        %v2136 = vpack.c.bf16 %v1881, %v1881
        %v2138 = vsel %vm523, %v2134, 0
        %v2141 = vsel %vm527, %v2135, 0
        %v2144 = vsel %vm527, %v2136, 0
        %2146 = vmatprep.subr.bf16.mxu0 0
        %2147 = vmatpush1.bf16.msra.mxu0 0
        %2148 = vmatprep.subr.bf16.mxu0 0
        %2149 = vmatpush1.bf16.msra.mxu0 0
        %2150 = vmatprep.subr.bf16.mxu0 0
        %2151 = vmatpush1.bf16.msra.mxu0 0
        %2152 = vmatprep.subr.bf16.mxu0 0
        %2153 = vmatpush1.bf16.msra.mxu0 0
        %2154 = vmatprep.subr.bf16.mxu0 0
        %2155 = vmatpush1.bf16.msra.mxu0 0
        %2156 = vmatprep.subr.bf16.mxu0 0
        %2157 = vmatpush1.bf16.msra.mxu0 0
        %2158 = vmatprep.subr.bf16.mxu0 0
        %2159 = vmatpush1.bf16.msra.mxu0 0
        %2160 = vmatprep.subr.bf16.mxu0 %v2144
        %2161 = vmatpush1.bf16.msra.mxu0 %v2141
        %2162 = vmatprep.subr.bf16.mxu0 0
        %2163 = vmatpush2.bf16.msra.mxu0 0
        %2164 = vmatprep.subr.bf16.mxu0 0
        %2165 = vmatpush2.bf16.msra.mxu0 0
        %2166 = vmatprep.subr.bf16.mxu0 0
        %2167 = vmatpush2.bf16.msra.mxu0 0
        %2168 = vmatprep.subr.bf16.mxu0 0
        %2169 = vmatpush2.bf16.msra.mxu0 0
        %2170 = vmatprep.subr.bf16.mxu0 0
        %2171 = vmatpush2.bf16.msra.mxu0 0
        %2172 = vmatprep.subr.bf16.mxu0 0
        %2173 = vmatpush2.bf16.msra.mxu0 0
        %2174 = vmatprep.subr.bf16.mxu0 0
        %2175 = vmatpush2.bf16.msra.mxu0 0
        %2176 = vmatprep.subr.bf16.mxu0 0
        %2177 = vmatpush2.bf16.msra.mxu0 0
        %2178 = vmatprep.mubr.bf16.mxu0 0
        %2179 = vmatmul.mubr.bf16.gmra.mxu0 %v2138
        %v2180 = vpop.f32.mrf.mxu0
        %v2181 = vadd.f32 0.0, %v2180
        %v2182 = vpop.f32.mrf.mxu0
        %v2183 = vadd.f32 0.0, %v2182
        %v2184 = vpop.f32.mrf.mxu0
        %v2185 = vpop.f32.mrf.mxu0
        %2186 = vdwg.mxu0
        %v2187 = vadd.f32 %v2131, %v2181
        %v2188 = vadd.f32 %v2132, %v2183
        %2189 = vrot.lane.b32.xlu0 %v1880, 127
        %v2190 = vpop.permute.xlu0 %2189
        %2191 = vrot.lane.b32.xlu0 %v1881, 127
        %v2192 = vpop.permute.xlu0 %2191
        %v2193 = vsel %vm971, %v2190, %v2192
        %v2194 = vsel %vm971, %v2192, %v2190
        %v2195 = vmul.f32 %v2193, %v980
        %v2196 = vmul.f32 %v2194, %v984
        %s2197 = scalar_lea.vmem %s5, 10
        %v2198 = vld [vmem:[%s2197] sm:$0x3]
        %v2199 = vpack.c.bf16 %v2195, %v2195
        %v2200 = vpack.c.bf16 %v2196, %v2196
        %v2202 = vsel %vm523, %v2198, 0
        %v2205 = vsel %vm527, %v2199, 0
        %v2208 = vsel %vm527, %v2200, 0
        %2210 = vmatprep.subr.bf16.mxu0 0
        %2211 = vmatpush1.bf16.msra.mxu0 0
        %2212 = vmatprep.subr.bf16.mxu0 0
        %2213 = vmatpush1.bf16.msra.mxu0 0
        %2214 = vmatprep.subr.bf16.mxu0 0
        %2215 = vmatpush1.bf16.msra.mxu0 0
        %2216 = vmatprep.subr.bf16.mxu0 0
        %2217 = vmatpush1.bf16.msra.mxu0 0
        %2218 = vmatprep.subr.bf16.mxu0 0
        %2219 = vmatpush1.bf16.msra.mxu0 0
        %2220 = vmatprep.subr.bf16.mxu0 0
        %2221 = vmatpush1.bf16.msra.mxu0 0
        %2222 = vmatprep.subr.bf16.mxu0 0
        %2223 = vmatpush1.bf16.msra.mxu0 0
        %2224 = vmatprep.subr.bf16.mxu0 %v2208
        %2225 = vmatpush1.bf16.msra.mxu0 %v2205
        %2226 = vmatprep.subr.bf16.mxu0 0
        %2227 = vmatpush2.bf16.msra.mxu0 0
        %2228 = vmatprep.subr.bf16.mxu0 0
        %2229 = vmatpush2.bf16.msra.mxu0 0
        %2230 = vmatprep.subr.bf16.mxu0 0
        %2231 = vmatpush2.bf16.msra.mxu0 0
        %2232 = vmatprep.subr.bf16.mxu0 0
        %2233 = vmatpush2.bf16.msra.mxu0 0
        %2234 = vmatprep.subr.bf16.mxu0 0
        %2235 = vmatpush2.bf16.msra.mxu0 0
        %2236 = vmatprep.subr.bf16.mxu0 0
        %2237 = vmatpush2.bf16.msra.mxu0 0
        %2238 = vmatprep.subr.bf16.mxu0 0
        %2239 = vmatpush2.bf16.msra.mxu0 0
        %2240 = vmatprep.subr.bf16.mxu0 0
        %2241 = vmatpush2.bf16.msra.mxu0 0
        %2242 = vmatprep.mubr.bf16.mxu0 0
        %2243 = vmatmul.mubr.bf16.gmra.mxu0 %v2202
        %v2244 = vpop.f32.mrf.mxu0
        %v2245 = vadd.f32 0.0, %v2244
        %v2246 = vpop.f32.mrf.mxu0
        %v2247 = vadd.f32 0.0, %v2246
        %v2248 = vpop.f32.mrf.mxu0
        %v2249 = vpop.f32.mrf.mxu0
        %2250 = vdwg.mxu0
        %v2251 = vadd.f32 %v2187, %v2245
        %v2252 = vadd.f32 %v2188, %v2247
        %2253 = vrot.lane.b32.xlu0 %v1880, 113
        %v2254 = vpop.permute.xlu0 %2253
        %2255 = vrot.lane.b32.xlu0 %v1881, 113
        %v2256 = vpop.permute.xlu0 %2255
        %v2257 = vsel %vm1049, %v2254, %v2256
        %v2258 = vsel %vm1049, %v2256, %v2254
        %v2259 = vmul.f32 %v2257, %v1058
        %v2260 = vmul.f32 %v2258, %v1062
        %s2261 = scalar_lea.vmem %s5, 12
        %v2262 = vld [vmem:[%s2261] sm:$0x3]
        %v2263 = vpack.c.bf16 %v2259, %v2259
        %v2264 = vpack.c.bf16 %v2260, %v2260
        %v2266 = vsel %vm523, %v2262, 0
        %v2269 = vsel %vm527, %v2263, 0
        %v2272 = vsel %vm527, %v2264, 0
        %2274 = vmatprep.subr.bf16.mxu0 0
        %2275 = vmatpush1.bf16.msra.mxu0 0
        %2276 = vmatprep.subr.bf16.mxu0 0
        %2277 = vmatpush1.bf16.msra.mxu0 0
        %2278 = vmatprep.subr.bf16.mxu0 0
        %2279 = vmatpush1.bf16.msra.mxu0 0
        %2280 = vmatprep.subr.bf16.mxu0 0
        %2281 = vmatpush1.bf16.msra.mxu0 0
        %2282 = vmatprep.subr.bf16.mxu0 0
        %2283 = vmatpush1.bf16.msra.mxu0 0
        %2284 = vmatprep.subr.bf16.mxu0 0
        %2285 = vmatpush1.bf16.msra.mxu0 0
        %2286 = vmatprep.subr.bf16.mxu0 0
        %2287 = vmatpush1.bf16.msra.mxu0 0
        %2288 = vmatprep.subr.bf16.mxu0 %v2272
        %2289 = vmatpush1.bf16.msra.mxu0 %v2269
        %2290 = vmatprep.subr.bf16.mxu0 0
        %2291 = vmatpush2.bf16.msra.mxu0 0
        %2292 = vmatprep.subr.bf16.mxu0 0
        %2293 = vmatpush2.bf16.msra.mxu0 0
        %2294 = vmatprep.subr.bf16.mxu0 0
        %2295 = vmatpush2.bf16.msra.mxu0 0
        %2296 = vmatprep.subr.bf16.mxu0 0
        %2297 = vmatpush2.bf16.msra.mxu0 0
        %2298 = vmatprep.subr.bf16.mxu0 0
        %2299 = vmatpush2.bf16.msra.mxu0 0
        %2300 = vmatprep.subr.bf16.mxu0 0
        %2301 = vmatpush2.bf16.msra.mxu0 0
        %2302 = vmatprep.subr.bf16.mxu0 0
        %2303 = vmatpush2.bf16.msra.mxu0 0
        %2304 = vmatprep.subr.bf16.mxu0 0
        %2305 = vmatpush2.bf16.msra.mxu0 0
        %2306 = vmatprep.mubr.bf16.mxu0 0
        %2307 = vmatmul.mubr.bf16.gmra.mxu0 %v2266
        %v2308 = vpop.f32.mrf.mxu0
        %v2309 = vadd.f32 0.0, %v2308
        %v2310 = vpop.f32.mrf.mxu0
        %v2311 = vadd.f32 0.0, %v2310
        %v2312 = vpop.f32.mrf.mxu0
        %v2313 = vpop.f32.mrf.mxu0
        %2314 = vdwg.mxu0
        %v2315 = vadd.f32 %v2251, %v2309
        %v2316 = vadd.f32 %v2252, %v2311
        %2317 = vrot.lane.b32.xlu0 %v1880, 112
        %v2318 = vpop.permute.xlu0 %2317
        %2319 = vrot.lane.b32.xlu0 %v1881, 112
        %v2320 = vpop.permute.xlu0 %2319
        %v2321 = vsel %vm1127, %v2318, %v2320
        %v2322 = vsel %vm1127, %v2320, %v2318
        %v2323 = vmul.f32 %v2321, %v1136
        %v2324 = vmul.f32 %v2322, %v1140
        %s2325 = scalar_lea.vmem %s5, 14
        %v2326 = vld [vmem:[%s2325] sm:$0x3]
        %v2327 = vpack.c.bf16 %v2323, %v2323
        %v2328 = vpack.c.bf16 %v2324, %v2324
        %v2330 = vsel %vm523, %v2326, 0
        %v2333 = vsel %vm527, %v2327, 0
        %v2336 = vsel %vm527, %v2328, 0
        %2338 = vmatprep.subr.bf16.mxu0 0
        %2339 = vmatpush1.bf16.msra.mxu0 0
        %2340 = vmatprep.subr.bf16.mxu0 0
        %2341 = vmatpush1.bf16.msra.mxu0 0
        %2342 = vmatprep.subr.bf16.mxu0 0
        %2343 = vmatpush1.bf16.msra.mxu0 0
        %2344 = vmatprep.subr.bf16.mxu0 0
        %2345 = vmatpush1.bf16.msra.mxu0 0
        %2346 = vmatprep.subr.bf16.mxu0 0
        %2347 = vmatpush1.bf16.msra.mxu0 0
        %2348 = vmatprep.subr.bf16.mxu0 0
        %2349 = vmatpush1.bf16.msra.mxu0 0
        %2350 = vmatprep.subr.bf16.mxu0 0
        %2351 = vmatpush1.bf16.msra.mxu0 0
        %2352 = vmatprep.subr.bf16.mxu0 %v2336
        %2353 = vmatpush1.bf16.msra.mxu0 %v2333
        %2354 = vmatprep.subr.bf16.mxu0 0
        %2355 = vmatpush2.bf16.msra.mxu0 0
        %2356 = vmatprep.subr.bf16.mxu0 0
        %2357 = vmatpush2.bf16.msra.mxu0 0
        %2358 = vmatprep.subr.bf16.mxu0 0
        %2359 = vmatpush2.bf16.msra.mxu0 0
        %2360 = vmatprep.subr.bf16.mxu0 0
        %2361 = vmatpush2.bf16.msra.mxu0 0
        %2362 = vmatprep.subr.bf16.mxu0 0
        %2363 = vmatpush2.bf16.msra.mxu0 0
        %2364 = vmatprep.subr.bf16.mxu0 0
        %2365 = vmatpush2.bf16.msra.mxu0 0
        %2366 = vmatprep.subr.bf16.mxu0 0
        %2367 = vmatpush2.bf16.msra.mxu0 0
        %2368 = vmatprep.subr.bf16.mxu0 0
        %2369 = vmatpush2.bf16.msra.mxu0 0
        %2370 = vmatprep.mubr.bf16.mxu0 0
        %2371 = vmatmul.mubr.bf16.gmra.mxu0 %v2330
        %v2372 = vpop.f32.mrf.mxu0
        %v2373 = vadd.f32 0.0, %v2372
        %v2374 = vpop.f32.mrf.mxu0
        %v2375 = vadd.f32 0.0, %v2374
        %v2376 = vpop.f32.mrf.mxu0
        %v2377 = vpop.f32.mrf.mxu0
        %2378 = vdwg.mxu0
        %v2379 = vadd.f32 %v2315, %v2373
        %v2380 = vadd.f32 %v2316, %v2375
        %2381 = vrot.lane.b32.xlu0 %v1880, 111
        %v2382 = vpop.permute.xlu0 %2381
        %2383 = vrot.lane.b32.xlu0 %v1881, 111
        %v2384 = vpop.permute.xlu0 %2383
        %v2385 = vsel %vm1205, %v2382, %v2384
        %v2386 = vsel %vm1205, %v2384, %v2382
        %v2387 = vmul.f32 %v2385, %v1214
        %v2388 = vmul.f32 %v2386, %v1218
        %s2389 = scalar_lea.vmem %s5, 16
        %v2390 = vld [vmem:[%s2389] sm:$0x3]
        %v2391 = vpack.c.bf16 %v2387, %v2387
        %v2392 = vpack.c.bf16 %v2388, %v2388
        %v2394 = vsel %vm523, %v2390, 0
        %v2397 = vsel %vm527, %v2391, 0
        %v2400 = vsel %vm527, %v2392, 0
        %2402 = vmatprep.subr.bf16.mxu0 0
        %2403 = vmatpush1.bf16.msra.mxu0 0
        %2404 = vmatprep.subr.bf16.mxu0 0
        %2405 = vmatpush1.bf16.msra.mxu0 0
        %2406 = vmatprep.subr.bf16.mxu0 0
        %2407 = vmatpush1.bf16.msra.mxu0 0
        %2408 = vmatprep.subr.bf16.mxu0 0
        %2409 = vmatpush1.bf16.msra.mxu0 0
        %2410 = vmatprep.subr.bf16.mxu0 0
        %2411 = vmatpush1.bf16.msra.mxu0 0
        %2412 = vmatprep.subr.bf16.mxu0 0
        %2413 = vmatpush1.bf16.msra.mxu0 0
        %2414 = vmatprep.subr.bf16.mxu0 0
        %2415 = vmatpush1.bf16.msra.mxu0 0
        %2416 = vmatprep.subr.bf16.mxu0 %v2400
        %2417 = vmatpush1.bf16.msra.mxu0 %v2397
        %2418 = vmatprep.subr.bf16.mxu0 0
        %2419 = vmatpush2.bf16.msra.mxu0 0
        %2420 = vmatprep.subr.bf16.mxu0 0
        %2421 = vmatpush2.bf16.msra.mxu0 0
        %2422 = vmatprep.subr.bf16.mxu0 0
        %2423 = vmatpush2.bf16.msra.mxu0 0
        %2424 = vmatprep.subr.bf16.mxu0 0
        %2425 = vmatpush2.bf16.msra.mxu0 0
        %2426 = vmatprep.subr.bf16.mxu0 0
        %2427 = vmatpush2.bf16.msra.mxu0 0
        %2428 = vmatprep.subr.bf16.mxu0 0
        %2429 = vmatpush2.bf16.msra.mxu0 0
        %2430 = vmatprep.subr.bf16.mxu0 0
        %2431 = vmatpush2.bf16.msra.mxu0 0
        %2432 = vmatprep.subr.bf16.mxu0 0
        %2433 = vmatpush2.bf16.msra.mxu0 0
        %2434 = vmatprep.mubr.bf16.mxu0 0
        %2435 = vmatmul.mubr.bf16.gmra.mxu0 %v2394
        %v2436 = vpop.f32.mrf.mxu0
        %v2437 = vadd.f32 0.0, %v2436
        %v2438 = vpop.f32.mrf.mxu0
        %v2439 = vadd.f32 0.0, %v2438
        %v2440 = vpop.f32.mrf.mxu0
        %v2441 = vpop.f32.mrf.mxu0
        %2442 = vdwg.mxu0
        %v2443 = vadd.f32 %v2379, %v2437
        %v2444 = vadd.f32 %v2380, %v2439
        %v2445 = vld [vmem:[%s12] sm:$0xf]
        %2447 = vset.pattern.permute.xlu0 0
        %2448 = vperm.xlu0 %2447, %v2445
        %v2449 = vpop.permute.xlu0 %2448
        %v2451 = vadd.f32 %v2443, %v2449
        %v2452 = vadd.f32 %v2444, %v2449
        %v2453 = vsub.f32 0.0, %v2451
        %v2454 = vsub.f32 0.0, %v2452
        %v2455 = vmul.f32 %v2453, 1.442695
        %v2456 = vpow.pop %v2455
        %v2457 = vmul.f32 %v2454, 1.442695
        %v2458 = vpow.pop %v2457
        %v2459 = vadd.f32 %v2456, 1.0
        %v2460 = vadd.f32 %v2458, 1.0
        %v2461 = vrcp.pop %v2459
        %v2462 = vrcp.pop %v2460
        %v2463 = vmul.f32 %v2451, %v2461
        %v2464 = vmul.f32 %v2452, %v2462
        %2465 = vrot.lane.b32.xlu0 %v2463, 17
        %v2466 = vpop.permute.xlu0 %2465
        %2467 = vrot.lane.b32.xlu0 %v2464, 17
        %v2468 = vpop.permute.xlu0 %2467
        %v2469 = vsel %vm607, %v2466, %v2468
        %v2470 = vsel %vm607, %v2468, %v2466
        %v2471 = vmul.f32 %v2470, %v615
        %v2472 = vmul.f32 %v2469, %v619
        %v2473 = vld [vmem:[%s6] sm:$0x3]
        %v2474 = vpack.c.bf16 %v2471, %v2471
        %v2475 = vpack.c.bf16 %v2472, %v2472
        %2476 = vrot.lane.b32.xlu0 %v2463, 16
        %v2477 = vpop.permute.xlu0 %2476
        %2478 = vrot.lane.b32.xlu0 %v2464, 16
        %v2479 = vpop.permute.xlu0 %2478
        %v2480 = vsel %vm631, %v2477, %v2479
        %v2481 = vsel %vm631, %v2479, %v2477
        %v2482 = vmul.f32 %v2481, %v640
        %v2483 = vmul.f32 %v2480, %v644
        %s2484 = scalar_lea.vmem %s6, 2
        %v2485 = vld [vmem:[%s2484] sm:$0x3]
        %v2486 = vpack.c.bf16 %v2482, %v2482
        %v2487 = vpack.c.bf16 %v2483, %v2483
        %v2489 = vsel %vm523, %v2485, 0
        %v2492 = vsel %vm527, %v2486, 0
        %v2495 = vsel %vm527, %v2487, 0
        %2497 = vmatprep.subr.bf16.mxu0 0
        %2498 = vmatpush1.bf16.msra.mxu0 0
        %2499 = vmatprep.subr.bf16.mxu0 0
        %2500 = vmatpush1.bf16.msra.mxu0 0
        %2501 = vmatprep.subr.bf16.mxu0 0
        %2502 = vmatpush1.bf16.msra.mxu0 0
        %2503 = vmatprep.subr.bf16.mxu0 0
        %2504 = vmatpush1.bf16.msra.mxu0 0
        %2505 = vmatprep.subr.bf16.mxu0 0
        %2506 = vmatpush1.bf16.msra.mxu0 0
        %2507 = vmatprep.subr.bf16.mxu0 0
        %2508 = vmatpush1.bf16.msra.mxu0 0
        %2509 = vmatprep.subr.bf16.mxu0 0
        %2510 = vmatpush1.bf16.msra.mxu0 0
        %2511 = vmatprep.subr.bf16.mxu0 %v2495
        %2512 = vmatpush1.bf16.msra.mxu0 %v2492
        %2513 = vmatprep.subr.bf16.mxu0 0
        %2514 = vmatpush2.bf16.msra.mxu0 0
        %2515 = vmatprep.subr.bf16.mxu0 0
        %2516 = vmatpush2.bf16.msra.mxu0 0
        %2517 = vmatprep.subr.bf16.mxu0 0
        %2518 = vmatpush2.bf16.msra.mxu0 0
        %2519 = vmatprep.subr.bf16.mxu0 0
        %2520 = vmatpush2.bf16.msra.mxu0 0
        %2521 = vmatprep.subr.bf16.mxu0 0
        %2522 = vmatpush2.bf16.msra.mxu0 0
        %2523 = vmatprep.subr.bf16.mxu0 0
        %2524 = vmatpush2.bf16.msra.mxu0 0
        %2525 = vmatprep.subr.bf16.mxu0 0
        %2526 = vmatpush2.bf16.msra.mxu0 0
        %2527 = vmatprep.subr.bf16.mxu0 0
        %2528 = vmatpush2.bf16.msra.mxu0 0
        %2529 = vmatprep.mubr.bf16.mxu0 0
        %2530 = vmatmul.mubr.bf16.gmra.mxu0 %v2489
        %v2531 = vpop.f32.mrf.mxu0
        %v2532 = vadd.f32 0.0, %v2531
        %v2533 = vpop.f32.mrf.mxu0
        %v2534 = vadd.f32 0.0, %v2533
        %v2535 = vpop.f32.mrf.mxu0
        %v2536 = vpop.f32.mrf.mxu0
        %2537 = vdwg.mxu0
        %v2539 = vsel %vm523, %v2473, 0
        %v2542 = vsel %vm527, %v2474, 0
        %v2545 = vsel %vm527, %v2475, 0
        %2547 = vmatprep.subr.bf16.mxu0 0
        %2548 = vmatpush1.bf16.msra.mxu0 0
        %2549 = vmatprep.subr.bf16.mxu0 0
        %2550 = vmatpush1.bf16.msra.mxu0 0
        %2551 = vmatprep.subr.bf16.mxu0 0
        %2552 = vmatpush1.bf16.msra.mxu0 0
        %2553 = vmatprep.subr.bf16.mxu0 0
        %2554 = vmatpush1.bf16.msra.mxu0 0
        %2555 = vmatprep.subr.bf16.mxu0 0
        %2556 = vmatpush1.bf16.msra.mxu0 0
        %2557 = vmatprep.subr.bf16.mxu0 0
        %2558 = vmatpush1.bf16.msra.mxu0 0
        %2559 = vmatprep.subr.bf16.mxu0 0
        %2560 = vmatpush1.bf16.msra.mxu0 0
        %2561 = vmatprep.subr.bf16.mxu0 %v2545
        %2562 = vmatpush1.bf16.msra.mxu0 %v2542
        %2563 = vmatprep.subr.bf16.mxu0 0
        %2564 = vmatpush2.bf16.msra.mxu0 0
        %2565 = vmatprep.subr.bf16.mxu0 0
        %2566 = vmatpush2.bf16.msra.mxu0 0
        %2567 = vmatprep.subr.bf16.mxu0 0
        %2568 = vmatpush2.bf16.msra.mxu0 0
        %2569 = vmatprep.subr.bf16.mxu0 0
        %2570 = vmatpush2.bf16.msra.mxu0 0
        %2571 = vmatprep.subr.bf16.mxu0 0
        %2572 = vmatpush2.bf16.msra.mxu0 0
        %2573 = vmatprep.subr.bf16.mxu0 0
        %2574 = vmatpush2.bf16.msra.mxu0 0
        %2575 = vmatprep.subr.bf16.mxu0 0
        %2576 = vmatpush2.bf16.msra.mxu0 0
        %2577 = vmatprep.subr.bf16.mxu0 0
        %2578 = vmatpush2.bf16.msra.mxu0 0
        %2579 = vmatprep.mubr.bf16.mxu0 0
        %2580 = vmatmul.mubr.bf16.gmra.mxu0 %v2539
        %v2581 = vpop.f32.mrf.mxu0
        %v2582 = vadd.f32 %v2532, %v2581
        %v2583 = vpop.f32.mrf.mxu0
        %v2584 = vadd.f32 %v2534, %v2583
        %v2585 = vpop.f32.mrf.mxu0
        %v2586 = vpop.f32.mrf.mxu0
        %2587 = vdwg.mxu0
        %2588 = vrot.lane.b32.xlu0 %v2463, 15
        %v2589 = vpop.permute.xlu0 %2588
        %2590 = vrot.lane.b32.xlu0 %v2464, 15
        %v2591 = vpop.permute.xlu0 %2590
        %v2592 = vsel %vm759, %v2589, %v2591
        %v2593 = vsel %vm759, %v2591, %v2589
        %v2594 = vmul.f32 %v2593, %v768
        %v2595 = vmul.f32 %v2592, %v772
        %s2596 = scalar_lea.vmem %s6, 4
        %v2597 = vld [vmem:[%s2596] sm:$0x3]
        %v2598 = vpack.c.bf16 %v2594, %v2594
        %v2599 = vpack.c.bf16 %v2595, %v2595
        %v2601 = vsel %vm523, %v2597, 0
        %v2604 = vsel %vm527, %v2598, 0
        %v2607 = vsel %vm527, %v2599, 0
        %2609 = vmatprep.subr.bf16.mxu0 0
        %2610 = vmatpush1.bf16.msra.mxu0 0
        %2611 = vmatprep.subr.bf16.mxu0 0
        %2612 = vmatpush1.bf16.msra.mxu0 0
        %2613 = vmatprep.subr.bf16.mxu0 0
        %2614 = vmatpush1.bf16.msra.mxu0 0
        %2615 = vmatprep.subr.bf16.mxu0 0
        %2616 = vmatpush1.bf16.msra.mxu0 0
        %2617 = vmatprep.subr.bf16.mxu0 0
        %2618 = vmatpush1.bf16.msra.mxu0 0
        %2619 = vmatprep.subr.bf16.mxu0 0
        %2620 = vmatpush1.bf16.msra.mxu0 0
        %2621 = vmatprep.subr.bf16.mxu0 0
        %2622 = vmatpush1.bf16.msra.mxu0 0
        %2623 = vmatprep.subr.bf16.mxu0 %v2607
        %2624 = vmatpush1.bf16.msra.mxu0 %v2604
        %2625 = vmatprep.subr.bf16.mxu0 0
        %2626 = vmatpush2.bf16.msra.mxu0 0
        %2627 = vmatprep.subr.bf16.mxu0 0
        %2628 = vmatpush2.bf16.msra.mxu0 0
        %2629 = vmatprep.subr.bf16.mxu0 0
        %2630 = vmatpush2.bf16.msra.mxu0 0
        %2631 = vmatprep.subr.bf16.mxu0 0
        %2632 = vmatpush2.bf16.msra.mxu0 0
        %2633 = vmatprep.subr.bf16.mxu0 0
        %2634 = vmatpush2.bf16.msra.mxu0 0
        %2635 = vmatprep.subr.bf16.mxu0 0
        %2636 = vmatpush2.bf16.msra.mxu0 0
        %2637 = vmatprep.subr.bf16.mxu0 0
        %2638 = vmatpush2.bf16.msra.mxu0 0
        %2639 = vmatprep.subr.bf16.mxu0 0
        %2640 = vmatpush2.bf16.msra.mxu0 0
        %2641 = vmatprep.mubr.bf16.mxu0 0
        %2642 = vmatmul.mubr.bf16.gmra.mxu0 %v2601
        %v2643 = vpop.f32.mrf.mxu0
        %v2644 = vadd.f32 0.0, %v2643
        %v2645 = vpop.f32.mrf.mxu0
        %v2646 = vadd.f32 0.0, %v2645
        %v2647 = vpop.f32.mrf.mxu0
        %v2648 = vpop.f32.mrf.mxu0
        %2649 = vdwg.mxu0
        %v2650 = vadd.f32 %v2582, %v2644
        %v2651 = vadd.f32 %v2584, %v2646
        %2652 = vrot.lane.b32.xlu0 %v2463, 1
        %v2653 = vpop.permute.xlu0 %2652
        %2654 = vrot.lane.b32.xlu0 %v2464, 1
        %v2655 = vpop.permute.xlu0 %2654
        %v2656 = vsel %vm837, %v2653, %v2655
        %v2657 = vsel %vm837, %v2655, %v2653
        %v2658 = vmul.f32 %v2657, %v846
        %v2659 = vmul.f32 %v2656, %v850
        %s2660 = scalar_lea.vmem %s6, 6
        %v2661 = vld [vmem:[%s2660] sm:$0x3]
        %v2662 = vpack.c.bf16 %v2658, %v2658
        %v2663 = vpack.c.bf16 %v2659, %v2659
        %v2665 = vsel %vm523, %v2661, 0
        %v2668 = vsel %vm527, %v2662, 0
        %v2671 = vsel %vm527, %v2663, 0
        %2673 = vmatprep.subr.bf16.mxu0 0
        %2674 = vmatpush1.bf16.msra.mxu0 0
        %2675 = vmatprep.subr.bf16.mxu0 0
        %2676 = vmatpush1.bf16.msra.mxu0 0
        %2677 = vmatprep.subr.bf16.mxu0 0
        %2678 = vmatpush1.bf16.msra.mxu0 0
        %2679 = vmatprep.subr.bf16.mxu0 0
        %2680 = vmatpush1.bf16.msra.mxu0 0
        %2681 = vmatprep.subr.bf16.mxu0 0
        %2682 = vmatpush1.bf16.msra.mxu0 0
        %2683 = vmatprep.subr.bf16.mxu0 0
        %2684 = vmatpush1.bf16.msra.mxu0 0
        %2685 = vmatprep.subr.bf16.mxu0 0
        %2686 = vmatpush1.bf16.msra.mxu0 0
        %2687 = vmatprep.subr.bf16.mxu0 %v2671
        %2688 = vmatpush1.bf16.msra.mxu0 %v2668
        %2689 = vmatprep.subr.bf16.mxu0 0
        %2690 = vmatpush2.bf16.msra.mxu0 0
        %2691 = vmatprep.subr.bf16.mxu0 0
        %2692 = vmatpush2.bf16.msra.mxu0 0
        %2693 = vmatprep.subr.bf16.mxu0 0
        %2694 = vmatpush2.bf16.msra.mxu0 0
        %2695 = vmatprep.subr.bf16.mxu0 0
        %2696 = vmatpush2.bf16.msra.mxu0 0
        %2697 = vmatprep.subr.bf16.mxu0 0
        %2698 = vmatpush2.bf16.msra.mxu0 0
        %2699 = vmatprep.subr.bf16.mxu0 0
        %2700 = vmatpush2.bf16.msra.mxu0 0
        %2701 = vmatprep.subr.bf16.mxu0 0
        %2702 = vmatpush2.bf16.msra.mxu0 0
        %2703 = vmatprep.subr.bf16.mxu0 0
        %2704 = vmatpush2.bf16.msra.mxu0 0
        %2705 = vmatprep.mubr.bf16.mxu0 0
        %2706 = vmatmul.mubr.bf16.gmra.mxu0 %v2665
        %v2707 = vpop.f32.mrf.mxu0
        %v2708 = vadd.f32 0.0, %v2707
        %v2709 = vpop.f32.mrf.mxu0
        %v2710 = vadd.f32 0.0, %v2709
        %v2711 = vpop.f32.mrf.mxu0
        %v2712 = vpop.f32.mrf.mxu0
        %2713 = vdwg.mxu0
        %v2714 = vadd.f32 %v2650, %v2708
        %v2715 = vadd.f32 %v2651, %v2710
        %s2716 = scalar_lea.vmem %s6, 8
        %v2717 = vld [vmem:[%s2716] sm:$0x3]
        %v2718 = vpack.c.bf16 %v2463, %v2463
        %v2719 = vpack.c.bf16 %v2464, %v2464
        %v2721 = vsel %vm523, %v2717, 0
        %v2724 = vsel %vm527, %v2718, 0
        %v2727 = vsel %vm527, %v2719, 0
        %2729 = vmatprep.subr.bf16.mxu0 0
        %2730 = vmatpush1.bf16.msra.mxu0 0
        %2731 = vmatprep.subr.bf16.mxu0 0
        %2732 = vmatpush1.bf16.msra.mxu0 0
        %2733 = vmatprep.subr.bf16.mxu0 0
        %2734 = vmatpush1.bf16.msra.mxu0 0
        %2735 = vmatprep.subr.bf16.mxu0 0
        %2736 = vmatpush1.bf16.msra.mxu0 0
        %2737 = vmatprep.subr.bf16.mxu0 0
        %2738 = vmatpush1.bf16.msra.mxu0 0
        %2739 = vmatprep.subr.bf16.mxu0 0
        %2740 = vmatpush1.bf16.msra.mxu0 0
        %2741 = vmatprep.subr.bf16.mxu0 0
        %2742 = vmatpush1.bf16.msra.mxu0 0
        %2743 = vmatprep.subr.bf16.mxu0 %v2727
        %2744 = vmatpush1.bf16.msra.mxu0 %v2724
        %2745 = vmatprep.subr.bf16.mxu0 0
        %2746 = vmatpush2.bf16.msra.mxu0 0
        %2747 = vmatprep.subr.bf16.mxu0 0
        %2748 = vmatpush2.bf16.msra.mxu0 0
        %2749 = vmatprep.subr.bf16.mxu0 0
        %2750 = vmatpush2.bf16.msra.mxu0 0
        %2751 = vmatprep.subr.bf16.mxu0 0
        %2752 = vmatpush2.bf16.msra.mxu0 0
        %2753 = vmatprep.subr.bf16.mxu0 0
        %2754 = vmatpush2.bf16.msra.mxu0 0
        %2755 = vmatprep.subr.bf16.mxu0 0
        %2756 = vmatpush2.bf16.msra.mxu0 0
        %2757 = vmatprep.subr.bf16.mxu0 0
        %2758 = vmatpush2.bf16.msra.mxu0 0
        %2759 = vmatprep.subr.bf16.mxu0 0
        %2760 = vmatpush2.bf16.msra.mxu0 0
        %2761 = vmatprep.mubr.bf16.mxu0 0
        %2762 = vmatmul.mubr.bf16.gmra.mxu0 %v2721
        %v2763 = vpop.f32.mrf.mxu0
        %v2764 = vadd.f32 0.0, %v2763
        %v2765 = vpop.f32.mrf.mxu0
        %v2766 = vadd.f32 0.0, %v2765
        %v2767 = vpop.f32.mrf.mxu0
        %v2768 = vpop.f32.mrf.mxu0
        %2769 = vdwg.mxu0
        %v2770 = vadd.f32 %v2714, %v2764
        %v2771 = vadd.f32 %v2715, %v2766
        %2772 = vrot.lane.b32.xlu0 %v2463, 127
        %v2773 = vpop.permute.xlu0 %2772
        %2774 = vrot.lane.b32.xlu0 %v2464, 127
        %v2775 = vpop.permute.xlu0 %2774
        %v2776 = vsel %vm971, %v2773, %v2775
        %v2777 = vsel %vm971, %v2775, %v2773
        %v2778 = vmul.f32 %v2776, %v980
        %v2779 = vmul.f32 %v2777, %v984
        %s2780 = scalar_lea.vmem %s6, 10
        %v2781 = vld [vmem:[%s2780] sm:$0x3]
        %v2782 = vpack.c.bf16 %v2778, %v2778
        %v2783 = vpack.c.bf16 %v2779, %v2779
        %v2785 = vsel %vm523, %v2781, 0
        %v2788 = vsel %vm527, %v2782, 0
        %v2791 = vsel %vm527, %v2783, 0
        %2793 = vmatprep.subr.bf16.mxu0 0
        %2794 = vmatpush1.bf16.msra.mxu0 0
        %2795 = vmatprep.subr.bf16.mxu0 0
        %2796 = vmatpush1.bf16.msra.mxu0 0
        %2797 = vmatprep.subr.bf16.mxu0 0
        %2798 = vmatpush1.bf16.msra.mxu0 0
        %2799 = vmatprep.subr.bf16.mxu0 0
        %2800 = vmatpush1.bf16.msra.mxu0 0
        %2801 = vmatprep.subr.bf16.mxu0 0
        %2802 = vmatpush1.bf16.msra.mxu0 0
        %2803 = vmatprep.subr.bf16.mxu0 0
        %2804 = vmatpush1.bf16.msra.mxu0 0
        %2805 = vmatprep.subr.bf16.mxu0 0
        %2806 = vmatpush1.bf16.msra.mxu0 0
        %2807 = vmatprep.subr.bf16.mxu0 %v2791
        %2808 = vmatpush1.bf16.msra.mxu0 %v2788
        %2809 = vmatprep.subr.bf16.mxu0 0
        %2810 = vmatpush2.bf16.msra.mxu0 0
        %2811 = vmatprep.subr.bf16.mxu0 0
        %2812 = vmatpush2.bf16.msra.mxu0 0
        %2813 = vmatprep.subr.bf16.mxu0 0
        %2814 = vmatpush2.bf16.msra.mxu0 0
        %2815 = vmatprep.subr.bf16.mxu0 0
        %2816 = vmatpush2.bf16.msra.mxu0 0
        %2817 = vmatprep.subr.bf16.mxu0 0
        %2818 = vmatpush2.bf16.msra.mxu0 0
        %2819 = vmatprep.subr.bf16.mxu0 0
        %2820 = vmatpush2.bf16.msra.mxu0 0
        %2821 = vmatprep.subr.bf16.mxu0 0
        %2822 = vmatpush2.bf16.msra.mxu0 0
        %2823 = vmatprep.subr.bf16.mxu0 0
        %2824 = vmatpush2.bf16.msra.mxu0 0
        %2825 = vmatprep.mubr.bf16.mxu0 0
        %2826 = vmatmul.mubr.bf16.gmra.mxu0 %v2785
        %v2827 = vpop.f32.mrf.mxu0
        %v2828 = vadd.f32 0.0, %v2827
        %v2829 = vpop.f32.mrf.mxu0
        %v2830 = vadd.f32 0.0, %v2829
        %v2831 = vpop.f32.mrf.mxu0
        %v2832 = vpop.f32.mrf.mxu0
        %2833 = vdwg.mxu0
        %v2834 = vadd.f32 %v2770, %v2828
        %v2835 = vadd.f32 %v2771, %v2830
        %2836 = vrot.lane.b32.xlu0 %v2463, 113
        %v2837 = vpop.permute.xlu0 %2836
        %2838 = vrot.lane.b32.xlu0 %v2464, 113
        %v2839 = vpop.permute.xlu0 %2838
        %v2840 = vsel %vm1049, %v2837, %v2839
        %v2841 = vsel %vm1049, %v2839, %v2837
        %v2842 = vmul.f32 %v2840, %v1058
        %v2843 = vmul.f32 %v2841, %v1062
        %s2844 = scalar_lea.vmem %s6, 12
        %v2845 = vld [vmem:[%s2844] sm:$0x3]
        %v2846 = vpack.c.bf16 %v2842, %v2842
        %v2847 = vpack.c.bf16 %v2843, %v2843
        %v2849 = vsel %vm523, %v2845, 0
        %v2852 = vsel %vm527, %v2846, 0
        %v2855 = vsel %vm527, %v2847, 0
        %2857 = vmatprep.subr.bf16.mxu0 0
        %2858 = vmatpush1.bf16.msra.mxu0 0
        %2859 = vmatprep.subr.bf16.mxu0 0
        %2860 = vmatpush1.bf16.msra.mxu0 0
        %2861 = vmatprep.subr.bf16.mxu0 0
        %2862 = vmatpush1.bf16.msra.mxu0 0
        %2863 = vmatprep.subr.bf16.mxu0 0
        %2864 = vmatpush1.bf16.msra.mxu0 0
        %2865 = vmatprep.subr.bf16.mxu0 0
        %2866 = vmatpush1.bf16.msra.mxu0 0
        %2867 = vmatprep.subr.bf16.mxu0 0
        %2868 = vmatpush1.bf16.msra.mxu0 0
        %2869 = vmatprep.subr.bf16.mxu0 0
        %2870 = vmatpush1.bf16.msra.mxu0 0
        %2871 = vmatprep.subr.bf16.mxu0 %v2855
        %2872 = vmatpush1.bf16.msra.mxu0 %v2852
        %2873 = vmatprep.subr.bf16.mxu0 0
        %2874 = vmatpush2.bf16.msra.mxu0 0
        %2875 = vmatprep.subr.bf16.mxu0 0
        %2876 = vmatpush2.bf16.msra.mxu0 0
        %2877 = vmatprep.subr.bf16.mxu0 0
        %2878 = vmatpush2.bf16.msra.mxu0 0
        %2879 = vmatprep.subr.bf16.mxu0 0
        %2880 = vmatpush2.bf16.msra.mxu0 0
        %2881 = vmatprep.subr.bf16.mxu0 0
        %2882 = vmatpush2.bf16.msra.mxu0 0
        %2883 = vmatprep.subr.bf16.mxu0 0
        %2884 = vmatpush2.bf16.msra.mxu0 0
        %2885 = vmatprep.subr.bf16.mxu0 0
        %2886 = vmatpush2.bf16.msra.mxu0 0
        %2887 = vmatprep.subr.bf16.mxu0 0
        %2888 = vmatpush2.bf16.msra.mxu0 0
        %2889 = vmatprep.mubr.bf16.mxu0 0
        %2890 = vmatmul.mubr.bf16.gmra.mxu0 %v2849
        %v2891 = vpop.f32.mrf.mxu0
        %v2892 = vadd.f32 0.0, %v2891
        %v2893 = vpop.f32.mrf.mxu0
        %v2894 = vadd.f32 0.0, %v2893
        %v2895 = vpop.f32.mrf.mxu0
        %v2896 = vpop.f32.mrf.mxu0
        %2897 = vdwg.mxu0
        %v2898 = vadd.f32 %v2834, %v2892
        %v2899 = vadd.f32 %v2835, %v2894
        %2900 = vrot.lane.b32.xlu0 %v2463, 112
        %v2901 = vpop.permute.xlu0 %2900
        %2902 = vrot.lane.b32.xlu0 %v2464, 112
        %v2903 = vpop.permute.xlu0 %2902
        %v2904 = vsel %vm1127, %v2901, %v2903
        %v2905 = vsel %vm1127, %v2903, %v2901
        %v2906 = vmul.f32 %v2904, %v1136
        %v2907 = vmul.f32 %v2905, %v1140
        %s2908 = scalar_lea.vmem %s6, 14
        %v2909 = vld [vmem:[%s2908] sm:$0x3]
        %v2910 = vpack.c.bf16 %v2906, %v2906
        %v2911 = vpack.c.bf16 %v2907, %v2907
        %v2913 = vsel %vm523, %v2909, 0
        %v2916 = vsel %vm527, %v2910, 0
        %v2919 = vsel %vm527, %v2911, 0
        %2921 = vmatprep.subr.bf16.mxu0 0
        %2922 = vmatpush1.bf16.msra.mxu0 0
        %2923 = vmatprep.subr.bf16.mxu0 0
        %2924 = vmatpush1.bf16.msra.mxu0 0
        %2925 = vmatprep.subr.bf16.mxu0 0
        %2926 = vmatpush1.bf16.msra.mxu0 0
        %2927 = vmatprep.subr.bf16.mxu0 0
        %2928 = vmatpush1.bf16.msra.mxu0 0
        %2929 = vmatprep.subr.bf16.mxu0 0
        %2930 = vmatpush1.bf16.msra.mxu0 0
        %2931 = vmatprep.subr.bf16.mxu0 0
        %2932 = vmatpush1.bf16.msra.mxu0 0
        %2933 = vmatprep.subr.bf16.mxu0 0
        %2934 = vmatpush1.bf16.msra.mxu0 0
        %2935 = vmatprep.subr.bf16.mxu0 %v2919
        %2936 = vmatpush1.bf16.msra.mxu0 %v2916
        %2937 = vmatprep.subr.bf16.mxu0 0
        %2938 = vmatpush2.bf16.msra.mxu0 0
        %2939 = vmatprep.subr.bf16.mxu0 0
        %2940 = vmatpush2.bf16.msra.mxu0 0
        %2941 = vmatprep.subr.bf16.mxu0 0
        %2942 = vmatpush2.bf16.msra.mxu0 0
        %2943 = vmatprep.subr.bf16.mxu0 0
        %2944 = vmatpush2.bf16.msra.mxu0 0
        %2945 = vmatprep.subr.bf16.mxu0 0
        %2946 = vmatpush2.bf16.msra.mxu0 0
        %2947 = vmatprep.subr.bf16.mxu0 0
        %2948 = vmatpush2.bf16.msra.mxu0 0
        %2949 = vmatprep.subr.bf16.mxu0 0
        %2950 = vmatpush2.bf16.msra.mxu0 0
        %2951 = vmatprep.subr.bf16.mxu0 0
        %2952 = vmatpush2.bf16.msra.mxu0 0
        %2953 = vmatprep.mubr.bf16.mxu0 0
        %2954 = vmatmul.mubr.bf16.gmra.mxu0 %v2913
        %v2955 = vpop.f32.mrf.mxu0
        %v2956 = vadd.f32 0.0, %v2955
        %v2957 = vpop.f32.mrf.mxu0
        %v2958 = vadd.f32 0.0, %v2957
        %v2959 = vpop.f32.mrf.mxu0
        %v2960 = vpop.f32.mrf.mxu0
        %2961 = vdwg.mxu0
        %v2962 = vadd.f32 %v2898, %v2956
        %v2963 = vadd.f32 %v2899, %v2958
        %2964 = vrot.lane.b32.xlu0 %v2463, 111
        %v2965 = vpop.permute.xlu0 %2964
        %2966 = vrot.lane.b32.xlu0 %v2464, 111
        %v2967 = vpop.permute.xlu0 %2966
        %v2968 = vsel %vm1205, %v2965, %v2967
        %v2969 = vsel %vm1205, %v2967, %v2965
        %v2970 = vmul.f32 %v2968, %v1214
        %v2971 = vmul.f32 %v2969, %v1218
        %s2972 = scalar_lea.vmem %s6, 16
        %v2973 = vld [vmem:[%s2972] sm:$0x3]
        %v2974 = vpack.c.bf16 %v2970, %v2970
        %v2975 = vpack.c.bf16 %v2971, %v2971
        %v2977 = vsel %vm523, %v2973, 0
        %v2980 = vsel %vm527, %v2974, 0
        %v2983 = vsel %vm527, %v2975, 0
        %2985 = vmatprep.subr.bf16.mxu0 0
        %2986 = vmatpush1.bf16.msra.mxu0 0
        %2987 = vmatprep.subr.bf16.mxu0 0
        %2988 = vmatpush1.bf16.msra.mxu0 0
        %2989 = vmatprep.subr.bf16.mxu0 0
        %2990 = vmatpush1.bf16.msra.mxu0 0
        %2991 = vmatprep.subr.bf16.mxu0 0
        %2992 = vmatpush1.bf16.msra.mxu0 0
        %2993 = vmatprep.subr.bf16.mxu0 0
        %2994 = vmatpush1.bf16.msra.mxu0 0
        %2995 = vmatprep.subr.bf16.mxu0 0
        %2996 = vmatpush1.bf16.msra.mxu0 0
        %2997 = vmatprep.subr.bf16.mxu0 0
        %2998 = vmatpush1.bf16.msra.mxu0 0
        %2999 = vmatprep.subr.bf16.mxu0 %v2983
        %3000 = vmatpush1.bf16.msra.mxu0 %v2980
        %3001 = vmatprep.subr.bf16.mxu0 0
        %3002 = vmatpush2.bf16.msra.mxu0 0
        %3003 = vmatprep.subr.bf16.mxu0 0
        %3004 = vmatpush2.bf16.msra.mxu0 0
        %3005 = vmatprep.subr.bf16.mxu0 0
        %3006 = vmatpush2.bf16.msra.mxu0 0
        %3007 = vmatprep.subr.bf16.mxu0 0
        %3008 = vmatpush2.bf16.msra.mxu0 0
        %3009 = vmatprep.subr.bf16.mxu0 0
        %3010 = vmatpush2.bf16.msra.mxu0 0
        %3011 = vmatprep.subr.bf16.mxu0 0
        %3012 = vmatpush2.bf16.msra.mxu0 0
        %3013 = vmatprep.subr.bf16.mxu0 0
        %3014 = vmatpush2.bf16.msra.mxu0 0
        %3015 = vmatprep.subr.bf16.mxu0 0
        %3016 = vmatpush2.bf16.msra.mxu0 0
        %3017 = vmatprep.mubr.bf16.mxu0 0
        %3018 = vmatmul.mubr.bf16.gmra.mxu0 %v2977
        %v3019 = vpop.f32.mrf.mxu0
        %v3020 = vadd.f32 0.0, %v3019
        %v3021 = vpop.f32.mrf.mxu0
        %v3022 = vadd.f32 0.0, %v3021
        %v3023 = vpop.f32.mrf.mxu0
        %v3024 = vpop.f32.mrf.mxu0
        %3025 = vdwg.mxu0
        %v3026 = vadd.f32 %v2962, %v3020
        %v3027 = vadd.f32 %v2963, %v3022
        %v3028 = vld [vmem:[%s13] sm:$0xf]
        %3030 = vset.pattern.permute.xlu0 0
        %3031 = vperm.xlu0 %3030, %v3028
        %v3032 = vpop.permute.xlu0 %3031
        %v3034 = vadd.f32 %v3026, %v3032
        %v3035 = vadd.f32 %v3027, %v3032
        %v3036 = vsub.f32 0.0, %v3034
        %v3037 = vsub.f32 0.0, %v3035
        %v3038 = vmul.f32 %v3036, 1.442695
        %v3039 = vpow.pop %v3038
        %v3040 = vmul.f32 %v3037, 1.442695
        %v3041 = vpow.pop %v3040
        %v3042 = vadd.f32 %v3039, 1.0
        %v3043 = vadd.f32 %v3041, 1.0
        %v3044 = vrcp.pop %v3042
        %v3045 = vrcp.pop %v3043
        %v3046 = vmul.f32 %v3034, %v3044
        %v3047 = vmul.f32 %v3035, %v3045
        %v3048 = vld [vmem:[%s7] sm:$0xf]
        %v3049 = vpack.c.bf16 %v599, %v597
        %v3050 = vpack.c.bf16 %v600, %v598
        %v3051 = vld [vmem:[%s8] sm:$0xf]
        %v3053 = vsel %vm523, %v3051, 0
        %3055 = vmatprep.subr.bf16.mxu0 0
        %3056 = vmatpush1.bf16.msra.mxu0 0
        %3057 = vmatprep.subr.bf16.mxu0 0
        %3058 = vmatpush1.bf16.msra.mxu0 0
        %3059 = vmatprep.subr.bf16.mxu0 0
        %3060 = vmatpush1.bf16.msra.mxu0 0
        %3061 = vmatprep.subr.bf16.mxu0 0
        %3062 = vmatpush1.bf16.msra.mxu0 0
        %3063 = vmatprep.subr.bf16.mxu0 0
        %3064 = vmatpush1.bf16.msra.mxu0 0
        %3065 = vmatprep.subr.bf16.mxu0 0
        %3066 = vmatpush1.bf16.msra.mxu0 0
        %3067 = vmatprep.subr.bf16.mxu0 0
        %3068 = vmatpush1.bf16.msra.mxu0 0
        %3069 = vmatprep.subr.bf16.mxu0 %v1561
        %3070 = vmatpush1.bf16.msra.mxu0 %v1558
        %3071 = vmatprep.subr.bf16.mxu0 0
        %3072 = vmatpush2.bf16.msra.mxu0 0
        %3073 = vmatprep.subr.bf16.mxu0 0
        %3074 = vmatpush2.bf16.msra.mxu0 0
        %3075 = vmatprep.subr.bf16.mxu0 0
        %3076 = vmatpush2.bf16.msra.mxu0 0
        %3077 = vmatprep.subr.bf16.mxu0 0
        %3078 = vmatpush2.bf16.msra.mxu0 0
        %3079 = vmatprep.subr.bf16.mxu0 0
        %3080 = vmatpush2.bf16.msra.mxu0 0
        %3081 = vmatprep.subr.bf16.mxu0 0
        %3082 = vmatpush2.bf16.msra.mxu0 0
        %3083 = vmatprep.subr.bf16.mxu0 0
        %3084 = vmatpush2.bf16.msra.mxu0 0
        %3085 = vmatprep.subr.bf16.mxu0 0
        %3086 = vmatpush2.bf16.msra.mxu0 0
        %3087 = vmatprep.mubr.bf16.mxu0 0
        %3088 = vmatmul.mubr.bf16.gmra.mxu0 %v3053
        %v3089 = vpop.f32.mrf.mxu0
        %v3090 = vadd.f32 0.0, %v3089
        %v3091 = vpop.f32.mrf.mxu0
        %v3092 = vadd.f32 0.0, %v3091
        %v3093 = vpop.f32.mrf.mxu0
        %v3094 = vpop.f32.mrf.mxu0
        %3095 = vdwg.mxu0
        %vm3096 = vcmask 130048
        %v3098 = vsel %vm3096, %v3048, 0
        %3100 = vmatprep.subr.bf16.mxu0 0
        %3101 = vmatpush1.bf16.msra.mxu0 0
        %3102 = vmatprep.subr.bf16.mxu0 0
        %3103 = vmatpush1.bf16.msra.mxu0 0
        %3104 = vmatprep.subr.bf16.mxu0 0
        %3105 = vmatpush1.bf16.msra.mxu0 0
        %3106 = vmatprep.subr.bf16.mxu0 0
        %3107 = vmatpush1.bf16.msra.mxu0 0
        %3108 = vmatprep.subr.bf16.mxu0 0
        %3109 = vmatpush1.bf16.msra.mxu0 0
        %3110 = vmatprep.subr.bf16.mxu0 0
        %3111 = vmatpush1.bf16.msra.mxu0 0
        %3112 = vmatprep.subr.bf16.mxu0 0
        %3113 = vmatpush1.bf16.msra.mxu0 0
        %3114 = vmatprep.subr.bf16.mxu0 %v3050
        %3115 = vmatpush1.bf16.msra.mxu0 %v3049
        %3116 = vmatprep.subr.bf16.mxu0 0
        %3117 = vmatpush2.bf16.msra.mxu0 0
        %3118 = vmatprep.subr.bf16.mxu0 0
        %3119 = vmatpush2.bf16.msra.mxu0 0
        %3120 = vmatprep.subr.bf16.mxu0 0
        %3121 = vmatpush2.bf16.msra.mxu0 0
        %3122 = vmatprep.subr.bf16.mxu0 0
        %3123 = vmatpush2.bf16.msra.mxu0 0
        %3124 = vmatprep.subr.bf16.mxu0 0
        %3125 = vmatpush2.bf16.msra.mxu0 0
        %3126 = vmatprep.subr.bf16.mxu0 0
        %3127 = vmatpush2.bf16.msra.mxu0 0
        %3128 = vmatprep.subr.bf16.mxu0 0
        %3129 = vmatpush2.bf16.msra.mxu0 0
        %3130 = vmatprep.subr.bf16.mxu0 0
        %3131 = vmatpush2.bf16.msra.mxu0 0
        %3132 = vmatprep.mubr.bf16.mxu0 0
        %3133 = vmatmul.mubr.bf16.gmra.mxu0 %v3098
        %v3134 = vpop.f32.mrf.mxu0
        %v3135 = vadd.f32 %v3090, %v3134
        %v3136 = vpop.f32.mrf.mxu0
        %v3137 = vadd.f32 %v3092, %v3136
        %v3138 = vpop.f32.mrf.mxu0
        %v3139 = vpop.f32.mrf.mxu0
        %3140 = vdwg.mxu0
        %s3141 = scalar_lea.vmem %s8, 4
        %v3142 = vld [vmem:[%s3141] sm:$0xf]
        %v3144 = vsel %vm523, %v3142, 0
        %3146 = vmatprep.subr.bf16.mxu0 0
        %3147 = vmatpush1.bf16.msra.mxu0 0
        %3148 = vmatprep.subr.bf16.mxu0 0
        %3149 = vmatpush1.bf16.msra.mxu0 0
        %3150 = vmatprep.subr.bf16.mxu0 0
        %3151 = vmatpush1.bf16.msra.mxu0 0
        %3152 = vmatprep.subr.bf16.mxu0 0
        %3153 = vmatpush1.bf16.msra.mxu0 0
        %3154 = vmatprep.subr.bf16.mxu0 0
        %3155 = vmatpush1.bf16.msra.mxu0 0
        %3156 = vmatprep.subr.bf16.mxu0 0
        %3157 = vmatpush1.bf16.msra.mxu0 0
        %3158 = vmatprep.subr.bf16.mxu0 0
        %3159 = vmatpush1.bf16.msra.mxu0 0
        %3160 = vmatprep.subr.bf16.mxu0 %v2144
        %3161 = vmatpush1.bf16.msra.mxu0 %v2141
        %3162 = vmatprep.subr.bf16.mxu0 0
        %3163 = vmatpush2.bf16.msra.mxu0 0
        %3164 = vmatprep.subr.bf16.mxu0 0
        %3165 = vmatpush2.bf16.msra.mxu0 0
        %3166 = vmatprep.subr.bf16.mxu0 0
        %3167 = vmatpush2.bf16.msra.mxu0 0
        %3168 = vmatprep.subr.bf16.mxu0 0
        %3169 = vmatpush2.bf16.msra.mxu0 0
        %3170 = vmatprep.subr.bf16.mxu0 0
        %3171 = vmatpush2.bf16.msra.mxu0 0
        %3172 = vmatprep.subr.bf16.mxu0 0
        %3173 = vmatpush2.bf16.msra.mxu0 0
        %3174 = vmatprep.subr.bf16.mxu0 0
        %3175 = vmatpush2.bf16.msra.mxu0 0
        %3176 = vmatprep.subr.bf16.mxu0 0
        %3177 = vmatpush2.bf16.msra.mxu0 0
        %3178 = vmatprep.mubr.bf16.mxu0 0
        %3179 = vmatmul.mubr.bf16.gmra.mxu0 %v3144
        %v3180 = vpop.f32.mrf.mxu0
        %v3181 = vadd.f32 0.0, %v3180
        %v3182 = vpop.f32.mrf.mxu0
        %v3183 = vadd.f32 0.0, %v3182
        %v3184 = vpop.f32.mrf.mxu0
        %v3185 = vpop.f32.mrf.mxu0
        %3186 = vdwg.mxu0
        %v3187 = vadd.f32 %v3135, %v3181
        %v3188 = vadd.f32 %v3137, %v3183
        %s3189 = scalar_lea.vmem %s8, 8
        %v3190 = vld [vmem:[%s3189] sm:$0xf]
        %v3192 = vsel %vm523, %v3190, 0
        %3194 = vmatprep.subr.bf16.mxu0 0
        %3195 = vmatpush1.bf16.msra.mxu0 0
        %3196 = vmatprep.subr.bf16.mxu0 0
        %3197 = vmatpush1.bf16.msra.mxu0 0
        %3198 = vmatprep.subr.bf16.mxu0 0
        %3199 = vmatpush1.bf16.msra.mxu0 0
        %3200 = vmatprep.subr.bf16.mxu0 0
        %3201 = vmatpush1.bf16.msra.mxu0 0
        %3202 = vmatprep.subr.bf16.mxu0 0
        %3203 = vmatpush1.bf16.msra.mxu0 0
        %3204 = vmatprep.subr.bf16.mxu0 0
        %3205 = vmatpush1.bf16.msra.mxu0 0
        %3206 = vmatprep.subr.bf16.mxu0 0
        %3207 = vmatpush1.bf16.msra.mxu0 0
        %3208 = vmatprep.subr.bf16.mxu0 %v2727
        %3209 = vmatpush1.bf16.msra.mxu0 %v2724
        %3210 = vmatprep.subr.bf16.mxu0 0
        %3211 = vmatpush2.bf16.msra.mxu0 0
        %3212 = vmatprep.subr.bf16.mxu0 0
        %3213 = vmatpush2.bf16.msra.mxu0 0
        %3214 = vmatprep.subr.bf16.mxu0 0
        %3215 = vmatpush2.bf16.msra.mxu0 0
        %3216 = vmatprep.subr.bf16.mxu0 0
        %3217 = vmatpush2.bf16.msra.mxu0 0
        %3218 = vmatprep.subr.bf16.mxu0 0
        %3219 = vmatpush2.bf16.msra.mxu0 0
        %3220 = vmatprep.subr.bf16.mxu0 0
        %3221 = vmatpush2.bf16.msra.mxu0 0
        %3222 = vmatprep.subr.bf16.mxu0 0
        %3223 = vmatpush2.bf16.msra.mxu0 0
        %3224 = vmatprep.subr.bf16.mxu0 0
        %3225 = vmatpush2.bf16.msra.mxu0 0
        %3226 = vmatprep.mubr.bf16.mxu0 0
        %3227 = vmatmul.mubr.bf16.gmra.mxu0 %v3192
        %v3228 = vpop.f32.mrf.mxu0
        %v3229 = vadd.f32 0.0, %v3228
        %v3230 = vpop.f32.mrf.mxu0
        %v3231 = vadd.f32 0.0, %v3230
        %v3232 = vpop.f32.mrf.mxu0
        %v3233 = vpop.f32.mrf.mxu0
        %3234 = vdwg.mxu0
        %v3235 = vadd.f32 %v3187, %v3229
        %v3236 = vadd.f32 %v3188, %v3231
        %s3237 = scalar_lea.vmem %s8, 12
        %v3238 = vld [vmem:[%s3237] sm:$0xf]
        %v3239 = vpack.c.bf16 %v3046, %v3046
        %v3240 = vpack.c.bf16 %v3047, %v3047
        %v3242 = vsel %vm523, %v3238, 0
        %v3245 = vsel %vm527, %v3239, 0
        %v3248 = vsel %vm527, %v3240, 0
        %3250 = vmatprep.subr.bf16.mxu0 0
        %3251 = vmatpush1.bf16.msra.mxu0 0
        %3252 = vmatprep.subr.bf16.mxu0 0
        %3253 = vmatpush1.bf16.msra.mxu0 0
        %3254 = vmatprep.subr.bf16.mxu0 0
        %3255 = vmatpush1.bf16.msra.mxu0 0
        %3256 = vmatprep.subr.bf16.mxu0 0
        %3257 = vmatpush1.bf16.msra.mxu0 0
        %3258 = vmatprep.subr.bf16.mxu0 0
        %3259 = vmatpush1.bf16.msra.mxu0 0
        %3260 = vmatprep.subr.bf16.mxu0 0
        %3261 = vmatpush1.bf16.msra.mxu0 0
        %3262 = vmatprep.subr.bf16.mxu0 0
        %3263 = vmatpush1.bf16.msra.mxu0 0
        %3264 = vmatprep.subr.bf16.mxu0 %v3248
        %3265 = vmatpush1.bf16.msra.mxu0 %v3245
        %3266 = vmatprep.subr.bf16.mxu0 0
        %3267 = vmatpush2.bf16.msra.mxu0 0
        %3268 = vmatprep.subr.bf16.mxu0 0
        %3269 = vmatpush2.bf16.msra.mxu0 0
        %3270 = vmatprep.subr.bf16.mxu0 0
        %3271 = vmatpush2.bf16.msra.mxu0 0
        %3272 = vmatprep.subr.bf16.mxu0 0
        %3273 = vmatpush2.bf16.msra.mxu0 0
        %3274 = vmatprep.subr.bf16.mxu0 0
        %3275 = vmatpush2.bf16.msra.mxu0 0
        %3276 = vmatprep.subr.bf16.mxu0 0
        %3277 = vmatpush2.bf16.msra.mxu0 0
        %3278 = vmatprep.subr.bf16.mxu0 0
        %3279 = vmatpush2.bf16.msra.mxu0 0
        %3280 = vmatprep.subr.bf16.mxu0 0
        %3281 = vmatpush2.bf16.msra.mxu0 0
        %3282 = vmatprep.mubr.bf16.mxu0 0
        %3283 = vmatmul.mubr.bf16.gmra.mxu0 %v3242
        %v3284 = vpop.f32.mrf.mxu0
        %v3285 = vadd.f32 0.0, %v3284
        %v3286 = vpop.f32.mrf.mxu0
        %v3287 = vadd.f32 0.0, %v3286
        %v3288 = vpop.f32.mrf.mxu0
        %v3289 = vpop.f32.mrf.mxu0
        %3290 = vdwg.mxu0
        %v3291 = vadd.f32 %v3235, %v3285
        %v3292 = vadd.f32 %v3236, %v3287
        %v3293 = vld [vmem:[%s14] sm:$0xff]
        %3295 = vset.pattern.permute.xlu0 0
        %3296 = vperm.xlu0 %3295, %v3293
        %v3297 = vpop.permute.xlu0 %3296
        %v3299 = vadd.f32 %v3291, %v3297
        %v3300 = vadd.f32 %v3292, %v3297
        %v3301 = vsub.f32 0.0, %v3299
        %v3302 = vsub.f32 0.0, %v3300
        %v3303 = vmul.f32 %v3301, 1.442695
        %v3304 = vpow.pop %v3303
        %v3305 = vmul.f32 %v3302, 1.442695
        %v3306 = vpow.pop %v3305
        %v3307 = vadd.f32 %v3304, 1.0
        %v3308 = vadd.f32 %v3306, 1.0
        %v3309 = vrcp.pop %v3307
        %v3310 = vrcp.pop %v3308
        %v3311 = vmul.f32 %v3299, %v3309
        %v3312 = vmul.f32 %v3300, %v3310
        %3313 = vst [vmem:[%s487] sm:$0xff] %v3311
        %3314 = vst [vmem:[%s487 + $0x8] sm:$0xff] %v3312
        %s3315 = sand.u32 %s357, 1
        %s3316 = scalar_lea.sflag [#allocation3], %s3315
        %s3317 = sand.u32 %s357, 1
        %s3318 = smul.addr %s3317, 16
        %s3319 = scalar_lea.vmem [#allocation2], %s3318
        // Predicated region
        $region81: #{tpu_custom_call.1} parent=79 // pred_check
          %p3320 = pneg %p367
        $region82: #{tpu_custom_call.1} parent=79 // pred_check_branch
          %3322 = sbr.rel (%p3320) target = $region84
        $region83: #{tpu_custom_call.1} parent=79 // pred_region
          %s3324 = ssub.s32 256, 256
          %3325 = vsyncadd %s3316, %s3324
          %s3326 = smul.addr %s29, 2
          %s3327 = smul.addr %s3326, 128
          %s3328 = scalar_lea.hbm %s15, %s3327
          %s3330 = sshll.u32 %s3319, 4
          %s3331 = int_to_ptr.vmem [resolvable:$true] %s3330
          %3333 = dma.vmem_to_hbm [thread:$0]  %s3331, 256, %s3328, %s3316
        $region84: #{tpu_custom_call.1} parent=79 // pred_fallthru
          _
      $region80: #{tpu_custom_call.1} parent=5 // pred_fallthru
        _
      %p3334 = scmp.le.s32.totalorder 2, %s24
      // Predicated region
      $region85: #{tpu_custom_call.1} parent=5 // pred_check
        %p3335 = pneg %p3334
      $region86: #{tpu_custom_call.1} parent=5 // pred_check_branch
        %3337 = sbr.rel (%p3335) target = $region88
      $region87: #{tpu_custom_call.1} parent=5 // pred_region
        %s3338 = ssub.s32 %s24, 2
        // Predicated region
        $region89: #{tpu_custom_call.1} parent=87 // pred_check
          %p3339 = pneg %p373
        $region90: #{tpu_custom_call.1} parent=87 // pred_check_branch
          %3341 = sbr.rel (%p3339) target = $region92
        $region91: #{tpu_custom_call.1} parent=87 // pred_region
          %s3342 = sand.u32 %s358, 1
          %s3343 = scalar_lea.sflag [#allocation3], %s3342
          %s3344 = sand.u32 %s358, 1
          %s3345 = smul.addr %s3344, 16
          %s3346 = scalar_lea.vmem [#allocation2], %s3345
          %3347 = dma.done %s3343, 256
        $region92: #{tpu_custom_call.1} parent=87 // pred_fallthru
          _
      $region88: #{tpu_custom_call.1} parent=5 // pred_fallthru
        _
    $region6: #{tpu_custom_call.1} parent=1 // loop_footer
      %s28 = sadd.s32 1, %s24
    $region7: #{tpu_custom_call.1} parent=1 // loop_footer_branch
      %23 = sbr.rel target = $region3
    $region8: #{tpu_custom_call.1} parent=1 // loop_exit
      _
    %3348 = vsyncpa [#allocation3], 1
    %s3349 = scalar_lea.sflag [#allocation3], 1
    %3350 = vsyncpa %s3349, 1

</llo_original>
